<compile_context>
chip_gen: v7x
topology: tpu7x:2x2x1
jax: 0.10.0
libtpu: 0.0.40
codegen_flags: <defaults>
</compile_context>

<pallas_src>
import functools
import math

import jax
import jax.numpy as jnp
from jax.experimental import pallas as pl
from jax.experimental.pallas import tpu as pltpu


def _layer_norm(x, g, b, eps=1e-5):
    # PyTorch nn.LayerNorm: biased variance, eps inside sqrt, affine.
    mean = jnp.mean(x, axis=-1, keepdims=True)
    var = jnp.mean(jnp.square(x - mean), axis=-1, keepdims=True)
    return (x - mean) * jax.lax.rsqrt(var + eps) * g + b


def _erf(x):
    # Abramowitz-Stegun 7.1.26 rational approximation (max abs err ~1.5e-7).  Used so the
    # exact-erf GELU of PyTorch's default nn.GELU() lowers with only exp/VPU ops.
    p = 0.3275911
    a1, a2, a3, a4, a5 = 0.254829592, -0.284496736, 1.421413741, -1.453152027, 1.061405429
    sgn = jnp.where(x >= 0.0, 1.0, -1.0)
    ax = jnp.abs(x)
    t = 1.0 / (1.0 + p * ax)
    poly = ((((a5 * t + a4) * t + a3) * t + a2) * t + a1) * t
    return sgn * (1.0 - poly * jnp.exp(-(ax * ax)))


def _gelu_exact(x):
    return 0.5 * x * (1.0 + _erf(x * (1.0 / math.sqrt(2.0))))


def vit_kernel(
    x_ref,                 # (B, C, P) f32   flattened image channels (image-major, as stored)
    pw_ref,                # (P, E)  bf16    channel->latent projection (pre-transposed)
    pb_ref,                # (1, E)  f32
    cls_ref,               # (1, E)  f32     class token
    pos_ref,               # (1, E)  f32     positional encoding (shared by all tokens)
    ln0g_ref, ln0b_ref,    # (1, E)  f32     InputEmbeddings LayerNorm
    wqkv_ref,              # (E, 3E) bf16    fused MHA in-proj (pre-transposed, cols [q|k|v])
    bqkv_ref,              # (1, 3E) f32
    wo_ref,                # (E, E)  bf16    MHA out-proj (pre-transposed)
    bo_ref,                # (1, E)  f32
    ln1g_ref, ln1b_ref,    # (1, E)  f32     EncoderBlock.layer_norm
    ln2g_ref, ln2b_ref,    # (1, E)  f32     EncoderBlock.mlp LayerNorm
    wl_ref,                # (E, E)  bf16    EncoderBlock.mlp Linear (pre-transposed)
    bl_ref,                # (1, E)  f32
    o_ref,                 # (B, E)  f32     ViTModel output == x[:, 0]
    *, num_heads, num_layers,
):
    B, C, P = x_ref.shape
    E = pw_ref.shape[1]
    N = C + 1                          # tokens per image (C channel tokens + class token)
    dh = E // num_heads
    scale = 1.0 / math.sqrt(dh)
    f32, bf16 = jnp.float32, jnp.bfloat16

    # Load small parameters once (hoisted out of the layer loop).
    pb, pos = pb_ref[...], pos_ref[...]
    g0, b0 = ln0g_ref[...], ln0b_ref[...]
    wqkv, bqkv = wqkv_ref[...], bqkv_ref[...]
    wo, bo = wo_ref[...], bo_ref[...]
    g1, b1 = ln1g_ref[...], ln1b_ref[...]
    g2, b2 = ln2g_ref[...], ln2b_ref[...]
    wl, bl = wl_ref[...], bl_ref[...]

    # ---------------- InputEmbeddings ----------------
    # One flat (B*C, P) @ (P, E) matmul (K = P contraction feeds the MXU natively).
    x2d = x_ref[...].reshape(B * C, P)
    tok2d = jnp.dot(x2d.astype(bf16), pw_ref[...], preferred_element_type=f32)   # (B*C, E)
    tok2d = _layer_norm(tok2d + pb + pos, g0, b0)
    cls_row = _layer_norm(cls_ref[...] + pos, g0, b0)                            # (1, E)
    # Re-order image-major rows (b, c) -> token-major rows (c, b) on the E-wide activations
    # (the token axis is the MHA batch axis).  Class token appended LAST (token index C).
    tok_cbe = pltpu.einshape("bce->cbe", tok2d.reshape(B, C, E))                 # (C, B, E)
    h2d = jnp.concatenate(
        [tok_cbe.reshape(C * B, E), jnp.broadcast_to(cls_row, (B, E))], axis=0)  # (N*B, E)

    # ---------------- EncoderBlock x num_layers (shared weights) ----------------
    # Static unroll is appropriate for 2-3 layers; deeper stacks should use lax.fori_loop.
    for _ in range(num_layers):
        # Fused QKV: single flat 2-D matmul, q|k|v along the lane axis.
        qkv2d = jnp.dot(h2d.astype(bf16), wqkv, preferred_element_type=f32) + bqkv  # (N*B, 3E)
        qkv = qkv2d.reshape(N, B, 3 * E).astype(bf16)      # token-batched view for attention

        # Multi-head attention over the image axis, batched over tokens (MHA batch dim).
        ctx_heads = []
        for hh in range(num_heads):                        # static, small head count
            lo = hh * dh
            q_h = qkv[:, :, lo:lo + dh]                    # (N, B, dh)
            k_h = qkv[:, :, E + lo:E + lo + dh]
            v_h = qkv[:, :, 2 * E + lo:2 * E + lo + dh]
            s = jnp.einsum('nbd,ncd->nbc', q_h, k_h,
                           preferred_element_type=f32) * scale                   # (N, B, B)
            s = s - jnp.max(s, axis=-1, keepdims=True)
            p = jnp.exp(s)
            p = p * pl.reciprocal(jnp.sum(p, axis=-1, keepdims=True), approx=True)
            ctx_heads.append(jnp.einsum('nbc,ncd->nbd', p.astype(bf16), v_h,
                                        preferred_element_type=f32))             # (N, B, dh)
        # Heads concatenated along lanes, then ONE K=E out-projection matmul.
        ctx2d = jnp.concatenate(ctx_heads, axis=-1).reshape(N * B, E)
        attn2d = jnp.dot(ctx2d.astype(bf16), wo, preferred_element_type=f32) + bo
        # TODO(synk): dropout layers are identity (eval mode); training RNG masks not implemented.

        res = h2d + attn2d                                 # residual 1
        a2 = _layer_norm(res, g1, b1)                      # EncoderBlock.layer_norm
        m = _layer_norm(a2, g2, b2)                        # mlp[0] LayerNorm
        m = _gelu_exact(m)                                 # mlp[1] nn.GELU (exact erf)
        m = jnp.dot(m.astype(bf16), wl, preferred_element_type=f32) + bl  # mlp[3] Linear(E, E)
        h2d = m + res                                      # residual 2

    # ViTModel: x[:, 0] -> token-0 rows (the first B rows of the token-major slab).
    o_ref[...] = h2d[:B, :]


def vit_forward(x_img, params, *, num_heads, num_layers):
    """x_img: (B, C, H, W) images.  Returns (B, E) == ViTModel.forward output."""
    B, C, H, W = x_img.shape
    E = params[0].shape[1]
    # Free reshape only (no HBM transpose of the P-wide raw input); the token-major
    # re-ordering happens in-kernel on the E-wide projected activations.
    x_bcp = x_img.astype(jnp.float32).reshape(B, C, H * W)

    n_in = 1 + len(params)
    return pl.pallas_call(
        functools.partial(vit_kernel, num_heads=num_heads, num_layers=num_layers),
        out_shape=jax.ShapeDtypeStruct((B, E), jnp.float32),
        in_specs=[pl.BlockSpec(memory_space=pltpu.MemorySpace.VMEM)] * n_in,
        out_specs=pl.BlockSpec(memory_space=pltpu.MemorySpace.VMEM),
        # Tiny footprint; 32 MiB is within the scoped default on v5e/v6e and the 64 MiB
        # physical budget on v7x.
        compiler_params=pltpu.CompilerParams(vmem_limit_bytes=32 * 1024 * 1024),
    )(x_bcp, *params)


def make_params(key, *, num_pixels, embed_dim):
    """Deterministic synthetic parameters with the PyTorch module's shapes, pre-laid-out for
    the kernel (Linear weights pre-transposed; matmul weights bf16; biases/LN params f32)."""
    E, P = embed_dim, num_pixels
    ks = jax.random.split(key, 16)
    s = 0.05
    f32, bf16 = jnp.float32, jnp.bfloat16
    row = lambda v: v.reshape(1, -1)

    proj_w = jax.random.normal(ks[0], (E, P), f32) * s        # InputEmbeddings Linear.weight
    proj_b = jax.random.normal(ks[1], (E,), f32) * s
    cls_tok = jax.random.normal(ks[2], (1, E), f32)           # nn.Parameter(torch.randn)
    pos_emb = jax.random.uniform(ks[3], (1, E), f32)          # nn.Parameter(torch.rand)
    ln0_g = 1.0 + jax.random.normal(ks[4], (E,), f32) * s
    ln0_b = jax.random.normal(ks[5], (E,), f32) * s
    in_proj_w = jax.random.normal(ks[6], (3 * E, E), f32) * s  # MHA in_proj_weight [q;k;v]
    in_proj_b = jax.random.normal(ks[7], (3 * E,), f32) * s
    out_proj_w = jax.random.normal(ks[8], (E, E), f32) * s     # MHA out_proj.weight
    out_proj_b = jax.random.normal(ks[9], (E,), f32) * s
    ln1_g = 1.0 + jax.random.normal(ks[10], (E,), f32) * s     # EncoderBlock.layer_norm
    ln1_b = jax.random.normal(ks[11], (E,), f32) * s
    ln2_g = 1.0 + jax.random.normal(ks[12], (E,), f32) * s     # mlp LayerNorm
    ln2_b = jax.random.normal(ks[13], (E,), f32) * s
    lin_w = jax.random.normal(ks[14], (E, E), f32) * s         # mlp Linear.weight
    lin_b = jax.random.normal(ks[15], (E,), f32) * s

    # PyTorch Linear computes x @ W.T -> pre-transpose once in the wrapper.
    return (
        proj_w.T.astype(bf16), row(proj_b),
        cls_tok, pos_emb,
        row(ln0_g), row(ln0_b),
        in_proj_w.T.astype(bf16),                              # (E, 3E), cols [q|k|v]
        row(in_proj_b),                                        # (1, 3E)
        out_proj_w.T.astype(bf16),                             # (E, E)
        row(out_proj_b),
        row(ln1_g), row(ln1_b),
        row(ln2_g), row(ln2_b),
        lin_w.T.astype(bf16), row(lin_b),
    )


if __name__ == "__main__":
    B, C, HW = 2, 3, 16        # images, channels, spatial size
    E, HEADS = 32, 4           # latent_space == embeddin_dim, num_head
    NUM_BLOCK = 3              # ViTModel.number_block -> encoder applied NUM_BLOCK-1 times

    key = jax.random.PRNGKey(0)
    kx, kp = jax.random.split(key)
    x = jax.random.normal(kx, (B, C, HW, HW), jnp.float32)
    params = make_params(kp, num_pixels=HW * HW, embed_dim=E)

    y = vit_forward(x, params, num_heads=HEADS, num_layers=NUM_BLOCK - 1)
    y = jax.block_until_ready(y)
    assert y.shape == (B, E) and y.dtype == jnp.float32
    assert bool(jnp.all(jnp.isfinite(y)))
    print("KERNEL_OK")
</pallas_src>

<mosaic_0001>
module attributes {stable_mosaic.version = 11 : i64} {
  func.func @vit_kernel(%arg0: memref<2x3x256xf32, #tpu.memory_space<vmem>>, %arg1: memref<256x32xbf16, #tpu.memory_space<vmem>>, %arg2: memref<1x32xf32, #tpu.memory_space<vmem>>, %arg3: memref<1x32xf32, #tpu.memory_space<vmem>>, %arg4: memref<1x32xf32, #tpu.memory_space<vmem>>, %arg5: memref<1x32xf32, #tpu.memory_space<vmem>>, %arg6: memref<1x32xf32, #tpu.memory_space<vmem>>, %arg7: memref<32x96xbf16, #tpu.memory_space<vmem>>, %arg8: memref<1x96xf32, #tpu.memory_space<vmem>>, %arg9: memref<32x32xbf16, #tpu.memory_space<vmem>>, %arg10: memref<1x32xf32, #tpu.memory_space<vmem>>, %arg11: memref<1x32xf32, #tpu.memory_space<vmem>>, %arg12: memref<1x32xf32, #tpu.memory_space<vmem>>, %arg13: memref<1x32xf32, #tpu.memory_space<vmem>>, %arg14: memref<1x32xf32, #tpu.memory_space<vmem>>, %arg15: memref<32x32xbf16, #tpu.memory_space<vmem>>, %arg16: memref<1x32xf32, #tpu.memory_space<vmem>>, %arg17: memref<2x32xf32, #tpu.memory_space<vmem>>) attributes {dimension_semantics = [], scalar_prefetch = 0 : i64, scratch_operands = 0 : i64, tpu.core_type = #tpu.core_type<tc>} {
    %c0 = arith.constant 0 : index
    %c0_0 = arith.constant 0 : index
    %0 = vector.load %arg2[%c0, %c0_0] : memref<1x32xf32, #tpu.memory_space<vmem>>, vector<1x32xf32>
    %c0_1 = arith.constant 0 : index
    %c0_2 = arith.constant 0 : index
    %1 = vector.load %arg4[%c0_1, %c0_2] : memref<1x32xf32, #tpu.memory_space<vmem>>, vector<1x32xf32>
    %c0_3 = arith.constant 0 : index
    %c0_4 = arith.constant 0 : index
    %2 = vector.load %arg5[%c0_3, %c0_4] : memref<1x32xf32, #tpu.memory_space<vmem>>, vector<1x32xf32>
    %c0_5 = arith.constant 0 : index
    %c0_6 = arith.constant 0 : index
    %3 = vector.load %arg6[%c0_5, %c0_6] : memref<1x32xf32, #tpu.memory_space<vmem>>, vector<1x32xf32>
    %c0_7 = arith.constant 0 : index
    %c0_8 = arith.constant 0 : index
    %4 = vector.load %arg7[%c0_7, %c0_8] : memref<32x96xbf16, #tpu.memory_space<vmem>>, vector<32x96xbf16>
    %c0_9 = arith.constant 0 : index
    %c0_10 = arith.constant 0 : index
    %5 = vector.load %arg8[%c0_9, %c0_10] : memref<1x96xf32, #tpu.memory_space<vmem>>, vector<1x96xf32>
    %c0_11 = arith.constant 0 : index
    %c0_12 = arith.constant 0 : index
    %6 = vector.load %arg9[%c0_11, %c0_12] : memref<32x32xbf16, #tpu.memory_space<vmem>>, vector<32x32xbf16>
    %c0_13 = arith.constant 0 : index
    %c0_14 = arith.constant 0 : index
    %7 = vector.load %arg10[%c0_13, %c0_14] : memref<1x32xf32, #tpu.memory_space<vmem>>, vector<1x32xf32>
    %c0_15 = arith.constant 0 : index
    %c0_16 = arith.constant 0 : index
    %8 = vector.load %arg11[%c0_15, %c0_16] : memref<1x32xf32, #tpu.memory_space<vmem>>, vector<1x32xf32>
    %c0_17 = arith.constant 0 : index
    %c0_18 = arith.constant 0 : index
    %9 = vector.load %arg12[%c0_17, %c0_18] : memref<1x32xf32, #tpu.memory_space<vmem>>, vector<1x32xf32>
    %c0_19 = arith.constant 0 : index
    %c0_20 = arith.constant 0 : index
    %10 = vector.load %arg13[%c0_19, %c0_20] : memref<1x32xf32, #tpu.memory_space<vmem>>, vector<1x32xf32>
    %c0_21 = arith.constant 0 : index
    %c0_22 = arith.constant 0 : index
    %11 = vector.load %arg14[%c0_21, %c0_22] : memref<1x32xf32, #tpu.memory_space<vmem>>, vector<1x32xf32>
    %c0_23 = arith.constant 0 : index
    %c0_24 = arith.constant 0 : index
    %12 = vector.load %arg15[%c0_23, %c0_24] : memref<32x32xbf16, #tpu.memory_space<vmem>>, vector<32x32xbf16>
    %c0_25 = arith.constant 0 : index
    %c0_26 = arith.constant 0 : index
    %13 = vector.load %arg16[%c0_25, %c0_26] : memref<1x32xf32, #tpu.memory_space<vmem>>, vector<1x32xf32>
    %c0_27 = arith.constant 0 : index
    %c0_28 = arith.constant 0 : index
    %c0_29 = arith.constant 0 : index
    %14 = vector.load %arg0[%c0_27, %c0_28, %c0_29] : memref<2x3x256xf32, #tpu.memory_space<vmem>>, vector<2x3x256xf32>
    %15 = vector.shape_cast %14 : vector<2x3x256xf32> to vector<6x256xf32>
    %16 = arith.truncf %15 : vector<6x256xf32> to vector<6x256xbf16>
    %c0_30 = arith.constant 0 : index
    %c0_31 = arith.constant 0 : index
    %17 = vector.load %arg1[%c0_30, %c0_31] : memref<256x32xbf16, #tpu.memory_space<vmem>>, vector<256x32xbf16>
    %cst = arith.constant dense<0.000000e+00> : vector<6x32xf32>
    %18 = tpu.matmul %16, %17, %cst {dimension_numbers = #tpu.dot_dimension_numbers<[1], [0], [0], [1], [0, 0, 1, 1], [], []>} : vector<6x256xbf16>, vector<256x32xbf16>, vector<6x32xf32> -> vector<6x32xf32>
    %19 = vector.broadcast %0 : vector<1x32xf32> to vector<6x32xf32>
    %20 = arith.addf %18, %19 : vector<6x32xf32>
    %21 = vector.broadcast %1 : vector<1x32xf32> to vector<6x32xf32>
    %22 = arith.addf %20, %21 : vector<6x32xf32>
    %cst_32 = arith.constant dense<0.000000e+00> : vector<6xf32>
    %23 = vector.multi_reduction <add>, %22, %cst_32 [1] : vector<6x32xf32> to vector<6xf32>
    %24 = vector.shape_cast %23 : vector<6xf32> to vector<6x1xf32>
    %cst_33 = arith.constant 3.200000e+01 : f32
    %25 = vector.broadcast %cst_33 : f32 to vector<6x1xf32>
    %26 = arith.divf %24, %25 : vector<6x1xf32>
    %27 = vector.broadcast %26 : vector<6x1xf32> to vector<6x32xf32>
    %28 = arith.subf %22, %27 : vector<6x32xf32>
    %29 = arith.mulf %28, %28 : vector<6x32xf32>
    %cst_34 = arith.constant dense<0.000000e+00> : vector<6xf32>
    %30 = vector.multi_reduction <add>, %29, %cst_34 [1] : vector<6x32xf32> to vector<6xf32>
    %31 = vector.shape_cast %30 : vector<6xf32> to vector<6x1xf32>
    %cst_35 = arith.constant 3.200000e+01 : f32
    %32 = vector.broadcast %cst_35 : f32 to vector<6x1xf32>
    %33 = arith.divf %31, %32 : vector<6x1xf32>
    %34 = vector.broadcast %26 : vector<6x1xf32> to vector<6x32xf32>
    %35 = arith.subf %22, %34 : vector<6x32xf32>
    %cst_36 = arith.constant 9.99999974E-6 : f32
    %36 = vector.broadcast %cst_36 : f32 to vector<6x1xf32>
    %37 = arith.addf %33, %36 : vector<6x1xf32>
    %38 = math.rsqrt %37 : vector<6x1xf32>
    %39 = vector.broadcast %38 : vector<6x1xf32> to vector<6x32xf32>
    %40 = arith.mulf %35, %39 : vector<6x32xf32>
    %41 = vector.broadcast %2 : vector<1x32xf32> to vector<6x32xf32>
    %42 = arith.mulf %40, %41 : vector<6x32xf32>
    %43 = vector.broadcast %3 : vector<1x32xf32> to vector<6x32xf32>
    %44 = arith.addf %42, %43 : vector<6x32xf32>
    %c0_37 = arith.constant 0 : index
    %c0_38 = arith.constant 0 : index
    %45 = vector.load %arg3[%c0_37, %c0_38] : memref<1x32xf32, #tpu.memory_space<vmem>>, vector<1x32xf32>
    %46 = arith.addf %45, %1 : vector<1x32xf32>
    %cst_39 = arith.constant dense<0.000000e+00> : vector<1xf32>
    %47 = vector.multi_reduction <add>, %46, %cst_39 [1] : vector<1x32xf32> to vector<1xf32>
    %48 = vector.shape_cast %47 : vector<1xf32> to vector<1x1xf32>
    %cst_40 = arith.constant 3.200000e+01 : f32
    %49 = vector.broadcast %cst_40 : f32 to vector<1x1xf32>
    %50 = arith.divf %48, %49 : vector<1x1xf32>
    %51 = vector.broadcast %50 : vector<1x1xf32> to vector<1x32xf32>
    %52 = arith.subf %46, %51 : vector<1x32xf32>
    %53 = arith.mulf %52, %52 : vector<1x32xf32>
    %cst_41 = arith.constant dense<0.000000e+00> : vector<1xf32>
    %54 = vector.multi_reduction <add>, %53, %cst_41 [1] : vector<1x32xf32> to vector<1xf32>
    %55 = vector.shape_cast %54 : vector<1xf32> to vector<1x1xf32>
    %cst_42 = arith.constant 3.200000e+01 : f32
    %56 = vector.broadcast %cst_42 : f32 to vector<1x1xf32>
    %57 = arith.divf %55, %56 : vector<1x1xf32>
    %58 = vector.broadcast %50 : vector<1x1xf32> to vector<1x32xf32>
    %59 = arith.subf %46, %58 : vector<1x32xf32>
    %cst_43 = arith.constant 9.99999974E-6 : f32
    %60 = vector.broadcast %cst_43 : f32 to vector<1x1xf32>
    %61 = arith.addf %57, %60 : vector<1x1xf32>
    %62 = math.rsqrt %61 : vector<1x1xf32>
    %63 = vector.broadcast %62 : vector<1x1xf32> to vector<1x32xf32>
    %64 = arith.mulf %59, %63 : vector<1x32xf32>
    %65 = arith.mulf %64, %2 : vector<1x32xf32>
    %66 = arith.addf %65, %3 : vector<1x32xf32>
    %67 = vector.shape_cast %44 : vector<6x32xf32> to vector<2x3x32xf32>
    %68 = tpu.transpose %67, [1, 0, 2] : vector<2x3x32xf32> -> vector<3x2x32xf32>
    %69 = vector.shape_cast %68 : vector<3x2x32xf32> to vector<6x32xf32>
    %70 = vector.shape_cast %66 : vector<1x32xf32> to vector<1x32xf32>
    %71 = vector.broadcast %70 : vector<1x32xf32> to vector<2x32xf32>
    %72 = tpu.concatenate %69, %71 in 0 : vector<6x32xf32>, vector<2x32xf32> -> vector<8x32xf32>
    %73 = arith.truncf %72 : vector<8x32xf32> to vector<8x32xbf16>
    %cst_44 = arith.constant dense<0.000000e+00> : vector<8x96xf32>
    %74 = tpu.matmul %73, %4, %cst_44 {dimension_numbers = #tpu.dot_dimension_numbers<[1], [0], [0], [1], [0, 0, 1, 1], [], []>} : vector<8x32xbf16>, vector<32x96xbf16>, vector<8x96xf32> -> vector<8x96xf32>
    %75 = vector.broadcast %5 : vector<1x96xf32> to vector<8x96xf32>
    %76 = arith.addf %74, %75 : vector<8x96xf32>
    %77 = vector.shape_cast %76 : vector<8x96xf32> to vector<4x2x96xf32>
    %78 = arith.truncf %77 : vector<4x2x96xf32> to vector<4x2x96xbf16>
    %79 = vector.extract_strided_slice %78 {offsets = [0, 0, 0], sizes = [4, 2, 8], strides = [1, 1, 1]} : vector<4x2x96xbf16> to vector<4x2x8xbf16>
    %80 = vector.extract_strided_slice %78 {offsets = [0, 0, 32], sizes = [4, 2, 8], strides = [1, 1, 1]} : vector<4x2x96xbf16> to vector<4x2x8xbf16>
    %81 = vector.extract_strided_slice %78 {offsets = [0, 0, 64], sizes = [4, 2, 8], strides = [1, 1, 1]} : vector<4x2x96xbf16> to vector<4x2x8xbf16>
    "tpu.trace_start"() <{level = 10 : i32, message = "nbd,ncd->nbc"}> : () -> ()
    %cst_45 = arith.constant dense<0.000000e+00> : vector<4x2x2xf32>
    %82 = tpu.matmul %79, %80, %cst_45 {dimension_numbers = #tpu.dot_dimension_numbers<[2], [2], [1], [1], [0, 0, 0, 1, 1, 1], [0], [0]>} : vector<4x2x8xbf16>, vector<4x2x8xbf16>, vector<4x2x2xf32> -> vector<4x2x2xf32>
    "tpu.trace_stop"() : () -> ()
    %cst_46 = arith.constant 0.353553385 : f32
    %83 = vector.broadcast %cst_46 : f32 to vector<4x2x2xf32>
    %84 = arith.mulf %82, %83 : vector<4x2x2xf32>
    %cst_47 = arith.constant dense<0xFF800000> : vector<4x2xf32>
    %85 = vector.multi_reduction <maximumf>, %84, %cst_47 [2] : vector<4x2x2xf32> to vector<4x2xf32>
    %86 = vector.shape_cast %85 : vector<4x2xf32> to vector<4x2x1xf32>
    %87 = vector.broadcast %86 : vector<4x2x1xf32> to vector<4x2x2xf32>
    %88 = arith.subf %84, %87 : vector<4x2x2xf32>
    %89 = math.exp %88 : vector<4x2x2xf32>
    %cst_48 = arith.constant dense<0.000000e+00> : vector<4x2xf32>
    %90 = vector.multi_reduction <add>, %89, %cst_48 [2] : vector<4x2x2xf32> to vector<4x2xf32>
    %91 = vector.shape_cast %90 : vector<4x2xf32> to vector<4x2x1xf32>
    %92 = tpu.reciprocal %91 {approx = true} : vector<4x2x1xf32> -> vector<4x2x1xf32>
    %93 = vector.broadcast %92 : vector<4x2x1xf32> to vector<4x2x2xf32>
    %94 = arith.mulf %89, %93 : vector<4x2x2xf32>
    %95 = arith.truncf %94 : vector<4x2x2xf32> to vector<4x2x2xbf16>
    "tpu.trace_start"() <{level = 10 : i32, message = "nbc,ncd->nbd"}> : () -> ()
    %cst_49 = arith.constant dense<0.000000e+00> : vector<4x2x8xf32>
    %96 = tpu.matmul %95, %81, %cst_49 {dimension_numbers = #tpu.dot_dimension_numbers<[2], [1], [1], [2], [0, 0, 0, 1, 1, 2], [0], [0]>} : vector<4x2x2xbf16>, vector<4x2x8xbf16>, vector<4x2x8xf32> -> vector<4x2x8xf32>
    "tpu.trace_stop"() : () -> ()
    %97 = vector.extract_strided_slice %78 {offsets = [0, 0, 8], sizes = [4, 2, 8], strides = [1, 1, 1]} : vector<4x2x96xbf16> to vector<4x2x8xbf16>
    %98 = vector.extract_strided_slice %78 {offsets = [0, 0, 40], sizes = [4, 2, 8], strides = [1, 1, 1]} : vector<4x2x96xbf16> to vector<4x2x8xbf16>
    %99 = vector.extract_strided_slice %78 {offsets = [0, 0, 72], sizes = [4, 2, 8], strides = [1, 1, 1]} : vector<4x2x96xbf16> to vector<4x2x8xbf16>
    "tpu.trace_start"() <{level = 10 : i32, message = "nbd,ncd->nbc"}> : () -> ()
    %cst_50 = arith.constant dense<0.000000e+00> : vector<4x2x2xf32>
    %100 = tpu.matmul %97, %98, %cst_50 {dimension_numbers = #tpu.dot_dimension_numbers<[2], [2], [1], [1], [0, 0, 0, 1, 1, 1], [0], [0]>} : vector<4x2x8xbf16>, vector<4x2x8xbf16>, vector<4x2x2xf32> -> vector<4x2x2xf32>
    "tpu.trace_stop"() : () -> ()
    %cst_51 = arith.constant 0.353553385 : f32
    %101 = vector.broadcast %cst_51 : f32 to vector<4x2x2xf32>
    %102 = arith.mulf %100, %101 : vector<4x2x2xf32>
    %cst_52 = arith.constant dense<0xFF800000> : vector<4x2xf32>
    %103 = vector.multi_reduction <maximumf>, %102, %cst_52 [2] : vector<4x2x2xf32> to vector<4x2xf32>
    %104 = vector.shape_cast %103 : vector<4x2xf32> to vector<4x2x1xf32>
    %105 = vector.broadcast %104 : vector<4x2x1xf32> to vector<4x2x2xf32>
    %106 = arith.subf %102, %105 : vector<4x2x2xf32>
    %107 = math.exp %106 : vector<4x2x2xf32>
    %cst_53 = arith.constant dense<0.000000e+00> : vector<4x2xf32>
    %108 = vector.multi_reduction <add>, %107, %cst_53 [2] : vector<4x2x2xf32> to vector<4x2xf32>
    %109 = vector.shape_cast %108 : vector<4x2xf32> to vector<4x2x1xf32>
    %110 = tpu.reciprocal %109 {approx = true} : vector<4x2x1xf32> -> vector<4x2x1xf32>
    %111 = vector.broadcast %110 : vector<4x2x1xf32> to vector<4x2x2xf32>
    %112 = arith.mulf %107, %111 : vector<4x2x2xf32>
    %113 = arith.truncf %112 : vector<4x2x2xf32> to vector<4x2x2xbf16>
    "tpu.trace_start"() <{level = 10 : i32, message = "nbc,ncd->nbd"}> : () -> ()
    %cst_54 = arith.constant dense<0.000000e+00> : vector<4x2x8xf32>
    %114 = tpu.matmul %113, %99, %cst_54 {dimension_numbers = #tpu.dot_dimension_numbers<[2], [1], [1], [2], [0, 0, 0, 1, 1, 2], [0], [0]>} : vector<4x2x2xbf16>, vector<4x2x8xbf16>, vector<4x2x8xf32> -> vector<4x2x8xf32>
    "tpu.trace_stop"() : () -> ()
    %115 = vector.extract_strided_slice %78 {offsets = [0, 0, 16], sizes = [4, 2, 8], strides = [1, 1, 1]} : vector<4x2x96xbf16> to vector<4x2x8xbf16>
    %116 = vector.extract_strided_slice %78 {offsets = [0, 0, 48], sizes = [4, 2, 8], strides = [1, 1, 1]} : vector<4x2x96xbf16> to vector<4x2x8xbf16>
    %117 = vector.extract_strided_slice %78 {offsets = [0, 0, 80], sizes = [4, 2, 8], strides = [1, 1, 1]} : vector<4x2x96xbf16> to vector<4x2x8xbf16>
    "tpu.trace_start"() <{level = 10 : i32, message = "nbd,ncd->nbc"}> : () -> ()
    %cst_55 = arith.constant dense<0.000000e+00> : vector<4x2x2xf32>
    %118 = tpu.matmul %115, %116, %cst_55 {dimension_numbers = #tpu.dot_dimension_numbers<[2], [2], [1], [1], [0, 0, 0, 1, 1, 1], [0], [0]>} : vector<4x2x8xbf16>, vector<4x2x8xbf16>, vector<4x2x2xf32> -> vector<4x2x2xf32>
    "tpu.trace_stop"() : () -> ()
    %cst_56 = arith.constant 0.353553385 : f32
    %119 = vector.broadcast %cst_56 : f32 to vector<4x2x2xf32>
    %120 = arith.mulf %118, %119 : vector<4x2x2xf32>
    %cst_57 = arith.constant dense<0xFF800000> : vector<4x2xf32>
    %121 = vector.multi_reduction <maximumf>, %120, %cst_57 [2] : vector<4x2x2xf32> to vector<4x2xf32>
    %122 = vector.shape_cast %121 : vector<4x2xf32> to vector<4x2x1xf32>
    %123 = vector.broadcast %122 : vector<4x2x1xf32> to vector<4x2x2xf32>
    %124 = arith.subf %120, %123 : vector<4x2x2xf32>
    %125 = math.exp %124 : vector<4x2x2xf32>
    %cst_58 = arith.constant dense<0.000000e+00> : vector<4x2xf32>
    %126 = vector.multi_reduction <add>, %125, %cst_58 [2] : vector<4x2x2xf32> to vector<4x2xf32>
    %127 = vector.shape_cast %126 : vector<4x2xf32> to vector<4x2x1xf32>
    %128 = tpu.reciprocal %127 {approx = true} : vector<4x2x1xf32> -> vector<4x2x1xf32>
    %129 = vector.broadcast %128 : vector<4x2x1xf32> to vector<4x2x2xf32>
    %130 = arith.mulf %125, %129 : vector<4x2x2xf32>
    %131 = arith.truncf %130 : vector<4x2x2xf32> to vector<4x2x2xbf16>
    "tpu.trace_start"() <{level = 10 : i32, message = "nbc,ncd->nbd"}> : () -> ()
    %cst_59 = arith.constant dense<0.000000e+00> : vector<4x2x8xf32>
    %132 = tpu.matmul %131, %117, %cst_59 {dimension_numbers = #tpu.dot_dimension_numbers<[2], [1], [1], [2], [0, 0, 0, 1, 1, 2], [0], [0]>} : vector<4x2x2xbf16>, vector<4x2x8xbf16>, vector<4x2x8xf32> -> vector<4x2x8xf32>
    "tpu.trace_stop"() : () -> ()
    %133 = vector.extract_strided_slice %78 {offsets = [0, 0, 24], sizes = [4, 2, 8], strides = [1, 1, 1]} : vector<4x2x96xbf16> to vector<4x2x8xbf16>
    %134 = vector.extract_strided_slice %78 {offsets = [0, 0, 56], sizes = [4, 2, 8], strides = [1, 1, 1]} : vector<4x2x96xbf16> to vector<4x2x8xbf16>
    %135 = vector.extract_strided_slice %78 {offsets = [0, 0, 88], sizes = [4, 2, 8], strides = [1, 1, 1]} : vector<4x2x96xbf16> to vector<4x2x8xbf16>
    "tpu.trace_start"() <{level = 10 : i32, message = "nbd,ncd->nbc"}> : () -> ()
    %cst_60 = arith.constant dense<0.000000e+00> : vector<4x2x2xf32>
    %136 = tpu.matmul %133, %134, %cst_60 {dimension_numbers = #tpu.dot_dimension_numbers<[2], [2], [1], [1], [0, 0, 0, 1, 1, 1], [0], [0]>} : vector<4x2x8xbf16>, vector<4x2x8xbf16>, vector<4x2x2xf32> -> vector<4x2x2xf32>
    "tpu.trace_stop"() : () -> ()
    %cst_61 = arith.constant 0.353553385 : f32
    %137 = vector.broadcast %cst_61 : f32 to vector<4x2x2xf32>
    %138 = arith.mulf %136, %137 : vector<4x2x2xf32>
    %cst_62 = arith.constant dense<0xFF800000> : vector<4x2xf32>
    %139 = vector.multi_reduction <maximumf>, %138, %cst_62 [2] : vector<4x2x2xf32> to vector<4x2xf32>
    %140 = vector.shape_cast %139 : vector<4x2xf32> to vector<4x2x1xf32>
    %141 = vector.broadcast %140 : vector<4x2x1xf32> to vector<4x2x2xf32>
    %142 = arith.subf %138, %141 : vector<4x2x2xf32>
    %143 = math.exp %142 : vector<4x2x2xf32>
    %cst_63 = arith.constant dense<0.000000e+00> : vector<4x2xf32>
    %144 = vector.multi_reduction <add>, %143, %cst_63 [2] : vector<4x2x2xf32> to vector<4x2xf32>
    %145 = vector.shape_cast %144 : vector<4x2xf32> to vector<4x2x1xf32>
    %146 = tpu.reciprocal %145 {approx = true} : vector<4x2x1xf32> -> vector<4x2x1xf32>
    %147 = vector.broadcast %146 : vector<4x2x1xf32> to vector<4x2x2xf32>
    %148 = arith.mulf %143, %147 : vector<4x2x2xf32>
    %149 = arith.truncf %148 : vector<4x2x2xf32> to vector<4x2x2xbf16>
    "tpu.trace_start"() <{level = 10 : i32, message = "nbc,ncd->nbd"}> : () -> ()
    %cst_64 = arith.constant dense<0.000000e+00> : vector<4x2x8xf32>
    %150 = tpu.matmul %149, %135, %cst_64 {dimension_numbers = #tpu.dot_dimension_numbers<[2], [1], [1], [2], [0, 0, 0, 1, 1, 2], [0], [0]>} : vector<4x2x2xbf16>, vector<4x2x8xbf16>, vector<4x2x8xf32> -> vector<4x2x8xf32>
    "tpu.trace_stop"() : () -> ()
    %151 = tpu.concatenate %96, %114, %132, %150 in 2 : vector<4x2x8xf32>, vector<4x2x8xf32>, vector<4x2x8xf32>, vector<4x2x8xf32> -> vector<4x2x32xf32>
    %152 = vector.shape_cast %151 : vector<4x2x32xf32> to vector<8x32xf32>
    %153 = arith.truncf %152 : vector<8x32xf32> to vector<8x32xbf16>
    %cst_65 = arith.constant dense<0.000000e+00> : vector<8x32xf32>
    %154 = tpu.matmul %153, %6, %cst_65 {dimension_numbers = #tpu.dot_dimension_numbers<[1], [0], [0], [1], [0, 0, 1, 1], [], []>} : vector<8x32xbf16>, vector<32x32xbf16>, vector<8x32xf32> -> vector<8x32xf32>
    %155 = vector.broadcast %7 : vector<1x32xf32> to vector<8x32xf32>
    %156 = arith.addf %154, %155 : vector<8x32xf32>
    %157 = arith.addf %72, %156 : vector<8x32xf32>
    %cst_66 = arith.constant dense<0.000000e+00> : vector<8xf32>
    %158 = vector.multi_reduction <add>, %157, %cst_66 [1] : vector<8x32xf32> to vector<8xf32>
    %159 = vector.shape_cast %158 : vector<8xf32> to vector<8x1xf32>
    %cst_67 = arith.constant 3.200000e+01 : f32
    %160 = vector.broadcast %cst_67 : f32 to vector<8x1xf32>
    %161 = arith.divf %159, %160 : vector<8x1xf32>
    %162 = vector.broadcast %161 : vector<8x1xf32> to vector<8x32xf32>
    %163 = arith.subf %157, %162 : vector<8x32xf32>
    %164 = arith.mulf %163, %163 : vector<8x32xf32>
    %cst_68 = arith.constant dense<0.000000e+00> : vector<8xf32>
    %165 = vector.multi_reduction <add>, %164, %cst_68 [1] : vector<8x32xf32> to vector<8xf32>
    %166 = vector.shape_cast %165 : vector<8xf32> to vector<8x1xf32>
    %cst_69 = arith.constant 3.200000e+01 : f32
    %167 = vector.broadcast %cst_69 : f32 to vector<8x1xf32>
    %168 = arith.divf %166, %167 : vector<8x1xf32>
    %169 = vector.broadcast %161 : vector<8x1xf32> to vector<8x32xf32>
    %170 = arith.subf %157, %169 : vector<8x32xf32>
    %cst_70 = arith.constant 9.99999974E-6 : f32
    %171 = vector.broadcast %cst_70 : f32 to vector<8x1xf32>
    %172 = arith.addf %168, %171 : vector<8x1xf32>
    %173 = math.rsqrt %172 : vector<8x1xf32>
    %174 = vector.broadcast %173 : vector<8x1xf32> to vector<8x32xf32>
    %175 = arith.mulf %170, %174 : vector<8x32xf32>
    %176 = vector.broadcast %8 : vector<1x32xf32> to vector<8x32xf32>
    %177 = arith.mulf %175, %176 : vector<8x32xf32>
    %178 = vector.broadcast %9 : vector<1x32xf32> to vector<8x32xf32>
    %179 = arith.addf %177, %178 : vector<8x32xf32>
    %cst_71 = arith.constant dense<0.000000e+00> : vector<8xf32>
    %180 = vector.multi_reduction <add>, %179, %cst_71 [1] : vector<8x32xf32> to vector<8xf32>
    %181 = vector.shape_cast %180 : vector<8xf32> to vector<8x1xf32>
    %cst_72 = arith.constant 3.200000e+01 : f32
    %182 = vector.broadcast %cst_72 : f32 to vector<8x1xf32>
    %183 = arith.divf %181, %182 : vector<8x1xf32>
    %184 = vector.broadcast %183 : vector<8x1xf32> to vector<8x32xf32>
    %185 = arith.subf %179, %184 : vector<8x32xf32>
    %186 = arith.mulf %185, %185 : vector<8x32xf32>
    %cst_73 = arith.constant dense<0.000000e+00> : vector<8xf32>
    %187 = vector.multi_reduction <add>, %186, %cst_73 [1] : vector<8x32xf32> to vector<8xf32>
    %188 = vector.shape_cast %187 : vector<8xf32> to vector<8x1xf32>
    %cst_74 = arith.constant 3.200000e+01 : f32
    %189 = vector.broadcast %cst_74 : f32 to vector<8x1xf32>
    %190 = arith.divf %188, %189 : vector<8x1xf32>
    %191 = vector.broadcast %183 : vector<8x1xf32> to vector<8x32xf32>
    %192 = arith.subf %179, %191 : vector<8x32xf32>
    %cst_75 = arith.constant 9.99999974E-6 : f32
    %193 = vector.broadcast %cst_75 : f32 to vector<8x1xf32>
    %194 = arith.addf %190, %193 : vector<8x1xf32>
    %195 = math.rsqrt %194 : vector<8x1xf32>
    %196 = vector.broadcast %195 : vector<8x1xf32> to vector<8x32xf32>
    %197 = arith.mulf %192, %196 : vector<8x32xf32>
    %198 = vector.broadcast %10 : vector<1x32xf32> to vector<8x32xf32>
    %199 = arith.mulf %197, %198 : vector<8x32xf32>
    %200 = vector.broadcast %11 : vector<1x32xf32> to vector<8x32xf32>
    %201 = arith.addf %199, %200 : vector<8x32xf32>
    %cst_76 = arith.constant 5.000000e-01 : f32
    %202 = vector.broadcast %cst_76 : f32 to vector<8x32xf32>
    %203 = arith.mulf %202, %201 : vector<8x32xf32>
    %cst_77 = arith.constant 0.707106769 : f32
    %204 = vector.broadcast %cst_77 : f32 to vector<8x32xf32>
    %205 = arith.mulf %201, %204 : vector<8x32xf32>
    %cst_78 = arith.constant 0.000000e+00 : f32
    %206 = vector.broadcast %cst_78 : f32 to vector<8x32xf32>
    %207 = arith.cmpf oge, %205, %206 : vector<8x32xf32>
    %cst_79 = arith.constant 1.000000e+00 : f32
    %cst_80 = arith.constant -1.000000e+00 : f32
    %208 = vector.broadcast %cst_79 : f32 to vector<8x32xf32>
    %209 = vector.broadcast %cst_80 : f32 to vector<8x32xf32>
    %210 = arith.select %207, %208, %209 : vector<8x32xi1>, vector<8x32xf32>
    %211 = math.absf %205 : vector<8x32xf32>
    %cst_81 = arith.constant 0.327591091 : f32
    %212 = vector.broadcast %cst_81 : f32 to vector<8x32xf32>
    %213 = arith.mulf %212, %211 : vector<8x32xf32>
    %cst_82 = arith.constant 1.000000e+00 : f32
    %214 = vector.broadcast %cst_82 : f32 to vector<8x32xf32>
    %215 = arith.addf %214, %213 : vector<8x32xf32>
    %cst_83 = arith.constant 1.000000e+00 : f32
    %216 = vector.broadcast %cst_83 : f32 to vector<8x32xf32>
    %217 = arith.divf %216, %215 : vector<8x32xf32>
    %cst_84 = arith.constant 1.06140542 : f32
    %218 = vector.broadcast %cst_84 : f32 to vector<8x32xf32>
    %219 = arith.mulf %218, %217 : vector<8x32xf32>
    %cst_85 = arith.constant -1.45315206 : f32
    %220 = vector.broadcast %cst_85 : f32 to vector<8x32xf32>
    %221 = arith.addf %219, %220 : vector<8x32xf32>
    %222 = arith.mulf %221, %217 : vector<8x32xf32>
    %cst_86 = arith.constant 1.42141378 : f32
    %223 = vector.broadcast %cst_86 : f32 to vector<8x32xf32>
    %224 = arith.addf %222, %223 : vector<8x32xf32>
    %225 = arith.mulf %224, %217 : vector<8x32xf32>
    %cst_87 = arith.constant -0.284496725 : f32
    %226 = vector.broadcast %cst_87 : f32 to vector<8x32xf32>
    %227 = arith.addf %225, %226 : vector<8x32xf32>
    %228 = arith.mulf %227, %217 : vector<8x32xf32>
    %cst_88 = arith.constant 0.254829586 : f32
    %229 = vector.broadcast %cst_88 : f32 to vector<8x32xf32>
    %230 = arith.addf %228, %229 : vector<8x32xf32>
    %231 = arith.mulf %230, %217 : vector<8x32xf32>
    %232 = arith.mulf %211, %211 : vector<8x32xf32>
    %cst_89 = arith.constant 0.000000e+00 : f32
    %233 = vector.broadcast %cst_89 : f32 to vector<8x32xf32>
    %234 = arith.subf %233, %232 : vector<8x32xf32>
    %235 = math.exp %234 : vector<8x32xf32>
    %236 = arith.mulf %231, %235 : vector<8x32xf32>
    %cst_90 = arith.constant 1.000000e+00 : f32
    %237 = vector.broadcast %cst_90 : f32 to vector<8x32xf32>
    %238 = arith.subf %237, %236 : vector<8x32xf32>
    %239 = arith.mulf %210, %238 : vector<8x32xf32>
    %cst_91 = arith.constant 1.000000e+00 : f32
    %240 = vector.broadcast %cst_91 : f32 to vector<8x32xf32>
    %241 = arith.addf %240, %239 : vector<8x32xf32>
    %242 = arith.mulf %203, %241 : vector<8x32xf32>
    %243 = arith.truncf %242 : vector<8x32xf32> to vector<8x32xbf16>
    %cst_92 = arith.constant dense<0.000000e+00> : vector<8x32xf32>
    %244 = tpu.matmul %243, %12, %cst_92 {dimension_numbers = #tpu.dot_dimension_numbers<[1], [0], [0], [1], [0, 0, 1, 1], [], []>} : vector<8x32xbf16>, vector<32x32xbf16>, vector<8x32xf32> -> vector<8x32xf32>
    %245 = vector.broadcast %13 : vector<1x32xf32> to vector<8x32xf32>
    %246 = arith.addf %244, %245 : vector<8x32xf32>
    %247 = arith.addf %246, %157 : vector<8x32xf32>
    %248 = arith.truncf %247 : vector<8x32xf32> to vector<8x32xbf16>
    %cst_93 = arith.constant dense<0.000000e+00> : vector<8x96xf32>
    %249 = tpu.matmul %248, %4, %cst_93 {dimension_numbers = #tpu.dot_dimension_numbers<[1], [0], [0], [1], [0, 0, 1, 1], [], []>} : vector<8x32xbf16>, vector<32x96xbf16>, vector<8x96xf32> -> vector<8x96xf32>
    %250 = vector.broadcast %5 : vector<1x96xf32> to vector<8x96xf32>
    %251 = arith.addf %249, %250 : vector<8x96xf32>
    %252 = vector.shape_cast %251 : vector<8x96xf32> to vector<4x2x96xf32>
    %253 = arith.truncf %252 : vector<4x2x96xf32> to vector<4x2x96xbf16>
    %254 = vector.extract_strided_slice %253 {offsets = [0, 0, 0], sizes = [4, 2, 8], strides = [1, 1, 1]} : vector<4x2x96xbf16> to vector<4x2x8xbf16>
    %255 = vector.extract_strided_slice %253 {offsets = [0, 0, 32], sizes = [4, 2, 8], strides = [1, 1, 1]} : vector<4x2x96xbf16> to vector<4x2x8xbf16>
    %256 = vector.extract_strided_slice %253 {offsets = [0, 0, 64], sizes = [4, 2, 8], strides = [1, 1, 1]} : vector<4x2x96xbf16> to vector<4x2x8xbf16>
    "tpu.trace_start"() <{level = 10 : i32, message = "nbd,ncd->nbc"}> : () -> ()
    %cst_94 = arith.constant dense<0.000000e+00> : vector<4x2x2xf32>
    %257 = tpu.matmul %254, %255, %cst_94 {dimension_numbers = #tpu.dot_dimension_numbers<[2], [2], [1], [1], [0, 0, 0, 1, 1, 1], [0], [0]>} : vector<4x2x8xbf16>, vector<4x2x8xbf16>, vector<4x2x2xf32> -> vector<4x2x2xf32>
    "tpu.trace_stop"() : () -> ()
    %cst_95 = arith.constant 0.353553385 : f32
    %258 = vector.broadcast %cst_95 : f32 to vector<4x2x2xf32>
    %259 = arith.mulf %257, %258 : vector<4x2x2xf32>
    %cst_96 = arith.constant dense<0xFF800000> : vector<4x2xf32>
    %260 = vector.multi_reduction <maximumf>, %259, %cst_96 [2] : vector<4x2x2xf32> to vector<4x2xf32>
    %261 = vector.shape_cast %260 : vector<4x2xf32> to vector<4x2x1xf32>
    %262 = vector.broadcast %261 : vector<4x2x1xf32> to vector<4x2x2xf32>
    %263 = arith.subf %259, %262 : vector<4x2x2xf32>
    %264 = math.exp %263 : vector<4x2x2xf32>
    %cst_97 = arith.constant dense<0.000000e+00> : vector<4x2xf32>
    %265 = vector.multi_reduction <add>, %264, %cst_97 [2] : vector<4x2x2xf32> to vector<4x2xf32>
    %266 = vector.shape_cast %265 : vector<4x2xf32> to vector<4x2x1xf32>
    %267 = tpu.reciprocal %266 {approx = true} : vector<4x2x1xf32> -> vector<4x2x1xf32>
    %268 = vector.broadcast %267 : vector<4x2x1xf32> to vector<4x2x2xf32>
    %269 = arith.mulf %264, %268 : vector<4x2x2xf32>
    %270 = arith.truncf %269 : vector<4x2x2xf32> to vector<4x2x2xbf16>
    "tpu.trace_start"() <{level = 10 : i32, message = "nbc,ncd->nbd"}> : () -> ()
    %cst_98 = arith.constant dense<0.000000e+00> : vector<4x2x8xf32>
    %271 = tpu.matmul %270, %256, %cst_98 {dimension_numbers = #tpu.dot_dimension_numbers<[2], [1], [1], [2], [0, 0, 0, 1, 1, 2], [0], [0]>} : vector<4x2x2xbf16>, vector<4x2x8xbf16>, vector<4x2x8xf32> -> vector<4x2x8xf32>
    "tpu.trace_stop"() : () -> ()
    %272 = vector.extract_strided_slice %253 {offsets = [0, 0, 8], sizes = [4, 2, 8], strides = [1, 1, 1]} : vector<4x2x96xbf16> to vector<4x2x8xbf16>
    %273 = vector.extract_strided_slice %253 {offsets = [0, 0, 40], sizes = [4, 2, 8], strides = [1, 1, 1]} : vector<4x2x96xbf16> to vector<4x2x8xbf16>
    %274 = vector.extract_strided_slice %253 {offsets = [0, 0, 72], sizes = [4, 2, 8], strides = [1, 1, 1]} : vector<4x2x96xbf16> to vector<4x2x8xbf16>
    "tpu.trace_start"() <{level = 10 : i32, message = "nbd,ncd->nbc"}> : () -> ()
    %cst_99 = arith.constant dense<0.000000e+00> : vector<4x2x2xf32>
    %275 = tpu.matmul %272, %273, %cst_99 {dimension_numbers = #tpu.dot_dimension_numbers<[2], [2], [1], [1], [0, 0, 0, 1, 1, 1], [0], [0]>} : vector<4x2x8xbf16>, vector<4x2x8xbf16>, vector<4x2x2xf32> -> vector<4x2x2xf32>
    "tpu.trace_stop"() : () -> ()
    %cst_100 = arith.constant 0.353553385 : f32
    %276 = vector.broadcast %cst_100 : f32 to vector<4x2x2xf32>
    %277 = arith.mulf %275, %276 : vector<4x2x2xf32>
    %cst_101 = arith.constant dense<0xFF800000> : vector<4x2xf32>
    %278 = vector.multi_reduction <maximumf>, %277, %cst_101 [2] : vector<4x2x2xf32> to vector<4x2xf32>
    %279 = vector.shape_cast %278 : vector<4x2xf32> to vector<4x2x1xf32>
    %280 = vector.broadcast %279 : vector<4x2x1xf32> to vector<4x2x2xf32>
    %281 = arith.subf %277, %280 : vector<4x2x2xf32>
    %282 = math.exp %281 : vector<4x2x2xf32>
    %cst_102 = arith.constant dense<0.000000e+00> : vector<4x2xf32>
    %283 = vector.multi_reduction <add>, %282, %cst_102 [2] : vector<4x2x2xf32> to vector<4x2xf32>
    %284 = vector.shape_cast %283 : vector<4x2xf32> to vector<4x2x1xf32>
    %285 = tpu.reciprocal %284 {approx = true} : vector<4x2x1xf32> -> vector<4x2x1xf32>
    %286 = vector.broadcast %285 : vector<4x2x1xf32> to vector<4x2x2xf32>
    %287 = arith.mulf %282, %286 : vector<4x2x2xf32>
    %288 = arith.truncf %287 : vector<4x2x2xf32> to vector<4x2x2xbf16>
    "tpu.trace_start"() <{level = 10 : i32, message = "nbc,ncd->nbd"}> : () -> ()
    %cst_103 = arith.constant dense<0.000000e+00> : vector<4x2x8xf32>
    %289 = tpu.matmul %288, %274, %cst_103 {dimension_numbers = #tpu.dot_dimension_numbers<[2], [1], [1], [2], [0, 0, 0, 1, 1, 2], [0], [0]>} : vector<4x2x2xbf16>, vector<4x2x8xbf16>, vector<4x2x8xf32> -> vector<4x2x8xf32>
    "tpu.trace_stop"() : () -> ()
    %290 = vector.extract_strided_slice %253 {offsets = [0, 0, 16], sizes = [4, 2, 8], strides = [1, 1, 1]} : vector<4x2x96xbf16> to vector<4x2x8xbf16>
    %291 = vector.extract_strided_slice %253 {offsets = [0, 0, 48], sizes = [4, 2, 8], strides = [1, 1, 1]} : vector<4x2x96xbf16> to vector<4x2x8xbf16>
    %292 = vector.extract_strided_slice %253 {offsets = [0, 0, 80], sizes = [4, 2, 8], strides = [1, 1, 1]} : vector<4x2x96xbf16> to vector<4x2x8xbf16>
    "tpu.trace_start"() <{level = 10 : i32, message = "nbd,ncd->nbc"}> : () -> ()
    %cst_104 = arith.constant dense<0.000000e+00> : vector<4x2x2xf32>
    %293 = tpu.matmul %290, %291, %cst_104 {dimension_numbers = #tpu.dot_dimension_numbers<[2], [2], [1], [1], [0, 0, 0, 1, 1, 1], [0], [0]>} : vector<4x2x8xbf16>, vector<4x2x8xbf16>, vector<4x2x2xf32> -> vector<4x2x2xf32>
    "tpu.trace_stop"() : () -> ()
    %cst_105 = arith.constant 0.353553385 : f32
    %294 = vector.broadcast %cst_105 : f32 to vector<4x2x2xf32>
    %295 = arith.mulf %293, %294 : vector<4x2x2xf32>
    %cst_106 = arith.constant dense<0xFF800000> : vector<4x2xf32>
    %296 = vector.multi_reduction <maximumf>, %295, %cst_106 [2] : vector<4x2x2xf32> to vector<4x2xf32>
    %297 = vector.shape_cast %296 : vector<4x2xf32> to vector<4x2x1xf32>
    %298 = vector.broadcast %297 : vector<4x2x1xf32> to vector<4x2x2xf32>
    %299 = arith.subf %295, %298 : vector<4x2x2xf32>
    %300 = math.exp %299 : vector<4x2x2xf32>
    %cst_107 = arith.constant dense<0.000000e+00> : vector<4x2xf32>
    %301 = vector.multi_reduction <add>, %300, %cst_107 [2] : vector<4x2x2xf32> to vector<4x2xf32>
    %302 = vector.shape_cast %301 : vector<4x2xf32> to vector<4x2x1xf32>
    %303 = tpu.reciprocal %302 {approx = true} : vector<4x2x1xf32> -> vector<4x2x1xf32>
    %304 = vector.broadcast %303 : vector<4x2x1xf32> to vector<4x2x2xf32>
    %305 = arith.mulf %300, %304 : vector<4x2x2xf32>
    %306 = arith.truncf %305 : vector<4x2x2xf32> to vector<4x2x2xbf16>
    "tpu.trace_start"() <{level = 10 : i32, message = "nbc,ncd->nbd"}> : () -> ()
    %cst_108 = arith.constant dense<0.000000e+00> : vector<4x2x8xf32>
    %307 = tpu.matmul %306, %292, %cst_108 {dimension_numbers = #tpu.dot_dimension_numbers<[2], [1], [1], [2], [0, 0, 0, 1, 1, 2], [0], [0]>} : vector<4x2x2xbf16>, vector<4x2x8xbf16>, vector<4x2x8xf32> -> vector<4x2x8xf32>
    "tpu.trace_stop"() : () -> ()
    %308 = vector.extract_strided_slice %253 {offsets = [0, 0, 24], sizes = [4, 2, 8], strides = [1, 1, 1]} : vector<4x2x96xbf16> to vector<4x2x8xbf16>
    %309 = vector.extract_strided_slice %253 {offsets = [0, 0, 56], sizes = [4, 2, 8], strides = [1, 1, 1]} : vector<4x2x96xbf16> to vector<4x2x8xbf16>
    %310 = vector.extract_strided_slice %253 {offsets = [0, 0, 88], sizes = [4, 2, 8], strides = [1, 1, 1]} : vector<4x2x96xbf16> to vector<4x2x8xbf16>
    "tpu.trace_start"() <{level = 10 : i32, message = "nbd,ncd->nbc"}> : () -> ()
    %cst_109 = arith.constant dense<0.000000e+00> : vector<4x2x2xf32>
    %311 = tpu.matmul %308, %309, %cst_109 {dimension_numbers = #tpu.dot_dimension_numbers<[2], [2], [1], [1], [0, 0, 0, 1, 1, 1], [0], [0]>} : vector<4x2x8xbf16>, vector<4x2x8xbf16>, vector<4x2x2xf32> -> vector<4x2x2xf32>
    "tpu.trace_stop"() : () -> ()
    %cst_110 = arith.constant 0.353553385 : f32
    %312 = vector.broadcast %cst_110 : f32 to vector<4x2x2xf32>
    %313 = arith.mulf %311, %312 : vector<4x2x2xf32>
    %cst_111 = arith.constant dense<0xFF800000> : vector<4x2xf32>
    %314 = vector.multi_reduction <maximumf>, %313, %cst_111 [2] : vector<4x2x2xf32> to vector<4x2xf32>
    %315 = vector.shape_cast %314 : vector<4x2xf32> to vector<4x2x1xf32>
    %316 = vector.broadcast %315 : vector<4x2x1xf32> to vector<4x2x2xf32>
    %317 = arith.subf %313, %316 : vector<4x2x2xf32>
    %318 = math.exp %317 : vector<4x2x2xf32>
    %cst_112 = arith.constant dense<0.000000e+00> : vector<4x2xf32>
    %319 = vector.multi_reduction <add>, %318, %cst_112 [2] : vector<4x2x2xf32> to vector<4x2xf32>
    %320 = vector.shape_cast %319 : vector<4x2xf32> to vector<4x2x1xf32>
    %321 = tpu.reciprocal %320 {approx = true} : vector<4x2x1xf32> -> vector<4x2x1xf32>
    %322 = vector.broadcast %321 : vector<4x2x1xf32> to vector<4x2x2xf32>
    %323 = arith.mulf %318, %322 : vector<4x2x2xf32>
    %324 = arith.truncf %323 : vector<4x2x2xf32> to vector<4x2x2xbf16>
    "tpu.trace_start"() <{level = 10 : i32, message = "nbc,ncd->nbd"}> : () -> ()
    %cst_113 = arith.constant dense<0.000000e+00> : vector<4x2x8xf32>
    %325 = tpu.matmul %324, %310, %cst_113 {dimension_numbers = #tpu.dot_dimension_numbers<[2], [1], [1], [2], [0, 0, 0, 1, 1, 2], [0], [0]>} : vector<4x2x2xbf16>, vector<4x2x8xbf16>, vector<4x2x8xf32> -> vector<4x2x8xf32>
    "tpu.trace_stop"() : () -> ()
    %326 = tpu.concatenate %271, %289, %307, %325 in 2 : vector<4x2x8xf32>, vector<4x2x8xf32>, vector<4x2x8xf32>, vector<4x2x8xf32> -> vector<4x2x32xf32>
    %327 = vector.shape_cast %326 : vector<4x2x32xf32> to vector<8x32xf32>
    %328 = arith.truncf %327 : vector<8x32xf32> to vector<8x32xbf16>
    %cst_114 = arith.constant dense<0.000000e+00> : vector<8x32xf32>
    %329 = tpu.matmul %328, %6, %cst_114 {dimension_numbers = #tpu.dot_dimension_numbers<[1], [0], [0], [1], [0, 0, 1, 1], [], []>} : vector<8x32xbf16>, vector<32x32xbf16>, vector<8x32xf32> -> vector<8x32xf32>
    %330 = vector.broadcast %7 : vector<1x32xf32> to vector<8x32xf32>
    %331 = arith.addf %329, %330 : vector<8x32xf32>
    %332 = arith.addf %247, %331 : vector<8x32xf32>
    %cst_115 = arith.constant dense<0.000000e+00> : vector<8xf32>
    %333 = vector.multi_reduction <add>, %332, %cst_115 [1] : vector<8x32xf32> to vector<8xf32>
    %334 = vector.shape_cast %333 : vector<8xf32> to vector<8x1xf32>
    %cst_116 = arith.constant 3.200000e+01 : f32
    %335 = vector.broadcast %cst_116 : f32 to vector<8x1xf32>
    %336 = arith.divf %334, %335 : vector<8x1xf32>
    %337 = vector.broadcast %336 : vector<8x1xf32> to vector<8x32xf32>
    %338 = arith.subf %332, %337 : vector<8x32xf32>
    %339 = arith.mulf %338, %338 : vector<8x32xf32>
    %cst_117 = arith.constant dense<0.000000e+00> : vector<8xf32>
    %340 = vector.multi_reduction <add>, %339, %cst_117 [1] : vector<8x32xf32> to vector<8xf32>
    %341 = vector.shape_cast %340 : vector<8xf32> to vector<8x1xf32>
    %cst_118 = arith.constant 3.200000e+01 : f32
    %342 = vector.broadcast %cst_118 : f32 to vector<8x1xf32>
    %343 = arith.divf %341, %342 : vector<8x1xf32>
    %344 = vector.broadcast %336 : vector<8x1xf32> to vector<8x32xf32>
    %345 = arith.subf %332, %344 : vector<8x32xf32>
    %cst_119 = arith.constant 9.99999974E-6 : f32
    %346 = vector.broadcast %cst_119 : f32 to vector<8x1xf32>
    %347 = arith.addf %343, %346 : vector<8x1xf32>
    %348 = math.rsqrt %347 : vector<8x1xf32>
    %349 = vector.broadcast %348 : vector<8x1xf32> to vector<8x32xf32>
    %350 = arith.mulf %345, %349 : vector<8x32xf32>
    %351 = vector.broadcast %8 : vector<1x32xf32> to vector<8x32xf32>
    %352 = arith.mulf %350, %351 : vector<8x32xf32>
    %353 = vector.broadcast %9 : vector<1x32xf32> to vector<8x32xf32>
    %354 = arith.addf %352, %353 : vector<8x32xf32>
    %cst_120 = arith.constant dense<0.000000e+00> : vector<8xf32>
    %355 = vector.multi_reduction <add>, %354, %cst_120 [1] : vector<8x32xf32> to vector<8xf32>
    %356 = vector.shape_cast %355 : vector<8xf32> to vector<8x1xf32>
    %cst_121 = arith.constant 3.200000e+01 : f32
    %357 = vector.broadcast %cst_121 : f32 to vector<8x1xf32>
    %358 = arith.divf %356, %357 : vector<8x1xf32>
    %359 = vector.broadcast %358 : vector<8x1xf32> to vector<8x32xf32>
    %360 = arith.subf %354, %359 : vector<8x32xf32>
    %361 = arith.mulf %360, %360 : vector<8x32xf32>
    %cst_122 = arith.constant dense<0.000000e+00> : vector<8xf32>
    %362 = vector.multi_reduction <add>, %361, %cst_122 [1] : vector<8x32xf32> to vector<8xf32>
    %363 = vector.shape_cast %362 : vector<8xf32> to vector<8x1xf32>
    %cst_123 = arith.constant 3.200000e+01 : f32
    %364 = vector.broadcast %cst_123 : f32 to vector<8x1xf32>
    %365 = arith.divf %363, %364 : vector<8x1xf32>
    %366 = vector.broadcast %358 : vector<8x1xf32> to vector<8x32xf32>
    %367 = arith.subf %354, %366 : vector<8x32xf32>
    %cst_124 = arith.constant 9.99999974E-6 : f32
    %368 = vector.broadcast %cst_124 : f32 to vector<8x1xf32>
    %369 = arith.addf %365, %368 : vector<8x1xf32>
    %370 = math.rsqrt %369 : vector<8x1xf32>
    %371 = vector.broadcast %370 : vector<8x1xf32> to vector<8x32xf32>
    %372 = arith.mulf %367, %371 : vector<8x32xf32>
    %373 = vector.broadcast %10 : vector<1x32xf32> to vector<8x32xf32>
    %374 = arith.mulf %372, %373 : vector<8x32xf32>
    %375 = vector.broadcast %11 : vector<1x32xf32> to vector<8x32xf32>
    %376 = arith.addf %374, %375 : vector<8x32xf32>
    %cst_125 = arith.constant 5.000000e-01 : f32
    %377 = vector.broadcast %cst_125 : f32 to vector<8x32xf32>
    %378 = arith.mulf %377, %376 : vector<8x32xf32>
    %cst_126 = arith.constant 0.707106769 : f32
    %379 = vector.broadcast %cst_126 : f32 to vector<8x32xf32>
    %380 = arith.mulf %376, %379 : vector<8x32xf32>
    %cst_127 = arith.constant 0.000000e+00 : f32
    %381 = vector.broadcast %cst_127 : f32 to vector<8x32xf32>
    %382 = arith.cmpf oge, %380, %381 : vector<8x32xf32>
    %cst_128 = arith.constant 1.000000e+00 : f32
    %cst_129 = arith.constant -1.000000e+00 : f32
    %383 = vector.broadcast %cst_128 : f32 to vector<8x32xf32>
    %384 = vector.broadcast %cst_129 : f32 to vector<8x32xf32>
    %385 = arith.select %382, %383, %384 : vector<8x32xi1>, vector<8x32xf32>
    %386 = math.absf %380 : vector<8x32xf32>
    %cst_130 = arith.constant 0.327591091 : f32
    %387 = vector.broadcast %cst_130 : f32 to vector<8x32xf32>
    %388 = arith.mulf %387, %386 : vector<8x32xf32>
    %cst_131 = arith.constant 1.000000e+00 : f32
    %389 = vector.broadcast %cst_131 : f32 to vector<8x32xf32>
    %390 = arith.addf %389, %388 : vector<8x32xf32>
    %cst_132 = arith.constant 1.000000e+00 : f32
    %391 = vector.broadcast %cst_132 : f32 to vector<8x32xf32>
    %392 = arith.divf %391, %390 : vector<8x32xf32>
    %cst_133 = arith.constant 1.06140542 : f32
    %393 = vector.broadcast %cst_133 : f32 to vector<8x32xf32>
    %394 = arith.mulf %393, %392 : vector<8x32xf32>
    %cst_134 = arith.constant -1.45315206 : f32
    %395 = vector.broadcast %cst_134 : f32 to vector<8x32xf32>
    %396 = arith.addf %394, %395 : vector<8x32xf32>
    %397 = arith.mulf %396, %392 : vector<8x32xf32>
    %cst_135 = arith.constant 1.42141378 : f32
    %398 = vector.broadcast %cst_135 : f32 to vector<8x32xf32>
    %399 = arith.addf %397, %398 : vector<8x32xf32>
    %400 = arith.mulf %399, %392 : vector<8x32xf32>
    %cst_136 = arith.constant -0.284496725 : f32
    %401 = vector.broadcast %cst_136 : f32 to vector<8x32xf32>
    %402 = arith.addf %400, %401 : vector<8x32xf32>
    %403 = arith.mulf %402, %392 : vector<8x32xf32>
    %cst_137 = arith.constant 0.254829586 : f32
    %404 = vector.broadcast %cst_137 : f32 to vector<8x32xf32>
    %405 = arith.addf %403, %404 : vector<8x32xf32>
    %406 = arith.mulf %405, %392 : vector<8x32xf32>
    %407 = arith.mulf %386, %386 : vector<8x32xf32>
    %cst_138 = arith.constant 0.000000e+00 : f32
    %408 = vector.broadcast %cst_138 : f32 to vector<8x32xf32>
    %409 = arith.subf %408, %407 : vector<8x32xf32>
    %410 = math.exp %409 : vector<8x32xf32>
    %411 = arith.mulf %406, %410 : vector<8x32xf32>
    %cst_139 = arith.constant 1.000000e+00 : f32
    %412 = vector.broadcast %cst_139 : f32 to vector<8x32xf32>
    %413 = arith.subf %412, %411 : vector<8x32xf32>
    %414 = arith.mulf %385, %413 : vector<8x32xf32>
    %cst_140 = arith.constant 1.000000e+00 : f32
    %415 = vector.broadcast %cst_140 : f32 to vector<8x32xf32>
    %416 = arith.addf %415, %414 : vector<8x32xf32>
    %417 = arith.mulf %378, %416 : vector<8x32xf32>
    %418 = arith.truncf %417 : vector<8x32xf32> to vector<8x32xbf16>
    %cst_141 = arith.constant dense<0.000000e+00> : vector<8x32xf32>
    %419 = tpu.matmul %418, %12, %cst_141 {dimension_numbers = #tpu.dot_dimension_numbers<[1], [0], [0], [1], [0, 0, 1, 1], [], []>} : vector<8x32xbf16>, vector<32x32xbf16>, vector<8x32xf32> -> vector<8x32xf32>
    %420 = vector.broadcast %13 : vector<1x32xf32> to vector<8x32xf32>
    %421 = arith.addf %419, %420 : vector<8x32xf32>
    %422 = arith.addf %421, %332 : vector<8x32xf32>
    %423 = vector.extract_strided_slice %422 {offsets = [0, 0], sizes = [2, 32], strides = [1, 1]} : vector<8x32xf32> to vector<2x32xf32>
    %c0_142 = arith.constant 0 : index
    %c0_143 = arith.constant 0 : index
    %424 = vector.load %arg17[%c0_142, %c0_143] : memref<2x32xf32, #tpu.memory_space<vmem>>, vector<2x32xf32>
    tpu.vector_store %arg17[%c0_142, %c0_143], %423 {strides = array<i32>} : memref<2x32xf32, #tpu.memory_space<vmem>>, vector<2x32xf32>,
    return
  }
}

</mosaic_0001>

<llo_original>
// kernel: tpu_custom_call.1
$region0: #{tpu_custom_call.1}
  #allocation0 [shape = 'u32[]', space=smem, size = 0x4, offset = 0x4, fixed_abs, tag = 'smem constant byte address 0x4 - core index']
  #allocation1 [shape = 'u32[144,128]{1,0:T(1,128)}', space=vmem, size = 0x12000, scoped, tag = 'internal scratch']
  %s0 = inlined_call_operand.vmem [shape: f32[2,3,256], index: 0, kind: input, shape index: {}]
  %s1 = inlined_call_operand.vmem [shape: bf16[256,32], index: 1, kind: input, shape index: {}]
  %s2 = inlined_call_operand.vmem [shape: f32[1,32], index: 2, kind: input, shape index: {}]
  %s3 = inlined_call_operand.vmem [shape: f32[1,32], index: 3, kind: input, shape index: {}]
  %s4 = inlined_call_operand.vmem [shape: f32[1,32], index: 4, kind: input, shape index: {}]
  %s5 = inlined_call_operand.vmem [shape: f32[1,32], index: 5, kind: input, shape index: {}]
  %s6 = inlined_call_operand.vmem [shape: f32[1,32], index: 6, kind: input, shape index: {}]
  %s7 = inlined_call_operand.vmem [shape: bf16[32,96], index: 7, kind: input, shape index: {}]
  %s8 = inlined_call_operand.vmem [shape: f32[1,96], index: 8, kind: input, shape index: {}]
  %s9 = inlined_call_operand.vmem [shape: bf16[32,32], index: 9, kind: input, shape index: {}]
  %s10 = inlined_call_operand.vmem [shape: f32[1,32], index: 10, kind: input, shape index: {}]
  %s11 = inlined_call_operand.vmem [shape: f32[1,32], index: 11, kind: input, shape index: {}]
  %s12 = inlined_call_operand.vmem [shape: f32[1,32], index: 12, kind: input, shape index: {}]
  %s13 = inlined_call_operand.vmem [shape: f32[1,32], index: 13, kind: input, shape index: {}]
  %s14 = inlined_call_operand.vmem [shape: f32[1,32], index: 14, kind: input, shape index: {}]
  %s15 = inlined_call_operand.vmem [shape: bf16[32,32], index: 15, kind: input, shape index: {}]
  %s16 = inlined_call_operand.vmem [shape: f32[1,32], index: 16, kind: input, shape index: {}]
  %s17 = inlined_call_operand.hbm [shape: f32[2,32], index: 17, kind: output, shape index: {}]
  %s18 = sld [smem:[#allocation0]]
  $region78: #{tpu_custom_call.1} parent=0
    _
  %s20 = ssub.s32 1, %s18
  %s21 = scalar_select 0, %s20, %s18
  $region1: #{tpu_custom_call.1} parent=0
    #allocation2 [shape = 'u8[1024]{0}', space=vmem, size = 0x400, scoped, tag = 'output window, operand 0, single buffered']
    #allocation3 [shape = 's32[1]{0}', space=sflag, size = 0x4, scoped, tag = 'scoped memory for tpu_custom_call.1']
    %22 = vsyncpa [#allocation3], 0
    // Predicated region
    $region2: #{tpu_custom_call.1} parent=1 // pred_check
      _
    $region3: #{tpu_custom_call.1} parent=1 // pred_check_branch
      %24 = sbr.rel (0) target = $region5
    $region4: #{tpu_custom_call.1} parent=1 // pred_region
      _
    $region5: #{tpu_custom_call.1} parent=1 // pred_fallthru
      _
    // Predicated region
    $region6: #{tpu_custom_call.1} parent=1 // pred_check
      _
    $region7: #{tpu_custom_call.1} parent=1 // pred_check_branch
      %26 = sbr.rel (0) target = $region9
    $region8: #{tpu_custom_call.1} parent=1 // pred_region
      _
    $region9: #{tpu_custom_call.1} parent=1 // pred_fallthru
      _
    // Predicated region
    $region10: #{tpu_custom_call.1} parent=1 // pred_check
      _
    $region11: #{tpu_custom_call.1} parent=1 // pred_check_branch
      %28 = sbr.rel (0) target = $region13
    $region12: #{tpu_custom_call.1} parent=1 // pred_region
      _
    $region13: #{tpu_custom_call.1} parent=1 // pred_fallthru
      _
    // Predicated region
    $region14: #{tpu_custom_call.1} parent=1 // pred_check
      _
    $region15: #{tpu_custom_call.1} parent=1 // pred_check_branch
      %30 = sbr.rel (0) target = $region17
    $region16: #{tpu_custom_call.1} parent=1 // pred_region
      _
    $region17: #{tpu_custom_call.1} parent=1 // pred_fallthru
      _
    // Predicated region
    $region18: #{tpu_custom_call.1} parent=1 // pred_check
      _
    $region19: #{tpu_custom_call.1} parent=1 // pred_check_branch
      %32 = sbr.rel (0) target = $region21
    $region20: #{tpu_custom_call.1} parent=1 // pred_region
      _
    $region21: #{tpu_custom_call.1} parent=1 // pred_fallthru
      _
    // Predicated region
    $region22: #{tpu_custom_call.1} parent=1 // pred_check
      _
    $region23: #{tpu_custom_call.1} parent=1 // pred_check_branch
      %34 = sbr.rel (0) target = $region25
    $region24: #{tpu_custom_call.1} parent=1 // pred_region
      _
    $region25: #{tpu_custom_call.1} parent=1 // pred_fallthru
      _
    // Predicated region
    $region26: #{tpu_custom_call.1} parent=1 // pred_check
      _
    $region27: #{tpu_custom_call.1} parent=1 // pred_check_branch
      %36 = sbr.rel (0) target = $region29
    $region28: #{tpu_custom_call.1} parent=1 // pred_region
      _
    $region29: #{tpu_custom_call.1} parent=1 // pred_fallthru
      _
    // Predicated region
    $region30: #{tpu_custom_call.1} parent=1 // pred_check
      _
    $region31: #{tpu_custom_call.1} parent=1 // pred_check_branch
      %38 = sbr.rel (0) target = $region33
    $region32: #{tpu_custom_call.1} parent=1 // pred_region
      _
    $region33: #{tpu_custom_call.1} parent=1 // pred_fallthru
      _
    // Predicated region
    $region34: #{tpu_custom_call.1} parent=1 // pred_check
      _
    $region35: #{tpu_custom_call.1} parent=1 // pred_check_branch
      %40 = sbr.rel (0) target = $region37
    $region36: #{tpu_custom_call.1} parent=1 // pred_region
      _
    $region37: #{tpu_custom_call.1} parent=1 // pred_fallthru
      _
    // Predicated region
    $region38: #{tpu_custom_call.1} parent=1 // pred_check
      _
    $region39: #{tpu_custom_call.1} parent=1 // pred_check_branch
      %42 = sbr.rel (0) target = $region41
    $region40: #{tpu_custom_call.1} parent=1 // pred_region
      _
    $region41: #{tpu_custom_call.1} parent=1 // pred_fallthru
      _
    // Predicated region
    $region42: #{tpu_custom_call.1} parent=1 // pred_check
      _
    $region43: #{tpu_custom_call.1} parent=1 // pred_check_branch
      %44 = sbr.rel (0) target = $region45
    $region44: #{tpu_custom_call.1} parent=1 // pred_region
      _
    $region45: #{tpu_custom_call.1} parent=1 // pred_fallthru
      _
    // Predicated region
    $region46: #{tpu_custom_call.1} parent=1 // pred_check
      _
    $region47: #{tpu_custom_call.1} parent=1 // pred_check_branch
      %46 = sbr.rel (0) target = $region49
    $region48: #{tpu_custom_call.1} parent=1 // pred_region
      _
    $region49: #{tpu_custom_call.1} parent=1 // pred_fallthru
      _
    // Predicated region
    $region50: #{tpu_custom_call.1} parent=1 // pred_check
      _
    $region51: #{tpu_custom_call.1} parent=1 // pred_check_branch
      %48 = sbr.rel (0) target = $region53
    $region52: #{tpu_custom_call.1} parent=1 // pred_region
      _
    $region53: #{tpu_custom_call.1} parent=1 // pred_fallthru
      _
    // Predicated region
    $region54: #{tpu_custom_call.1} parent=1 // pred_check
      _
    $region55: #{tpu_custom_call.1} parent=1 // pred_check_branch
      %50 = sbr.rel (0) target = $region57
    $region56: #{tpu_custom_call.1} parent=1 // pred_region
      _
    $region57: #{tpu_custom_call.1} parent=1 // pred_fallthru
      _
    // Predicated region
    $region58: #{tpu_custom_call.1} parent=1 // pred_check
      _
    $region59: #{tpu_custom_call.1} parent=1 // pred_check_branch
      %52 = sbr.rel (0) target = $region61
    $region60: #{tpu_custom_call.1} parent=1 // pred_region
      _
    $region61: #{tpu_custom_call.1} parent=1 // pred_fallthru
      _
    // Predicated region
    $region62: #{tpu_custom_call.1} parent=1 // pred_check
      _
    $region63: #{tpu_custom_call.1} parent=1 // pred_check_branch
      %54 = sbr.rel (0) target = $region65
    $region64: #{tpu_custom_call.1} parent=1 // pred_region
      _
    $region65: #{tpu_custom_call.1} parent=1 // pred_fallthru
      _
    // Predicated region
    $region66: #{tpu_custom_call.1} parent=1 // pred_check
      _
    $region67: #{tpu_custom_call.1} parent=1 // pred_check_branch
      %56 = sbr.rel (0) target = $region69
    $region68: #{tpu_custom_call.1} parent=1 // pred_region
      _
    $region69: #{tpu_custom_call.1} parent=1 // pred_fallthru
      _
    %v58 = vld [vmem:[%s2] sm:$0x1]
    %v59 = vld [vmem:[%s4] sm:$0x1]
    %v60 = vld [vmem:[%s5] sm:$0x1]
    %v61 = vld [vmem:[%s6] sm:$0x1]
    %v62 = vld [vmem:[%s7] sm:$0xf]
    %v63 = vld [vmem:[%s7 + $0x4] sm:$0xf]
    %v64 = vld [vmem:[%s7 + $0x8] sm:$0xf]
    %v65 = vld [vmem:[%s7 + $0xc] sm:$0xf]
    %v66 = vld [vmem:[%s8] sm:$0x1]
    %v67 = vld [vmem:[%s9] sm:$0xf]
    %v68 = vld [vmem:[%s9 + $0x4] sm:$0xf]
    %v69 = vld [vmem:[%s9 + $0x8] sm:$0xf]
    %v70 = vld [vmem:[%s9 + $0xc] sm:$0xf]
    %v71 = vld [vmem:[%s10] sm:$0x1]
    %v72 = vld [vmem:[%s11] sm:$0x1]
    %v73 = vld [vmem:[%s12] sm:$0x1]
    %v74 = vld [vmem:[%s13] sm:$0x1]
    %v75 = vld [vmem:[%s14] sm:$0x1]
    %v76 = vld [vmem:[%s15] sm:$0xf]
    %v77 = vld [vmem:[%s15 + $0x4] sm:$0xf]
    %v78 = vld [vmem:[%s15 + $0x8] sm:$0xf]
    %v79 = vld [vmem:[%s15 + $0xc] sm:$0xf]
    %v80 = vld [vmem:[%s16] sm:$0x1]
    %v81 = vld [vmem:[%s0] sm:$0x77]
    %v82 = vld [vmem:[%s0 + $0x8] sm:$0x77]
    %v86 = vunpack.c.l.s4 1966171168
    %v87 = vunpack.c.0.s8 %v86
    %v88 = vlaneseq
    %v89 = vshrl.u32 %v88, 7
    %v90 = vsub.s32 %v87, %v89
    %v91 = vrot.slane %v81, %v90
    %v92 = vcombine.high %v91, %v91
    %v94 = vunpack.c.l.s4 1966171168
    %v95 = vunpack.c.0.s8 %v94
    %v96 = vlaneseq
    %v97 = vshrl.u32 %v96, 7
    %v98 = vsub.s32 %v95, %v97
    %v99 = vrot.slane %v91, %v98
    %v101 = vunpack.c.l.s4 1966171168
    %v102 = vunpack.c.0.s8 %v101
    %v103 = vlaneseq
    %v104 = vshrl.u32 %v103, 7
    %v105 = vsub.s32 %v102, %v104
    %v106 = vrot.slane %v92, %v105
    %v107 = vcombine.high %v99, %v99
    %v109 = vunpack.c.l.s4 1966171168
    %v110 = vunpack.c.0.s8 %v109
    %v111 = vlaneseq
    %v112 = vshrl.u32 %v111, 7
    %v113 = vsub.s32 %v110, %v112
    %v114 = vrot.slane %v82, %v113
    %v115 = vcombine.high %v114, %v114
    %v117 = vunpack.c.l.s4 1966171168
    %v118 = vunpack.c.0.s8 %v117
    %v119 = vlaneseq
    %v120 = vshrl.u32 %v119, 7
    %v121 = vsub.s32 %v118, %v120
    %v122 = vrot.slane %v114, %v121
    %v124 = vunpack.c.l.s4 1966171168
    %v125 = vunpack.c.0.s8 %v124
    %v126 = vlaneseq
    %v127 = vshrl.u32 %v126, 7
    %v128 = vsub.s32 %v125, %v127
    %v129 = vrot.slane %v115, %v128
    %v130 = vcombine.high %v122, %v122
    %v131 = vcombine.low %v99, %v106
    %v132 = vcombine.low %v107, %v122
    %v133 = vcombine.low %v129, %v130
    %v135 = vunpack.c.l.s4 1966171168
    %v136 = vunpack.c.0.s8 %v135
    %v137 = vlaneseq
    %v138 = vshrl.u32 %v137, 7
    %v139 = vsub.s32 %v136, %v138
    %v140 = vrot.slane %v131, %v139
    %v142 = vunpack.c.l.s4 1966171168
    %v143 = vunpack.c.0.s8 %v142
    %v144 = vlaneseq
    %v145 = vshrl.u32 %v144, 7
    %v146 = vsub.s32 %v143, %v145
    %v147 = vrot.slane %v132, %v146
    %v149 = vunpack.c.l.s4 1966171168
    %v150 = vunpack.c.0.s8 %v149
    %v151 = vlaneseq
    %v152 = vshrl.u32 %v151, 7
    %v153 = vsub.s32 %v150, %v152
    %v154 = vrot.slane %v133, %v153
    %v155 = vcombine.low %v140, %v147
    %v156 = vcombine.high %v140, %v147
    %v157 = vcombine.high %v154, %v154
    %v159 = vunpack.c.l.s4 1966171168
    %v160 = vunpack.c.0.s8 %v159
    %v161 = vlaneseq
    %v162 = vshrl.u32 %v161, 7
    %v163 = vsub.s32 %v160, %v162
    %v164 = vrot.slane %v155, %v163
    %v166 = vunpack.c.l.s4 1966171168
    %v167 = vunpack.c.0.s8 %v166
    %v168 = vlaneseq
    %v169 = vshrl.u32 %v168, 7
    %v170 = vsub.s32 %v167, %v169
    %v171 = vrot.slane %v156, %v170
    %v173 = vunpack.c.l.s4 1966171168
    %v174 = vunpack.c.0.s8 %v173
    %v175 = vlaneseq
    %v176 = vshrl.u32 %v175, 7
    %v177 = vsub.s32 %v174, %v176
    %v178 = vrot.slane %v154, %v177
    %v180 = vunpack.c.l.s4 1966171168
    %v181 = vunpack.c.0.s8 %v180
    %v182 = vlaneseq
    %v183 = vshrl.u32 %v182, 7
    %v184 = vsub.s32 %v181, %v183
    %v185 = vrot.slane %v157, %v184
    %v186 = vcombine.low %v164, %v178
    %v187 = vcombine.low %v171, %v185
    %v190 = vpack.c.bf16 %v186, %v186
    %v191 = vpack.c.bf16 %v187, %v187
    %v192 = vld [vmem:[%s1] sm:$0xf]
    %v193 = vld [vmem:[%s1 + $0x4] sm:$0xf]
    %v194 = vld [vmem:[%s1 + $0x8] sm:$0xf]
    %v195 = vld [vmem:[%s1 + $0xc] sm:$0xf]
    %v196 = vld [vmem:[%s1 + $0x10] sm:$0xf]
    %v197 = vld [vmem:[%s1 + $0x14] sm:$0xf]
    %v198 = vld [vmem:[%s1 + $0x18] sm:$0xf]
    %v199 = vld [vmem:[%s1 + $0x1c] sm:$0xf]
    %v200 = vld [vmem:[%s1 + $0x20] sm:$0xf]
    %v201 = vld [vmem:[%s1 + $0x24] sm:$0xf]
    %v202 = vld [vmem:[%s1 + $0x28] sm:$0xf]
    %v203 = vld [vmem:[%s1 + $0x2c] sm:$0xf]
    %v204 = vld [vmem:[%s1 + $0x30] sm:$0xf]
    %v205 = vld [vmem:[%s1 + $0x34] sm:$0xf]
    %v206 = vld [vmem:[%s1 + $0x38] sm:$0xf]
    %v207 = vld [vmem:[%s1 + $0x3c] sm:$0xf]
    %v208 = vld [vmem:[%s1 + $0x40] sm:$0xf]
    %v209 = vld [vmem:[%s1 + $0x44] sm:$0xf]
    %v210 = vld [vmem:[%s1 + $0x48] sm:$0xf]
    %v211 = vld [vmem:[%s1 + $0x4c] sm:$0xf]
    %v212 = vld [vmem:[%s1 + $0x50] sm:$0xf]
    %v213 = vld [vmem:[%s1 + $0x54] sm:$0xf]
    %v214 = vld [vmem:[%s1 + $0x58] sm:$0xf]
    %v215 = vld [vmem:[%s1 + $0x5c] sm:$0xf]
    %v216 = vld [vmem:[%s1 + $0x60] sm:$0xf]
    %v217 = vld [vmem:[%s1 + $0x64] sm:$0xf]
    %v218 = vld [vmem:[%s1 + $0x68] sm:$0xf]
    %v219 = vld [vmem:[%s1 + $0x6c] sm:$0xf]
    %v220 = vld [vmem:[%s1 + $0x70] sm:$0xf]
    %v221 = vld [vmem:[%s1 + $0x74] sm:$0xf]
    %v222 = vld [vmem:[%s1 + $0x78] sm:$0xf]
    %v223 = vld [vmem:[%s1 + $0x7c] sm:$0xf]
    %v225 = vlaneseq
    %v226 = vshrl.u32 %v225, 7
    %v227 = vsub.s32 0, %v226
    %v228 = vrot.slane %v58, %v227
    %v262 = vunpack.c.l.b16 %v192
    %v263 = vunpack.c.l.b16 %v193
    %v264 = vunpack.c.l.b16 %v194
    %v265 = vunpack.c.l.b16 %v195
    %v266 = vunpack.c.l.b16 %v196
    %v267 = vunpack.c.l.b16 %v197
    %v268 = vunpack.c.l.b16 %v198
    %v269 = vunpack.c.l.b16 %v199
    %v270 = vunpack.c.l.b16 %v200
    %v271 = vunpack.c.l.b16 %v201
    %v272 = vunpack.c.l.b16 %v202
    %v273 = vunpack.c.l.b16 %v203
    %v274 = vunpack.c.l.b16 %v204
    %v275 = vunpack.c.l.b16 %v205
    %v276 = vunpack.c.l.b16 %v206
    %v277 = vunpack.c.l.b16 %v207
    %v278 = vunpack.c.l.b16 %v208
    %v279 = vunpack.c.l.b16 %v209
    %v280 = vunpack.c.l.b16 %v210
    %v281 = vunpack.c.l.b16 %v211
    %v282 = vunpack.c.l.b16 %v212
    %v283 = vunpack.c.l.b16 %v213
    %v284 = vunpack.c.l.b16 %v214
    %v285 = vunpack.c.l.b16 %v215
    %v286 = vunpack.c.l.b16 %v216
    %v287 = vunpack.c.l.b16 %v217
    %v288 = vunpack.c.l.b16 %v218
    %v289 = vunpack.c.l.b16 %v219
    %v290 = vunpack.c.l.b16 %v220
    %v291 = vunpack.c.l.b16 %v221
    %v292 = vunpack.c.l.b16 %v222
    %v293 = vunpack.c.l.b16 %v223
    %v294 = vpack.c.b16 %v263, %v262
    %v295 = vpack.c.b16 %v265, %v264
    %v296 = vpack.c.b16 %v267, %v266
    %v297 = vpack.c.b16 %v269, %v268
    %v298 = vpack.c.b16 %v271, %v270
    %v299 = vpack.c.b16 %v273, %v272
    %v300 = vpack.c.b16 %v275, %v274
    %v301 = vpack.c.b16 %v277, %v276
    %v302 = vpack.c.b16 %v279, %v278
    %v303 = vpack.c.b16 %v281, %v280
    %v304 = vpack.c.b16 %v283, %v282
    %v305 = vpack.c.b16 %v285, %v284
    %v306 = vpack.c.b16 %v287, %v286
    %v307 = vpack.c.b16 %v289, %v288
    %v308 = vpack.c.b16 %v291, %v290
    %v309 = vpack.c.b16 %v293, %v292
    %326 = vmatprep.subr.bf16.mxu0 0
    %327 = vmatpush1.bf16.msra.mxu0 %v294
    %328 = vmatprep.subr.bf16.mxu0 0
    %329 = vmatpush1.bf16.msra.mxu0 %v295
    %330 = vmatprep.subr.bf16.mxu0 0
    %331 = vmatpush1.bf16.msra.mxu0 %v296
    %332 = vmatprep.subr.bf16.mxu0 0
    %333 = vmatpush1.bf16.msra.mxu0 %v297
    %334 = vmatprep.subr.bf16.mxu0 0
    %335 = vmatpush1.bf16.msra.mxu0 %v298
    %336 = vmatprep.subr.bf16.mxu0 0
    %337 = vmatpush1.bf16.msra.mxu0 %v299
    %338 = vmatprep.subr.bf16.mxu0 0
    %339 = vmatpush1.bf16.msra.mxu0 %v300
    %340 = vmatprep.subr.bf16.mxu0 0
    %341 = vmatpush1.bf16.msra.mxu0 %v301
    %342 = vmatprep.subr.bf16.mxu0 0
    %343 = vmatpush1.bf16.msra.mxu0 %v302
    %344 = vmatprep.subr.bf16.mxu0 0
    %345 = vmatpush1.bf16.msra.mxu0 %v303
    %346 = vmatprep.subr.bf16.mxu0 0
    %347 = vmatpush1.bf16.msra.mxu0 %v304
    %348 = vmatprep.subr.bf16.mxu0 0
    %349 = vmatpush1.bf16.msra.mxu0 %v305
    %350 = vmatprep.subr.bf16.mxu0 0
    %351 = vmatpush1.bf16.msra.mxu0 %v306
    %352 = vmatprep.subr.bf16.mxu0 0
    %353 = vmatpush1.bf16.msra.mxu0 %v307
    %354 = vmatprep.subr.bf16.mxu0 0
    %355 = vmatpush1.bf16.msra.mxu0 %v308
    %356 = vmatprep.subr.bf16.mxu0 0
    %357 = vmatpush1.bf16.msra.mxu0 %v309
    %358 = vmatprep.mubr.bf16.mxu0 %v191
    %359 = vmatmul.mubr.bf16.gmra.mrb[0].mxu0 %v190
    %v360 = vpop.f32.mrb[0].mxu0
    %v361 = vadd.f32 %v228, %v360
    %v362 = vpop.f32.mrb[0].mxu0
    %v363 = vpop.f32.mrb[0].mxu0
    %v364 = vpop.f32.mrb[0].mxu0
    %365 = vdwg.mxu0
    %v367 = vlaneseq
    %v368 = vshrl.u32 %v367, 7
    %v369 = vsub.s32 0, %v368
    %v370 = vrot.slane %v59, %v369
    %v372 = vadd.f32 %v361, %v370
    %vm373 = vcmask 259072
    %v374 = vsel %vm373, %v372, 0.0
    %375 = vadd.xlane.f32.xlu0 %v374
    %v376 = vpop.xlane.xlu0 %375
    %v377 = vrcp.pop 32.0
    %v378 = vmul.f32 %v376, %v377
    %v379 = vsub.f32 %v372, %v378
    %v380 = vmul.f32 %v379, %v379
    %v381 = vsel %vm373, %v380, 0.0
    %382 = vadd.xlane.f32.xlu0 %v381
    %v383 = vpop.xlane.xlu0 %382
    %v384 = vmul.f32 %v383, %v377
    %v385 = vadd.f32 %v384, 1e-05
    %v386 = vrsqrt.pop %v385
    %v387 = vmul.f32 %v379, %v386
    %v389 = vlaneseq
    %v390 = vshrl.u32 %v389, 7
    %v391 = vsub.s32 0, %v390
    %v392 = vrot.slane %v60, %v391
    %v394 = vmul.f32 %v387, %v392
    %v396 = vlaneseq
    %v397 = vshrl.u32 %v396, 7
    %v398 = vsub.s32 0, %v397
    %v399 = vrot.slane %v61, %v398
    %v401 = vadd.f32 %v394, %v399
    %v402 = vld [vmem:[%s3] sm:$0x1]
    %v403 = vadd.f32 %v402, %v59
    %vm404 = vcmask 253952
    %v405 = vsel %vm404, %v403, 0.0
    %406 = vadd.xlane.f32.xlu0 %v405
    %v407 = vpop.xlane.xlu0 %406
    %v408 = vmul.f32 %v407, %v377
    %v409 = vsub.f32 %v403, %v408
    %v410 = vmul.f32 %v409, %v409
    %v411 = vsel %vm404, %v410, 0.0
    %412 = vadd.xlane.f32.xlu0 %v411
    %v413 = vpop.xlane.xlu0 %412
    %v414 = vmul.f32 %v413, %v377
    %v415 = vadd.f32 %v414, 1e-05
    %v416 = vrsqrt.pop %v415
    %v417 = vmul.f32 %v409, %v416
    %v418 = vmul.f32 %v417, %v60
    %v419 = vadd.f32 %v418, %v61
    %v421 = vcombine.high %v401, %v401
    %v423 = vunpack.c.l.s4 1966171168
    %v424 = vunpack.c.0.s8 %v423
    %v425 = vlaneseq
    %v426 = vshrl.u32 %v425, 7
    %v427 = vsub.s32 %v424, %v426
    %v428 = vrot.slane %v401, %v427
    %v430 = vunpack.c.l.s4 1966171168
    %v431 = vunpack.c.0.s8 %v430
    %v432 = vlaneseq
    %v433 = vshrl.u32 %v432, 7
    %v434 = vsub.s32 %v431, %v433
    %v435 = vrot.slane %v421, %v434
    %v436 = vcombine.high %v428, %v428
    %v437 = vcombine.high %v435, %v435
    %v439 = vunpack.c.l.s4 1966171168
    %v440 = vunpack.c.0.s8 %v439
    %v441 = vlaneseq
    %v442 = vshrl.u32 %v441, 7
    %v443 = vsub.s32 %v440, %v442
    %v444 = vrot.slane %v428, %v443
    %v446 = vunpack.c.l.s4 1966171168
    %v447 = vunpack.c.0.s8 %v446
    %v448 = vlaneseq
    %v449 = vshrl.u32 %v448, 7
    %v450 = vsub.s32 %v447, %v449
    %v451 = vrot.slane %v435, %v450
    %v453 = vunpack.c.l.s4 1966171168
    %v454 = vunpack.c.0.s8 %v453
    %v455 = vlaneseq
    %v456 = vshrl.u32 %v455, 7
    %v457 = vsub.s32 %v454, %v456
    %v458 = vrot.slane %v436, %v457
    %v460 = vunpack.c.l.s4 1966171168
    %v461 = vunpack.c.0.s8 %v460
    %v462 = vlaneseq
    %v463 = vshrl.u32 %v462, 7
    %v464 = vsub.s32 %v461, %v463
    %v465 = vrot.slane %v437, %v464
    %v466 = vcombine.high %v444, %v444
    %v467 = vcombine.high %v458, %v458
    %v469 = vlaneseq
    %v470 = vshrl.u32 %v469, 7
    %v471 = vsub.s32 0, %v470
    %v472 = vrot.slane %v419, %v471
    %v474 = vcombine.low %v444, %v467
    %v475 = vcombine.low %v458, %v451
    %v476 = vcombine.low %v466, %v465
    %v478 = vunpack.c.l.s4 1966171168
    %v479 = vunpack.c.0.s8 %v478
    %v480 = vlaneseq
    %v481 = vshrl.u32 %v480, 7
    %v482 = vsub.s32 %v479, %v481
    %v483 = vrot.slane %v474, %v482
    %v485 = vunpack.c.l.s4 1966171168
    %v486 = vunpack.c.0.s8 %v485
    %v487 = vlaneseq
    %v488 = vshrl.u32 %v487, 7
    %v489 = vsub.s32 %v486, %v488
    %v490 = vrot.slane %v475, %v489
    %v492 = vunpack.c.l.s4 1966171168
    %v493 = vunpack.c.0.s8 %v492
    %v494 = vlaneseq
    %v495 = vshrl.u32 %v494, 7
    %v496 = vsub.s32 %v493, %v495
    %v497 = vrot.slane %v476, %v496
    %v498 = vcombine.low %v483, %v490
    %v500 = vunpack.c.l.s4 1966171168
    %v501 = vunpack.c.0.s8 %v500
    %v502 = vlaneseq
    %v503 = vshrl.u32 %v502, 7
    %v504 = vsub.s32 %v501, %v503
    %v505 = vrot.slane %v498, %v504
    %v507 = vunpack.c.l.s4 1966171168
    %v508 = vunpack.c.0.s8 %v507
    %v509 = vlaneseq
    %v510 = vshrl.u32 %v509, 7
    %v511 = vsub.s32 %v508, %v510
    %v512 = vrot.slane %v497, %v511
    %v513 = vcombine.low %v505, %v512
    %vm515 = vcmask 1045504
    %v516 = vsel %vm515, %v513, %v472
    %v517 = vpack.c.bf16 %v516, %v516
    %v519 = vlaneseq
    %v520 = vshrl.u32 %v519, 7
    %v521 = vsub.s32 0, %v520
    %v522 = vrot.slane %v66, %v521
    %v528 = vunpack.c.l.b16 %v62
    %v529 = vunpack.c.l.b16 %v63
    %v530 = vunpack.c.l.b16 %v64
    %v531 = vunpack.c.l.b16 %v65
    %v532 = vpack.c.b16 %v529, %v528
    %v533 = vpack.c.b16 %v531, %v530
    %vm536 = vcmask 261120
    %v538 = vsel %vm536, %v517, 0
    %540 = vmatprep.subr.bf16.mxu0 0
    %541 = vmatpush1.bf16.msra.mxu0 %v532
    %542 = vmatprep.subr.bf16.mxu0 0
    %543 = vmatpush1.bf16.msra.mxu0 %v533
    %544 = vmatprep.subr.bf16.mxu0 0
    %545 = vmatpush1.bf16.msra.mxu0 0
    %546 = vmatprep.subr.bf16.mxu0 0
    %547 = vmatpush1.bf16.msra.mxu0 0
    %548 = vmatprep.subr.bf16.mxu0 0
    %549 = vmatpush1.bf16.msra.mxu0 0
    %550 = vmatprep.subr.bf16.mxu0 0
    %551 = vmatpush1.bf16.msra.mxu0 0
    %552 = vmatprep.subr.bf16.mxu0 0
    %553 = vmatpush1.bf16.msra.mxu0 0
    %554 = vmatprep.subr.bf16.mxu0 0
    %555 = vmatpush1.bf16.msra.mxu0 0
    %556 = vmatprep.subr.bf16.mxu0 0
    %557 = vmatpush1.bf16.msra.mxu0 0
    %558 = vmatprep.subr.bf16.mxu0 0
    %559 = vmatpush1.bf16.msra.mxu0 0
    %560 = vmatprep.subr.bf16.mxu0 0
    %561 = vmatpush1.bf16.msra.mxu0 0
    %562 = vmatprep.subr.bf16.mxu0 0
    %563 = vmatpush1.bf16.msra.mxu0 0
    %564 = vmatprep.subr.bf16.mxu0 0
    %565 = vmatpush1.bf16.msra.mxu0 0
    %566 = vmatprep.subr.bf16.mxu0 0
    %567 = vmatpush1.bf16.msra.mxu0 0
    %568 = vmatprep.subr.bf16.mxu0 0
    %569 = vmatpush1.bf16.msra.mxu0 0
    %570 = vmatprep.subr.bf16.mxu0 0
    %571 = vmatpush1.bf16.msra.mxu0 0
    %572 = vmatprep.mubr.bf16.mxu0 0
    %573 = vmatmul.mubr.bf16.gmra.mrb[0].mxu0 %v538
    %v574 = vpop.f32.mrb[0].mxu0
    %v575 = vadd.f32 %v522, %v574
    %v576 = vpop.f32.mrb[0].mxu0
    %v577 = vpop.f32.mrb[0].mxu0
    %v578 = vpop.f32.mrb[0].mxu0
    %579 = vdwg.mxu0
    %v581 = vcombine.high %v575, %v575
    %v583 = vunpack.c.l.s4 1983009808
    %v584 = vunpack.c.0.s8 %v583
    %v585 = vlaneseq
    %v586 = vshrl.u32 %v585, 7
    %v587 = vsub.s32 %v584, %v586
    %v588 = vrot.slane %v575, %v587
    %v590 = vunpack.c.l.s4 1983009808
    %v591 = vunpack.c.0.s8 %v590
    %v592 = vlaneseq
    %v593 = vshrl.u32 %v592, 7
    %v594 = vsub.s32 %v591, %v593
    %v595 = vrot.slane %v581, %v594
    %v596 = vcombine.high %v588, %v588
    %v597 = vcombine.high %v595, %v595
    %v602 = vpack.c.bf16 %v588, %v588
    %v603 = vpack.c.bf16 %v596, %v596
    %v604 = vpack.c.bf16 %v595, %v595
    %v605 = vpack.c.bf16 %v597, %v597
    %607 = vrot.lane.b32.xlu0 %v602, 96
    %v608 = vpop.permute.xlu0 %607
    %vm609 = vcmask 64512
    %v611 = vsel %vm609, %v602, 0
    %v614 = vsel %vm609, %v608, 0
    %616 = vmatprep.subr.bf16.mxu0 0
    %617 = vmatpush1.bf16.xpose.msra.mxu0 %v614
    %618 = vmatprep.subr.bf16.mxu0 0
    %619 = vmatpush1.bf16.xpose.msra.mxu0 0
    %620 = vmatprep.subr.bf16.mxu0 0
    %621 = vmatpush1.bf16.xpose.msra.mxu0 0
    %622 = vmatprep.subr.bf16.mxu0 0
    %623 = vmatpush1.bf16.xpose.msra.mxu0 0
    %624 = vmatprep.subr.bf16.mxu0 0
    %625 = vmatpush1.bf16.xpose.msra.mxu0 0
    %626 = vmatprep.subr.bf16.mxu0 0
    %627 = vmatpush1.bf16.xpose.msra.mxu0 0
    %628 = vmatprep.subr.bf16.mxu0 0
    %629 = vmatpush1.bf16.xpose.msra.mxu0 0
    %630 = vmatprep.subr.bf16.mxu0 0
    %631 = vmatpush1.bf16.xpose.msra.mxu0 0
    %632 = vmatprep.subr.bf16.mxu0 0
    %633 = vmatpush1.bf16.xpose.msra.mxu0 0
    %634 = vmatprep.subr.bf16.mxu0 0
    %635 = vmatpush1.bf16.xpose.msra.mxu0 0
    %636 = vmatprep.subr.bf16.mxu0 0
    %637 = vmatpush1.bf16.xpose.msra.mxu0 0
    %638 = vmatprep.subr.bf16.mxu0 0
    %639 = vmatpush1.bf16.xpose.msra.mxu0 0
    %640 = vmatprep.subr.bf16.mxu0 0
    %641 = vmatpush1.bf16.xpose.msra.mxu0 0
    %642 = vmatprep.subr.bf16.mxu0 0
    %643 = vmatpush1.bf16.xpose.msra.mxu0 0
    %644 = vmatprep.subr.bf16.mxu0 0
    %645 = vmatpush1.bf16.xpose.msra.mxu0 0
    %646 = vmatprep.subr.bf16.mxu0 0
    %647 = vmatpush1.bf16.xpose.msra.mxu0 0
    %648 = vmatprep.mubr.bf16.mxu0 0
    %649 = vmatmul.mubr.bf16.gmra.mrb[0].mxu0 %v611
    %v650 = vpop.f32.mrb[0].mxu0
    %v651 = vadd.f32 0.0, %v650
    %v652 = vpop.f32.mrb[0].mxu0
    %v653 = vpop.f32.mrb[0].mxu0
    %v654 = vpop.f32.mrb[0].mxu0
    %655 = vdwg.mxu0
    %657 = vrot.lane.b32.xlu0 %v603, 96
    %v658 = vpop.permute.xlu0 %657
    %v660 = vsel %vm609, %v603, 0
    %v663 = vsel %vm609, %v658, 0
    %665 = vmatprep.subr.bf16.mxu0 0
    %666 = vmatpush1.bf16.xpose.msra.mxu0 %v663
    %667 = vmatprep.subr.bf16.mxu0 0
    %668 = vmatpush1.bf16.xpose.msra.mxu0 0
    %669 = vmatprep.subr.bf16.mxu0 0
    %670 = vmatpush1.bf16.xpose.msra.mxu0 0
    %671 = vmatprep.subr.bf16.mxu0 0
    %672 = vmatpush1.bf16.xpose.msra.mxu0 0
    %673 = vmatprep.subr.bf16.mxu0 0
    %674 = vmatpush1.bf16.xpose.msra.mxu0 0
    %675 = vmatprep.subr.bf16.mxu0 0
    %676 = vmatpush1.bf16.xpose.msra.mxu0 0
    %677 = vmatprep.subr.bf16.mxu0 0
    %678 = vmatpush1.bf16.xpose.msra.mxu0 0
    %679 = vmatprep.subr.bf16.mxu0 0
    %680 = vmatpush1.bf16.xpose.msra.mxu0 0
    %681 = vmatprep.subr.bf16.mxu0 0
    %682 = vmatpush1.bf16.xpose.msra.mxu0 0
    %683 = vmatprep.subr.bf16.mxu0 0
    %684 = vmatpush1.bf16.xpose.msra.mxu0 0
    %685 = vmatprep.subr.bf16.mxu0 0
    %686 = vmatpush1.bf16.xpose.msra.mxu0 0
    %687 = vmatprep.subr.bf16.mxu0 0
    %688 = vmatpush1.bf16.xpose.msra.mxu0 0
    %689 = vmatprep.subr.bf16.mxu0 0
    %690 = vmatpush1.bf16.xpose.msra.mxu0 0
    %691 = vmatprep.subr.bf16.mxu0 0
    %692 = vmatpush1.bf16.xpose.msra.mxu0 0
    %693 = vmatprep.subr.bf16.mxu0 0
    %694 = vmatpush1.bf16.xpose.msra.mxu0 0
    %695 = vmatprep.subr.bf16.mxu0 0
    %696 = vmatpush1.bf16.xpose.msra.mxu0 0
    %697 = vmatprep.mubr.bf16.mxu0 0
    %698 = vmatmul.mubr.bf16.gmra.mrb[0].mxu0 %v660
    %v699 = vpop.f32.mrb[0].mxu0
    %v700 = vadd.f32 0.0, %v699
    %v701 = vpop.f32.mrb[0].mxu0
    %v702 = vpop.f32.mrb[0].mxu0
    %v703 = vpop.f32.mrb[0].mxu0
    %704 = vdwg.mxu0
    %706 = vrot.lane.b32.xlu0 %v604, 96
    %v707 = vpop.permute.xlu0 %706
    %v709 = vsel %vm609, %v604, 0
    %v712 = vsel %vm609, %v707, 0
    %714 = vmatprep.subr.bf16.mxu0 0
    %715 = vmatpush1.bf16.xpose.msra.mxu0 %v712
    %716 = vmatprep.subr.bf16.mxu0 0
    %717 = vmatpush1.bf16.xpose.msra.mxu0 0
    %718 = vmatprep.subr.bf16.mxu0 0
    %719 = vmatpush1.bf16.xpose.msra.mxu0 0
    %720 = vmatprep.subr.bf16.mxu0 0
    %721 = vmatpush1.bf16.xpose.msra.mxu0 0
    %722 = vmatprep.subr.bf16.mxu0 0
    %723 = vmatpush1.bf16.xpose.msra.mxu0 0
    %724 = vmatprep.subr.bf16.mxu0 0
    %725 = vmatpush1.bf16.xpose.msra.mxu0 0
    %726 = vmatprep.subr.bf16.mxu0 0
    %727 = vmatpush1.bf16.xpose.msra.mxu0 0
    %728 = vmatprep.subr.bf16.mxu0 0
    %729 = vmatpush1.bf16.xpose.msra.mxu0 0
    %730 = vmatprep.subr.bf16.mxu0 0
    %731 = vmatpush1.bf16.xpose.msra.mxu0 0
    %732 = vmatprep.subr.bf16.mxu0 0
    %733 = vmatpush1.bf16.xpose.msra.mxu0 0
    %734 = vmatprep.subr.bf16.mxu0 0
    %735 = vmatpush1.bf16.xpose.msra.mxu0 0
    %736 = vmatprep.subr.bf16.mxu0 0
    %737 = vmatpush1.bf16.xpose.msra.mxu0 0
    %738 = vmatprep.subr.bf16.mxu0 0
    %739 = vmatpush1.bf16.xpose.msra.mxu0 0
    %740 = vmatprep.subr.bf16.mxu0 0
    %741 = vmatpush1.bf16.xpose.msra.mxu0 0
    %742 = vmatprep.subr.bf16.mxu0 0
    %743 = vmatpush1.bf16.xpose.msra.mxu0 0
    %744 = vmatprep.subr.bf16.mxu0 0
    %745 = vmatpush1.bf16.xpose.msra.mxu0 0
    %746 = vmatprep.mubr.bf16.mxu0 0
    %747 = vmatmul.mubr.bf16.gmra.mrb[0].mxu0 %v709
    %v748 = vpop.f32.mrb[0].mxu0
    %v749 = vadd.f32 0.0, %v748
    %v750 = vpop.f32.mrb[0].mxu0
    %v751 = vpop.f32.mrb[0].mxu0
    %v752 = vpop.f32.mrb[0].mxu0
    %753 = vdwg.mxu0
    %755 = vrot.lane.b32.xlu0 %v605, 96
    %v756 = vpop.permute.xlu0 %755
    %v758 = vsel %vm609, %v605, 0
    %v761 = vsel %vm609, %v756, 0
    %763 = vmatprep.subr.bf16.mxu0 0
    %764 = vmatpush1.bf16.xpose.msra.mxu0 %v761
    %765 = vmatprep.subr.bf16.mxu0 0
    %766 = vmatpush1.bf16.xpose.msra.mxu0 0
    %767 = vmatprep.subr.bf16.mxu0 0
    %768 = vmatpush1.bf16.xpose.msra.mxu0 0
    %769 = vmatprep.subr.bf16.mxu0 0
    %770 = vmatpush1.bf16.xpose.msra.mxu0 0
    %771 = vmatprep.subr.bf16.mxu0 0
    %772 = vmatpush1.bf16.xpose.msra.mxu0 0
    %773 = vmatprep.subr.bf16.mxu0 0
    %774 = vmatpush1.bf16.xpose.msra.mxu0 0
    %775 = vmatprep.subr.bf16.mxu0 0
    %776 = vmatpush1.bf16.xpose.msra.mxu0 0
    %777 = vmatprep.subr.bf16.mxu0 0
    %778 = vmatpush1.bf16.xpose.msra.mxu0 0
    %779 = vmatprep.subr.bf16.mxu0 0
    %780 = vmatpush1.bf16.xpose.msra.mxu0 0
    %781 = vmatprep.subr.bf16.mxu0 0
    %782 = vmatpush1.bf16.xpose.msra.mxu0 0
    %783 = vmatprep.subr.bf16.mxu0 0
    %784 = vmatpush1.bf16.xpose.msra.mxu0 0
    %785 = vmatprep.subr.bf16.mxu0 0
    %786 = vmatpush1.bf16.xpose.msra.mxu0 0
    %787 = vmatprep.subr.bf16.mxu0 0
    %788 = vmatpush1.bf16.xpose.msra.mxu0 0
    %789 = vmatprep.subr.bf16.mxu0 0
    %790 = vmatpush1.bf16.xpose.msra.mxu0 0
    %791 = vmatprep.subr.bf16.mxu0 0
    %792 = vmatpush1.bf16.xpose.msra.mxu0 0
    %793 = vmatprep.subr.bf16.mxu0 0
    %794 = vmatpush1.bf16.xpose.msra.mxu0 0
    %795 = vmatprep.mubr.bf16.mxu0 0
    %796 = vmatmul.mubr.bf16.gmra.mrb[0].mxu0 %v758
    %v797 = vpop.f32.mrb[0].mxu0
    %v798 = vadd.f32 0.0, %v797
    %v799 = vpop.f32.mrb[0].mxu0
    %v800 = vpop.f32.mrb[0].mxu0
    %v801 = vpop.f32.mrb[0].mxu0
    %802 = vdwg.mxu0
    %v803 = vmul.f32 %v651, 0.35355338
    %v804 = vmul.f32 %v700, 0.35355338
    %v805 = vmul.f32 %v749, 0.35355338
    %v806 = vmul.f32 %v798, 0.35355338
    %vm807 = vcmask 9216
    %v808 = vsel %vm807, %v803, -inf
    %809 = vmax.xlane.f32.xlu0 %v808
    %v810 = vpop.xlane.xlu0 %809
    %v811 = vsel %vm807, %v804, -inf
    %812 = vmax.xlane.f32.xlu0 %v811
    %v813 = vpop.xlane.xlu0 %812
    %v814 = vsel %vm807, %v805, -inf
    %815 = vmax.xlane.f32.xlu0 %v814
    %v816 = vpop.xlane.xlu0 %815
    %v817 = vsel %vm807, %v806, -inf
    %818 = vmax.xlane.f32.xlu0 %v817
    %v819 = vpop.xlane.xlu0 %818
    %v820 = vsub.f32 %v803, %v810
    %v821 = vsub.f32 %v804, %v813
    %v822 = vsub.f32 %v805, %v816
    %v823 = vsub.f32 %v806, %v819
    %v824 = vmul.f32 %v820, 1.442695
    %v825 = vpow.pop %v824
    %v826 = vmul.f32 %v821, 1.442695
    %v827 = vpow.pop %v826
    %v828 = vmul.f32 %v822, 1.442695
    %v829 = vpow.pop %v828
    %v830 = vmul.f32 %v823, 1.442695
    %v831 = vpow.pop %v830
    %v832 = vsel %vm807, %v825, 0.0
    %833 = vadd.xlane.f32.xlu0 %v832
    %v834 = vpop.xlane.xlu0 %833
    %v835 = vsel %vm807, %v827, 0.0
    %836 = vadd.xlane.f32.xlu0 %v835
    %v837 = vpop.xlane.xlu0 %836
    %v838 = vsel %vm807, %v829, 0.0
    %839 = vadd.xlane.f32.xlu0 %v838
    %v840 = vpop.xlane.xlu0 %839
    %v841 = vsel %vm807, %v831, 0.0
    %842 = vadd.xlane.f32.xlu0 %v841
    %v843 = vpop.xlane.xlu0 %842
    %v844 = vrcp.pop %v834
    %v845 = vrcp.pop %v837
    %v846 = vrcp.pop %v840
    %v847 = vrcp.pop %v843
    %v848 = vmul.f32 %v825, %v844
    %v849 = vmul.f32 %v827, %v845
    %v850 = vmul.f32 %v829, %v846
    %v851 = vmul.f32 %v831, %v847
    %v852 = vpack.c.bf16 %v848, %v848
    %v853 = vpack.c.bf16 %v849, %v849
    %v854 = vpack.c.bf16 %v850, %v850
    %v855 = vpack.c.bf16 %v851, %v851
    %856 = vrot.lane.b32.xlu0 %v602, 64
    %v857 = vpop.permute.xlu0 %856
    %vm858 = vcmask 15360
    %v860 = vsel %vm858, %v852, 0
    %vm862 = vcmask 1040384
    %v864 = vsel %vm862, %v857, 0
    %866 = vmatprep.subr.bf16.mxu0 0
    %867 = vmatpush1.bf16.msra.mxu0 %v864
    %868 = vmatprep.subr.bf16.mxu0 0
    %869 = vmatpush1.bf16.msra.mxu0 0
    %870 = vmatprep.subr.bf16.mxu0 0
    %871 = vmatpush1.bf16.msra.mxu0 0
    %872 = vmatprep.subr.bf16.mxu0 0
    %873 = vmatpush1.bf16.msra.mxu0 0
    %874 = vmatprep.subr.bf16.mxu0 0
    %875 = vmatpush1.bf16.msra.mxu0 0
    %876 = vmatprep.subr.bf16.mxu0 0
    %877 = vmatpush1.bf16.msra.mxu0 0
    %878 = vmatprep.subr.bf16.mxu0 0
    %879 = vmatpush1.bf16.msra.mxu0 0
    %880 = vmatprep.subr.bf16.mxu0 0
    %881 = vmatpush1.bf16.msra.mxu0 0
    %882 = vmatprep.subr.bf16.mxu0 0
    %883 = vmatpush1.bf16.msra.mxu0 0
    %884 = vmatprep.subr.bf16.mxu0 0
    %885 = vmatpush1.bf16.msra.mxu0 0
    %886 = vmatprep.subr.bf16.mxu0 0
    %887 = vmatpush1.bf16.msra.mxu0 0
    %888 = vmatprep.subr.bf16.mxu0 0
    %889 = vmatpush1.bf16.msra.mxu0 0
    %890 = vmatprep.subr.bf16.mxu0 0
    %891 = vmatpush1.bf16.msra.mxu0 0
    %892 = vmatprep.subr.bf16.mxu0 0
    %893 = vmatpush1.bf16.msra.mxu0 0
    %894 = vmatprep.subr.bf16.mxu0 0
    %895 = vmatpush1.bf16.msra.mxu0 0
    %896 = vmatprep.subr.bf16.mxu0 0
    %897 = vmatpush1.bf16.msra.mxu0 0
    %898 = vmatprep.mubr.bf16.mxu0 0
    %899 = vmatmul.mubr.bf16.gmra.mrb[0].mxu0 %v860
    %v900 = vpop.f32.mrb[0].mxu0
    %v901 = vadd.f32 0.0, %v900
    %v902 = vpop.f32.mrb[0].mxu0
    %v903 = vpop.f32.mrb[0].mxu0
    %v904 = vpop.f32.mrb[0].mxu0
    %905 = vdwg.mxu0
    %906 = vrot.lane.b32.xlu0 %v603, 64
    %v907 = vpop.permute.xlu0 %906
    %v909 = vsel %vm858, %v853, 0
    %v912 = vsel %vm862, %v907, 0
    %914 = vmatprep.subr.bf16.mxu0 0
    %915 = vmatpush1.bf16.msra.mxu0 %v912
    %916 = vmatprep.subr.bf16.mxu0 0
    %917 = vmatpush1.bf16.msra.mxu0 0
    %918 = vmatprep.subr.bf16.mxu0 0
    %919 = vmatpush1.bf16.msra.mxu0 0
    %920 = vmatprep.subr.bf16.mxu0 0
    %921 = vmatpush1.bf16.msra.mxu0 0
    %922 = vmatprep.subr.bf16.mxu0 0
    %923 = vmatpush1.bf16.msra.mxu0 0
    %924 = vmatprep.subr.bf16.mxu0 0
    %925 = vmatpush1.bf16.msra.mxu0 0
    %926 = vmatprep.subr.bf16.mxu0 0
    %927 = vmatpush1.bf16.msra.mxu0 0
    %928 = vmatprep.subr.bf16.mxu0 0
    %929 = vmatpush1.bf16.msra.mxu0 0
    %930 = vmatprep.subr.bf16.mxu0 0
    %931 = vmatpush1.bf16.msra.mxu0 0
    %932 = vmatprep.subr.bf16.mxu0 0
    %933 = vmatpush1.bf16.msra.mxu0 0
    %934 = vmatprep.subr.bf16.mxu0 0
    %935 = vmatpush1.bf16.msra.mxu0 0
    %936 = vmatprep.subr.bf16.mxu0 0
    %937 = vmatpush1.bf16.msra.mxu0 0
    %938 = vmatprep.subr.bf16.mxu0 0
    %939 = vmatpush1.bf16.msra.mxu0 0
    %940 = vmatprep.subr.bf16.mxu0 0
    %941 = vmatpush1.bf16.msra.mxu0 0
    %942 = vmatprep.subr.bf16.mxu0 0
    %943 = vmatpush1.bf16.msra.mxu0 0
    %944 = vmatprep.subr.bf16.mxu0 0
    %945 = vmatpush1.bf16.msra.mxu0 0
    %946 = vmatprep.mubr.bf16.mxu0 0
    %947 = vmatmul.mubr.bf16.gmra.mrb[0].mxu0 %v909
    %v948 = vpop.f32.mrb[0].mxu0
    %v949 = vadd.f32 0.0, %v948
    %v950 = vpop.f32.mrb[0].mxu0
    %v951 = vpop.f32.mrb[0].mxu0
    %v952 = vpop.f32.mrb[0].mxu0
    %953 = vdwg.mxu0
    %954 = vrot.lane.b32.xlu0 %v604, 64
    %v955 = vpop.permute.xlu0 %954
    %v957 = vsel %vm858, %v854, 0
    %v960 = vsel %vm862, %v955, 0
    %962 = vmatprep.subr.bf16.mxu0 0
    %963 = vmatpush1.bf16.msra.mxu0 %v960
    %964 = vmatprep.subr.bf16.mxu0 0
    %965 = vmatpush1.bf16.msra.mxu0 0
    %966 = vmatprep.subr.bf16.mxu0 0
    %967 = vmatpush1.bf16.msra.mxu0 0
    %968 = vmatprep.subr.bf16.mxu0 0
    %969 = vmatpush1.bf16.msra.mxu0 0
    %970 = vmatprep.subr.bf16.mxu0 0
    %971 = vmatpush1.bf16.msra.mxu0 0
    %972 = vmatprep.subr.bf16.mxu0 0
    %973 = vmatpush1.bf16.msra.mxu0 0
    %974 = vmatprep.subr.bf16.mxu0 0
    %975 = vmatpush1.bf16.msra.mxu0 0
    %976 = vmatprep.subr.bf16.mxu0 0
    %977 = vmatpush1.bf16.msra.mxu0 0
    %978 = vmatprep.subr.bf16.mxu0 0
    %979 = vmatpush1.bf16.msra.mxu0 0
    %980 = vmatprep.subr.bf16.mxu0 0
    %981 = vmatpush1.bf16.msra.mxu0 0
    %982 = vmatprep.subr.bf16.mxu0 0
    %983 = vmatpush1.bf16.msra.mxu0 0
    %984 = vmatprep.subr.bf16.mxu0 0
    %985 = vmatpush1.bf16.msra.mxu0 0
    %986 = vmatprep.subr.bf16.mxu0 0
    %987 = vmatpush1.bf16.msra.mxu0 0
    %988 = vmatprep.subr.bf16.mxu0 0
    %989 = vmatpush1.bf16.msra.mxu0 0
    %990 = vmatprep.subr.bf16.mxu0 0
    %991 = vmatpush1.bf16.msra.mxu0 0
    %992 = vmatprep.subr.bf16.mxu0 0
    %993 = vmatpush1.bf16.msra.mxu0 0
    %994 = vmatprep.mubr.bf16.mxu0 0
    %995 = vmatmul.mubr.bf16.gmra.mrb[0].mxu0 %v957
    %v996 = vpop.f32.mrb[0].mxu0
    %v997 = vadd.f32 0.0, %v996
    %v998 = vpop.f32.mrb[0].mxu0
    %v999 = vpop.f32.mrb[0].mxu0
    %v1000 = vpop.f32.mrb[0].mxu0
    %1001 = vdwg.mxu0
    %1002 = vrot.lane.b32.xlu0 %v605, 64
    %v1003 = vpop.permute.xlu0 %1002
    %v1005 = vsel %vm858, %v855, 0
    %v1008 = vsel %vm862, %v1003, 0
    %1010 = vmatprep.subr.bf16.mxu0 0
    %1011 = vmatpush1.bf16.msra.mxu0 %v1008
    %1012 = vmatprep.subr.bf16.mxu0 0
    %1013 = vmatpush1.bf16.msra.mxu0 0
    %1014 = vmatprep.subr.bf16.mxu0 0
    %1015 = vmatpush1.bf16.msra.mxu0 0
    %1016 = vmatprep.subr.bf16.mxu0 0
    %1017 = vmatpush1.bf16.msra.mxu0 0
    %1018 = vmatprep.subr.bf16.mxu0 0
    %1019 = vmatpush1.bf16.msra.mxu0 0
    %1020 = vmatprep.subr.bf16.mxu0 0
    %1021 = vmatpush1.bf16.msra.mxu0 0
    %1022 = vmatprep.subr.bf16.mxu0 0
    %1023 = vmatpush1.bf16.msra.mxu0 0
    %1024 = vmatprep.subr.bf16.mxu0 0
    %1025 = vmatpush1.bf16.msra.mxu0 0
    %1026 = vmatprep.subr.bf16.mxu0 0
    %1027 = vmatpush1.bf16.msra.mxu0 0
    %1028 = vmatprep.subr.bf16.mxu0 0
    %1029 = vmatpush1.bf16.msra.mxu0 0
    %1030 = vmatprep.subr.bf16.mxu0 0
    %1031 = vmatpush1.bf16.msra.mxu0 0
    %1032 = vmatprep.subr.bf16.mxu0 0
    %1033 = vmatpush1.bf16.msra.mxu0 0
    %1034 = vmatprep.subr.bf16.mxu0 0
    %1035 = vmatpush1.bf16.msra.mxu0 0
    %1036 = vmatprep.subr.bf16.mxu0 0
    %1037 = vmatpush1.bf16.msra.mxu0 0
    %1038 = vmatprep.subr.bf16.mxu0 0
    %1039 = vmatpush1.bf16.msra.mxu0 0
    %1040 = vmatprep.subr.bf16.mxu0 0
    %1041 = vmatpush1.bf16.msra.mxu0 0
    %1042 = vmatprep.mubr.bf16.mxu0 0
    %1043 = vmatmul.mubr.bf16.gmra.mrb[0].mxu0 %v1005
    %v1044 = vpop.f32.mrb[0].mxu0
    %v1045 = vadd.f32 0.0, %v1044
    %v1046 = vpop.f32.mrb[0].mxu0
    %v1047 = vpop.f32.mrb[0].mxu0
    %v1048 = vpop.f32.mrb[0].mxu0
    %1049 = vdwg.mxu0
    %1050 = vrot.lane.b32.xlu0 %v602, 120
    %v1051 = vpop.permute.xlu0 %1050
    %1052 = vrot.lane.b32.xlu0 %v602, 88
    %v1053 = vpop.permute.xlu0 %1052
    %v1055 = vsel %vm609, %v1051, 0
    %v1058 = vsel %vm609, %v1053, 0
    %1060 = vmatprep.subr.bf16.mxu0 0
    %1061 = vmatpush1.bf16.xpose.msra.mxu0 %v1058
    %1062 = vmatprep.subr.bf16.mxu0 0
    %1063 = vmatpush1.bf16.xpose.msra.mxu0 0
    %1064 = vmatprep.subr.bf16.mxu0 0
    %1065 = vmatpush1.bf16.xpose.msra.mxu0 0
    %1066 = vmatprep.subr.bf16.mxu0 0
    %1067 = vmatpush1.bf16.xpose.msra.mxu0 0
    %1068 = vmatprep.subr.bf16.mxu0 0
    %1069 = vmatpush1.bf16.xpose.msra.mxu0 0
    %1070 = vmatprep.subr.bf16.mxu0 0
    %1071 = vmatpush1.bf16.xpose.msra.mxu0 0
    %1072 = vmatprep.subr.bf16.mxu0 0
    %1073 = vmatpush1.bf16.xpose.msra.mxu0 0
    %1074 = vmatprep.subr.bf16.mxu0 0
    %1075 = vmatpush1.bf16.xpose.msra.mxu0 0
    %1076 = vmatprep.subr.bf16.mxu0 0
    %1077 = vmatpush1.bf16.xpose.msra.mxu0 0
    %1078 = vmatprep.subr.bf16.mxu0 0
    %1079 = vmatpush1.bf16.xpose.msra.mxu0 0
    %1080 = vmatprep.subr.bf16.mxu0 0
    %1081 = vmatpush1.bf16.xpose.msra.mxu0 0
    %1082 = vmatprep.subr.bf16.mxu0 0
    %1083 = vmatpush1.bf16.xpose.msra.mxu0 0
    %1084 = vmatprep.subr.bf16.mxu0 0
    %1085 = vmatpush1.bf16.xpose.msra.mxu0 0
    %1086 = vmatprep.subr.bf16.mxu0 0
    %1087 = vmatpush1.bf16.xpose.msra.mxu0 0
    %1088 = vmatprep.subr.bf16.mxu0 0
    %1089 = vmatpush1.bf16.xpose.msra.mxu0 0
    %1090 = vmatprep.subr.bf16.mxu0 0
    %1091 = vmatpush1.bf16.xpose.msra.mxu0 0
    %1092 = vmatprep.mubr.bf16.mxu0 0
    %1093 = vmatmul.mubr.bf16.gmra.mrb[0].mxu0 %v1055
    %v1094 = vpop.f32.mrb[0].mxu0
    %v1095 = vadd.f32 0.0, %v1094
    %v1096 = vpop.f32.mrb[0].mxu0
    %v1097 = vpop.f32.mrb[0].mxu0
    %v1098 = vpop.f32.mrb[0].mxu0
    %1099 = vdwg.mxu0
    %1100 = vrot.lane.b32.xlu0 %v603, 120
    %v1101 = vpop.permute.xlu0 %1100
    %1102 = vrot.lane.b32.xlu0 %v603, 88
    %v1103 = vpop.permute.xlu0 %1102
    %v1105 = vsel %vm609, %v1101, 0
    %v1108 = vsel %vm609, %v1103, 0
    %1110 = vmatprep.subr.bf16.mxu0 0
    %1111 = vmatpush1.bf16.xpose.msra.mxu0 %v1108
    %1112 = vmatprep.subr.bf16.mxu0 0
    %1113 = vmatpush1.bf16.xpose.msra.mxu0 0
    %1114 = vmatprep.subr.bf16.mxu0 0
    %1115 = vmatpush1.bf16.xpose.msra.mxu0 0
    %1116 = vmatprep.subr.bf16.mxu0 0
    %1117 = vmatpush1.bf16.xpose.msra.mxu0 0
    %1118 = vmatprep.subr.bf16.mxu0 0
    %1119 = vmatpush1.bf16.xpose.msra.mxu0 0
    %1120 = vmatprep.subr.bf16.mxu0 0
    %1121 = vmatpush1.bf16.xpose.msra.mxu0 0
    %1122 = vmatprep.subr.bf16.mxu0 0
    %1123 = vmatpush1.bf16.xpose.msra.mxu0 0
    %1124 = vmatprep.subr.bf16.mxu0 0
    %1125 = vmatpush1.bf16.xpose.msra.mxu0 0
    %1126 = vmatprep.subr.bf16.mxu0 0
    %1127 = vmatpush1.bf16.xpose.msra.mxu0 0
    %1128 = vmatprep.subr.bf16.mxu0 0
    %1129 = vmatpush1.bf16.xpose.msra.mxu0 0
    %1130 = vmatprep.subr.bf16.mxu0 0
    %1131 = vmatpush1.bf16.xpose.msra.mxu0 0
    %1132 = vmatprep.subr.bf16.mxu0 0
    %1133 = vmatpush1.bf16.xpose.msra.mxu0 0
    %1134 = vmatprep.subr.bf16.mxu0 0
    %1135 = vmatpush1.bf16.xpose.msra.mxu0 0
    %1136 = vmatprep.subr.bf16.mxu0 0
    %1137 = vmatpush1.bf16.xpose.msra.mxu0 0
    %1138 = vmatprep.subr.bf16.mxu0 0
    %1139 = vmatpush1.bf16.xpose.msra.mxu0 0
    %1140 = vmatprep.subr.bf16.mxu0 0
    %1141 = vmatpush1.bf16.xpose.msra.mxu0 0
    %1142 = vmatprep.mubr.bf16.mxu0 0
    %1143 = vmatmul.mubr.bf16.gmra.mrb[0].mxu0 %v1105
    %v1144 = vpop.f32.mrb[0].mxu0
    %v1145 = vadd.f32 0.0, %v1144
    %v1146 = vpop.f32.mrb[0].mxu0
    %v1147 = vpop.f32.mrb[0].mxu0
    %v1148 = vpop.f32.mrb[0].mxu0
    %1149 = vdwg.mxu0
    %1150 = vrot.lane.b32.xlu0 %v604, 120
    %v1151 = vpop.permute.xlu0 %1150
    %1152 = vrot.lane.b32.xlu0 %v604, 88
    %v1153 = vpop.permute.xlu0 %1152
    %v1155 = vsel %vm609, %v1151, 0
    %v1158 = vsel %vm609, %v1153, 0
    %1160 = vmatprep.subr.bf16.mxu0 0
    %1161 = vmatpush1.bf16.xpose.msra.mxu0 %v1158
    %1162 = vmatprep.subr.bf16.mxu0 0
    %1163 = vmatpush1.bf16.xpose.msra.mxu0 0
    %1164 = vmatprep.subr.bf16.mxu0 0
    %1165 = vmatpush1.bf16.xpose.msra.mxu0 0
    %1166 = vmatprep.subr.bf16.mxu0 0
    %1167 = vmatpush1.bf16.xpose.msra.mxu0 0
    %1168 = vmatprep.subr.bf16.mxu0 0
    %1169 = vmatpush1.bf16.xpose.msra.mxu0 0
    %1170 = vmatprep.subr.bf16.mxu0 0
    %1171 = vmatpush1.bf16.xpose.msra.mxu0 0
    %1172 = vmatprep.subr.bf16.mxu0 0
    %1173 = vmatpush1.bf16.xpose.msra.mxu0 0
    %1174 = vmatprep.subr.bf16.mxu0 0
    %1175 = vmatpush1.bf16.xpose.msra.mxu0 0
    %1176 = vmatprep.subr.bf16.mxu0 0
    %1177 = vmatpush1.bf16.xpose.msra.mxu0 0
    %1178 = vmatprep.subr.bf16.mxu0 0
    %1179 = vmatpush1.bf16.xpose.msra.mxu0 0
    %1180 = vmatprep.subr.bf16.mxu0 0
    %1181 = vmatpush1.bf16.xpose.msra.mxu0 0
    %1182 = vmatprep.subr.bf16.mxu0 0
    %1183 = vmatpush1.bf16.xpose.msra.mxu0 0
    %1184 = vmatprep.subr.bf16.mxu0 0
    %1185 = vmatpush1.bf16.xpose.msra.mxu0 0
    %1186 = vmatprep.subr.bf16.mxu0 0
    %1187 = vmatpush1.bf16.xpose.msra.mxu0 0
    %1188 = vmatprep.subr.bf16.mxu0 0
    %1189 = vmatpush1.bf16.xpose.msra.mxu0 0
    %1190 = vmatprep.subr.bf16.mxu0 0
    %1191 = vmatpush1.bf16.xpose.msra.mxu0 0
    %1192 = vmatprep.mubr.bf16.mxu0 0
    %1193 = vmatmul.mubr.bf16.gmra.mrb[0].mxu0 %v1155
    %v1194 = vpop.f32.mrb[0].mxu0
    %v1195 = vadd.f32 0.0, %v1194
    %v1196 = vpop.f32.mrb[0].mxu0
    %v1197 = vpop.f32.mrb[0].mxu0
    %v1198 = vpop.f32.mrb[0].mxu0
    %1199 = vdwg.mxu0
    %1200 = vrot.lane.b32.xlu0 %v605, 120
    %v1201 = vpop.permute.xlu0 %1200
    %1202 = vrot.lane.b32.xlu0 %v605, 88
    %v1203 = vpop.permute.xlu0 %1202
    %v1205 = vsel %vm609, %v1201, 0
    %v1208 = vsel %vm609, %v1203, 0
    %1210 = vmatprep.subr.bf16.mxu0 0
    %1211 = vmatpush1.bf16.xpose.msra.mxu0 %v1208
    %1212 = vmatprep.subr.bf16.mxu0 0
    %1213 = vmatpush1.bf16.xpose.msra.mxu0 0
    %1214 = vmatprep.subr.bf16.mxu0 0
    %1215 = vmatpush1.bf16.xpose.msra.mxu0 0
    %1216 = vmatprep.subr.bf16.mxu0 0
    %1217 = vmatpush1.bf16.xpose.msra.mxu0 0
    %1218 = vmatprep.subr.bf16.mxu0 0
    %1219 = vmatpush1.bf16.xpose.msra.mxu0 0
    %1220 = vmatprep.subr.bf16.mxu0 0
    %1221 = vmatpush1.bf16.xpose.msra.mxu0 0
    %1222 = vmatprep.subr.bf16.mxu0 0
    %1223 = vmatpush1.bf16.xpose.msra.mxu0 0
    %1224 = vmatprep.subr.bf16.mxu0 0
    %1225 = vmatpush1.bf16.xpose.msra.mxu0 0
    %1226 = vmatprep.subr.bf16.mxu0 0
    %1227 = vmatpush1.bf16.xpose.msra.mxu0 0
    %1228 = vmatprep.subr.bf16.mxu0 0
    %1229 = vmatpush1.bf16.xpose.msra.mxu0 0
    %1230 = vmatprep.subr.bf16.mxu0 0
    %1231 = vmatpush1.bf16.xpose.msra.mxu0 0
    %1232 = vmatprep.subr.bf16.mxu0 0
    %1233 = vmatpush1.bf16.xpose.msra.mxu0 0
    %1234 = vmatprep.subr.bf16.mxu0 0
    %1235 = vmatpush1.bf16.xpose.msra.mxu0 0
    %1236 = vmatprep.subr.bf16.mxu0 0
    %1237 = vmatpush1.bf16.xpose.msra.mxu0 0
    %1238 = vmatprep.subr.bf16.mxu0 0
    %1239 = vmatpush1.bf16.xpose.msra.mxu0 0
    %1240 = vmatprep.subr.bf16.mxu0 0
    %1241 = vmatpush1.bf16.xpose.msra.mxu0 0
    %1242 = vmatprep.mubr.bf16.mxu0 0
    %1243 = vmatmul.mubr.bf16.gmra.mrb[0].mxu0 %v1205
    %v1244 = vpop.f32.mrb[0].mxu0
    %v1245 = vadd.f32 0.0, %v1244
    %v1246 = vpop.f32.mrb[0].mxu0
    %v1247 = vpop.f32.mrb[0].mxu0
    %v1248 = vpop.f32.mrb[0].mxu0
    %1249 = vdwg.mxu0
    %v1250 = vmul.f32 %v1095, 0.35355338
    %v1251 = vmul.f32 %v1145, 0.35355338
    %v1252 = vmul.f32 %v1195, 0.35355338
    %v1253 = vmul.f32 %v1245, 0.35355338
    %v1254 = vsel %vm807, %v1250, -inf
    %1255 = vmax.xlane.f32.xlu0 %v1254
    %v1256 = vpop.xlane.xlu0 %1255
    %v1257 = vsel %vm807, %v1251, -inf
    %1258 = vmax.xlane.f32.xlu0 %v1257
    %v1259 = vpop.xlane.xlu0 %1258
    %v1260 = vsel %vm807, %v1252, -inf
    %1261 = vmax.xlane.f32.xlu0 %v1260
    %v1262 = vpop.xlane.xlu0 %1261
    %v1263 = vsel %vm807, %v1253, -inf
    %1264 = vmax.xlane.f32.xlu0 %v1263
    %v1265 = vpop.xlane.xlu0 %1264
    %v1266 = vsub.f32 %v1250, %v1256
    %v1267 = vsub.f32 %v1251, %v1259
    %v1268 = vsub.f32 %v1252, %v1262
    %v1269 = vsub.f32 %v1253, %v1265
    %v1270 = vmul.f32 %v1266, 1.442695
    %v1271 = vpow.pop %v1270
    %v1272 = vmul.f32 %v1267, 1.442695
    %v1273 = vpow.pop %v1272
    %v1274 = vmul.f32 %v1268, 1.442695
    %v1275 = vpow.pop %v1274
    %v1276 = vmul.f32 %v1269, 1.442695
    %v1277 = vpow.pop %v1276
    %v1278 = vsel %vm807, %v1271, 0.0
    %1279 = vadd.xlane.f32.xlu0 %v1278
    %v1280 = vpop.xlane.xlu0 %1279
    %v1281 = vsel %vm807, %v1273, 0.0
    %1282 = vadd.xlane.f32.xlu0 %v1281
    %v1283 = vpop.xlane.xlu0 %1282
    %v1284 = vsel %vm807, %v1275, 0.0
    %1285 = vadd.xlane.f32.xlu0 %v1284
    %v1286 = vpop.xlane.xlu0 %1285
    %v1287 = vsel %vm807, %v1277, 0.0
    %1288 = vadd.xlane.f32.xlu0 %v1287
    %v1289 = vpop.xlane.xlu0 %1288
    %v1290 = vrcp.pop %v1280
    %v1291 = vrcp.pop %v1283
    %v1292 = vrcp.pop %v1286
    %v1293 = vrcp.pop %v1289
    %v1294 = vmul.f32 %v1271, %v1290
    %v1295 = vmul.f32 %v1273, %v1291
    %v1296 = vmul.f32 %v1275, %v1292
    %v1297 = vmul.f32 %v1277, %v1293
    %v1298 = vpack.c.bf16 %v1294, %v1294
    %v1299 = vpack.c.bf16 %v1295, %v1295
    %v1300 = vpack.c.bf16 %v1296, %v1296
    %v1301 = vpack.c.bf16 %v1297, %v1297
    %1302 = vrot.lane.b32.xlu0 %v602, 56
    %v1303 = vpop.permute.xlu0 %1302
    %v1305 = vsel %vm858, %v1298, 0
    %v1308 = vsel %vm862, %v1303, 0
    %1310 = vmatprep.subr.bf16.mxu0 0
    %1311 = vmatpush1.bf16.msra.mxu0 %v1308
    %1312 = vmatprep.subr.bf16.mxu0 0
    %1313 = vmatpush1.bf16.msra.mxu0 0
    %1314 = vmatprep.subr.bf16.mxu0 0
    %1315 = vmatpush1.bf16.msra.mxu0 0
    %1316 = vmatprep.subr.bf16.mxu0 0
    %1317 = vmatpush1.bf16.msra.mxu0 0
    %1318 = vmatprep.subr.bf16.mxu0 0
    %1319 = vmatpush1.bf16.msra.mxu0 0
    %1320 = vmatprep.subr.bf16.mxu0 0
    %1321 = vmatpush1.bf16.msra.mxu0 0
    %1322 = vmatprep.subr.bf16.mxu0 0
    %1323 = vmatpush1.bf16.msra.mxu0 0
    %1324 = vmatprep.subr.bf16.mxu0 0
    %1325 = vmatpush1.bf16.msra.mxu0 0
    %1326 = vmatprep.subr.bf16.mxu0 0
    %1327 = vmatpush1.bf16.msra.mxu0 0
    %1328 = vmatprep.subr.bf16.mxu0 0
    %1329 = vmatpush1.bf16.msra.mxu0 0
    %1330 = vmatprep.subr.bf16.mxu0 0
    %1331 = vmatpush1.bf16.msra.mxu0 0
    %1332 = vmatprep.subr.bf16.mxu0 0
    %1333 = vmatpush1.bf16.msra.mxu0 0
    %1334 = vmatprep.subr.bf16.mxu0 0
    %1335 = vmatpush1.bf16.msra.mxu0 0
    %1336 = vmatprep.subr.bf16.mxu0 0
    %1337 = vmatpush1.bf16.msra.mxu0 0
    %1338 = vmatprep.subr.bf16.mxu0 0
    %1339 = vmatpush1.bf16.msra.mxu0 0
    %1340 = vmatprep.subr.bf16.mxu0 0
    %1341 = vmatpush1.bf16.msra.mxu0 0
    %1342 = vmatprep.mubr.bf16.mxu0 0
    %1343 = vmatmul.mubr.bf16.gmra.mrb[0].mxu0 %v1305
    %v1344 = vpop.f32.mrb[0].mxu0
    %v1345 = vadd.f32 0.0, %v1344
    %v1346 = vpop.f32.mrb[0].mxu0
    %v1347 = vpop.f32.mrb[0].mxu0
    %v1348 = vpop.f32.mrb[0].mxu0
    %1349 = vdwg.mxu0
    %1350 = vrot.lane.b32.xlu0 %v603, 56
    %v1351 = vpop.permute.xlu0 %1350
    %v1353 = vsel %vm858, %v1299, 0
    %v1356 = vsel %vm862, %v1351, 0
    %1358 = vmatprep.subr.bf16.mxu0 0
    %1359 = vmatpush1.bf16.msra.mxu0 %v1356
    %1360 = vmatprep.subr.bf16.mxu0 0
    %1361 = vmatpush1.bf16.msra.mxu0 0
    %1362 = vmatprep.subr.bf16.mxu0 0
    %1363 = vmatpush1.bf16.msra.mxu0 0
    %1364 = vmatprep.subr.bf16.mxu0 0
    %1365 = vmatpush1.bf16.msra.mxu0 0
    %1366 = vmatprep.subr.bf16.mxu0 0
    %1367 = vmatpush1.bf16.msra.mxu0 0
    %1368 = vmatprep.subr.bf16.mxu0 0
    %1369 = vmatpush1.bf16.msra.mxu0 0
    %1370 = vmatprep.subr.bf16.mxu0 0
    %1371 = vmatpush1.bf16.msra.mxu0 0
    %1372 = vmatprep.subr.bf16.mxu0 0
    %1373 = vmatpush1.bf16.msra.mxu0 0
    %1374 = vmatprep.subr.bf16.mxu0 0
    %1375 = vmatpush1.bf16.msra.mxu0 0
    %1376 = vmatprep.subr.bf16.mxu0 0
    %1377 = vmatpush1.bf16.msra.mxu0 0
    %1378 = vmatprep.subr.bf16.mxu0 0
    %1379 = vmatpush1.bf16.msra.mxu0 0
    %1380 = vmatprep.subr.bf16.mxu0 0
    %1381 = vmatpush1.bf16.msra.mxu0 0
    %1382 = vmatprep.subr.bf16.mxu0 0
    %1383 = vmatpush1.bf16.msra.mxu0 0
    %1384 = vmatprep.subr.bf16.mxu0 0
    %1385 = vmatpush1.bf16.msra.mxu0 0
    %1386 = vmatprep.subr.bf16.mxu0 0
    %1387 = vmatpush1.bf16.msra.mxu0 0
    %1388 = vmatprep.subr.bf16.mxu0 0
    %1389 = vmatpush1.bf16.msra.mxu0 0
    %1390 = vmatprep.mubr.bf16.mxu0 0
    %1391 = vmatmul.mubr.bf16.gmra.mrb[0].mxu0 %v1353
    %v1392 = vpop.f32.mrb[0].mxu0
    %v1393 = vadd.f32 0.0, %v1392
    %v1394 = vpop.f32.mrb[0].mxu0
    %v1395 = vpop.f32.mrb[0].mxu0
    %v1396 = vpop.f32.mrb[0].mxu0
    %1397 = vdwg.mxu0
    %1398 = vrot.lane.b32.xlu0 %v604, 56
    %v1399 = vpop.permute.xlu0 %1398
    %v1401 = vsel %vm858, %v1300, 0
    %v1404 = vsel %vm862, %v1399, 0
    %1406 = vmatprep.subr.bf16.mxu0 0
    %1407 = vmatpush1.bf16.msra.mxu0 %v1404
    %1408 = vmatprep.subr.bf16.mxu0 0
    %1409 = vmatpush1.bf16.msra.mxu0 0
    %1410 = vmatprep.subr.bf16.mxu0 0
    %1411 = vmatpush1.bf16.msra.mxu0 0
    %1412 = vmatprep.subr.bf16.mxu0 0
    %1413 = vmatpush1.bf16.msra.mxu0 0
    %1414 = vmatprep.subr.bf16.mxu0 0
    %1415 = vmatpush1.bf16.msra.mxu0 0
    %1416 = vmatprep.subr.bf16.mxu0 0
    %1417 = vmatpush1.bf16.msra.mxu0 0
    %1418 = vmatprep.subr.bf16.mxu0 0
    %1419 = vmatpush1.bf16.msra.mxu0 0
    %1420 = vmatprep.subr.bf16.mxu0 0
    %1421 = vmatpush1.bf16.msra.mxu0 0
    %1422 = vmatprep.subr.bf16.mxu0 0
    %1423 = vmatpush1.bf16.msra.mxu0 0
    %1424 = vmatprep.subr.bf16.mxu0 0
    %1425 = vmatpush1.bf16.msra.mxu0 0
    %1426 = vmatprep.subr.bf16.mxu0 0
    %1427 = vmatpush1.bf16.msra.mxu0 0
    %1428 = vmatprep.subr.bf16.mxu0 0
    %1429 = vmatpush1.bf16.msra.mxu0 0
    %1430 = vmatprep.subr.bf16.mxu0 0
    %1431 = vmatpush1.bf16.msra.mxu0 0
    %1432 = vmatprep.subr.bf16.mxu0 0
    %1433 = vmatpush1.bf16.msra.mxu0 0
    %1434 = vmatprep.subr.bf16.mxu0 0
    %1435 = vmatpush1.bf16.msra.mxu0 0
    %1436 = vmatprep.subr.bf16.mxu0 0
    %1437 = vmatpush1.bf16.msra.mxu0 0
    %1438 = vmatprep.mubr.bf16.mxu0 0
    %1439 = vmatmul.mubr.bf16.gmra.mrb[0].mxu0 %v1401
    %v1440 = vpop.f32.mrb[0].mxu0
    %v1441 = vadd.f32 0.0, %v1440
    %v1442 = vpop.f32.mrb[0].mxu0
    %v1443 = vpop.f32.mrb[0].mxu0
    %v1444 = vpop.f32.mrb[0].mxu0
    %1445 = vdwg.mxu0
    %1446 = vrot.lane.b32.xlu0 %v605, 56
    %v1447 = vpop.permute.xlu0 %1446
    %v1449 = vsel %vm858, %v1301, 0
    %v1452 = vsel %vm862, %v1447, 0
    %1454 = vmatprep.subr.bf16.mxu0 0
    %1455 = vmatpush1.bf16.msra.mxu0 %v1452
    %1456 = vmatprep.subr.bf16.mxu0 0
    %1457 = vmatpush1.bf16.msra.mxu0 0
    %1458 = vmatprep.subr.bf16.mxu0 0
    %1459 = vmatpush1.bf16.msra.mxu0 0
    %1460 = vmatprep.subr.bf16.mxu0 0
    %1461 = vmatpush1.bf16.msra.mxu0 0
    %1462 = vmatprep.subr.bf16.mxu0 0
    %1463 = vmatpush1.bf16.msra.mxu0 0
    %1464 = vmatprep.subr.bf16.mxu0 0
    %1465 = vmatpush1.bf16.msra.mxu0 0
    %1466 = vmatprep.subr.bf16.mxu0 0
    %1467 = vmatpush1.bf16.msra.mxu0 0
    %1468 = vmatprep.subr.bf16.mxu0 0
    %1469 = vmatpush1.bf16.msra.mxu0 0
    %1470 = vmatprep.subr.bf16.mxu0 0
    %1471 = vmatpush1.bf16.msra.mxu0 0
    %1472 = vmatprep.subr.bf16.mxu0 0
    %1473 = vmatpush1.bf16.msra.mxu0 0
    %1474 = vmatprep.subr.bf16.mxu0 0
    %1475 = vmatpush1.bf16.msra.mxu0 0
    %1476 = vmatprep.subr.bf16.mxu0 0
    %1477 = vmatpush1.bf16.msra.mxu0 0
    %1478 = vmatprep.subr.bf16.mxu0 0
    %1479 = vmatpush1.bf16.msra.mxu0 0
    %1480 = vmatprep.subr.bf16.mxu0 0
    %1481 = vmatpush1.bf16.msra.mxu0 0
    %1482 = vmatprep.subr.bf16.mxu0 0
    %1483 = vmatpush1.bf16.msra.mxu0 0
    %1484 = vmatprep.subr.bf16.mxu0 0
    %1485 = vmatpush1.bf16.msra.mxu0 0
    %1486 = vmatprep.mubr.bf16.mxu0 0
    %1487 = vmatmul.mubr.bf16.gmra.mrb[0].mxu0 %v1449
    %v1488 = vpop.f32.mrb[0].mxu0
    %v1489 = vadd.f32 0.0, %v1488
    %v1490 = vpop.f32.mrb[0].mxu0
    %v1491 = vpop.f32.mrb[0].mxu0
    %v1492 = vpop.f32.mrb[0].mxu0
    %1493 = vdwg.mxu0
    %1494 = vrot.lane.b32.xlu0 %v602, 112
    %v1495 = vpop.permute.xlu0 %1494
    %1496 = vrot.lane.b32.xlu0 %v602, 80
    %v1497 = vpop.permute.xlu0 %1496
    %v1499 = vsel %vm609, %v1495, 0
    %v1502 = vsel %vm609, %v1497, 0
    %1504 = vmatprep.subr.bf16.mxu0 0
    %1505 = vmatpush1.bf16.xpose.msra.mxu0 %v1502
    %1506 = vmatprep.subr.bf16.mxu0 0
    %1507 = vmatpush1.bf16.xpose.msra.mxu0 0
    %1508 = vmatprep.subr.bf16.mxu0 0
    %1509 = vmatpush1.bf16.xpose.msra.mxu0 0
    %1510 = vmatprep.subr.bf16.mxu0 0
    %1511 = vmatpush1.bf16.xpose.msra.mxu0 0
    %1512 = vmatprep.subr.bf16.mxu0 0
    %1513 = vmatpush1.bf16.xpose.msra.mxu0 0
    %1514 = vmatprep.subr.bf16.mxu0 0
    %1515 = vmatpush1.bf16.xpose.msra.mxu0 0
    %1516 = vmatprep.subr.bf16.mxu0 0
    %1517 = vmatpush1.bf16.xpose.msra.mxu0 0
    %1518 = vmatprep.subr.bf16.mxu0 0
    %1519 = vmatpush1.bf16.xpose.msra.mxu0 0
    %1520 = vmatprep.subr.bf16.mxu0 0
    %1521 = vmatpush1.bf16.xpose.msra.mxu0 0
    %1522 = vmatprep.subr.bf16.mxu0 0
    %1523 = vmatpush1.bf16.xpose.msra.mxu0 0
    %1524 = vmatprep.subr.bf16.mxu0 0
    %1525 = vmatpush1.bf16.xpose.msra.mxu0 0
    %1526 = vmatprep.subr.bf16.mxu0 0
    %1527 = vmatpush1.bf16.xpose.msra.mxu0 0
    %1528 = vmatprep.subr.bf16.mxu0 0
    %1529 = vmatpush1.bf16.xpose.msra.mxu0 0
    %1530 = vmatprep.subr.bf16.mxu0 0
    %1531 = vmatpush1.bf16.xpose.msra.mxu0 0
    %1532 = vmatprep.subr.bf16.mxu0 0
    %1533 = vmatpush1.bf16.xpose.msra.mxu0 0
    %1534 = vmatprep.subr.bf16.mxu0 0
    %1535 = vmatpush1.bf16.xpose.msra.mxu0 0
    %1536 = vmatprep.mubr.bf16.mxu0 0
    %1537 = vmatmul.mubr.bf16.gmra.mrb[0].mxu0 %v1499
    %v1538 = vpop.f32.mrb[0].mxu0
    %v1539 = vadd.f32 0.0, %v1538
    %v1540 = vpop.f32.mrb[0].mxu0
    %v1541 = vpop.f32.mrb[0].mxu0
    %v1542 = vpop.f32.mrb[0].mxu0
    %1543 = vdwg.mxu0
    %1544 = vrot.lane.b32.xlu0 %v603, 112
    %v1545 = vpop.permute.xlu0 %1544
    %1546 = vrot.lane.b32.xlu0 %v603, 80
    %v1547 = vpop.permute.xlu0 %1546
    %v1549 = vsel %vm609, %v1545, 0
    %v1552 = vsel %vm609, %v1547, 0
    %1554 = vmatprep.subr.bf16.mxu0 0
    %1555 = vmatpush1.bf16.xpose.msra.mxu0 %v1552
    %1556 = vmatprep.subr.bf16.mxu0 0
    %1557 = vmatpush1.bf16.xpose.msra.mxu0 0
    %1558 = vmatprep.subr.bf16.mxu0 0
    %1559 = vmatpush1.bf16.xpose.msra.mxu0 0
    %1560 = vmatprep.subr.bf16.mxu0 0
    %1561 = vmatpush1.bf16.xpose.msra.mxu0 0
    %1562 = vmatprep.subr.bf16.mxu0 0
    %1563 = vmatpush1.bf16.xpose.msra.mxu0 0
    %1564 = vmatprep.subr.bf16.mxu0 0
    %1565 = vmatpush1.bf16.xpose.msra.mxu0 0
    %1566 = vmatprep.subr.bf16.mxu0 0
    %1567 = vmatpush1.bf16.xpose.msra.mxu0 0
    %1568 = vmatprep.subr.bf16.mxu0 0
    %1569 = vmatpush1.bf16.xpose.msra.mxu0 0
    %1570 = vmatprep.subr.bf16.mxu0 0
    %1571 = vmatpush1.bf16.xpose.msra.mxu0 0
    %1572 = vmatprep.subr.bf16.mxu0 0
    %1573 = vmatpush1.bf16.xpose.msra.mxu0 0
    %1574 = vmatprep.subr.bf16.mxu0 0
    %1575 = vmatpush1.bf16.xpose.msra.mxu0 0
    %1576 = vmatprep.subr.bf16.mxu0 0
    %1577 = vmatpush1.bf16.xpose.msra.mxu0 0
    %1578 = vmatprep.subr.bf16.mxu0 0
    %1579 = vmatpush1.bf16.xpose.msra.mxu0 0
    %1580 = vmatprep.subr.bf16.mxu0 0
    %1581 = vmatpush1.bf16.xpose.msra.mxu0 0
    %1582 = vmatprep.subr.bf16.mxu0 0
    %1583 = vmatpush1.bf16.xpose.msra.mxu0 0
    %1584 = vmatprep.subr.bf16.mxu0 0
    %1585 = vmatpush1.bf16.xpose.msra.mxu0 0
    %1586 = vmatprep.mubr.bf16.mxu0 0
    %1587 = vmatmul.mubr.bf16.gmra.mrb[0].mxu0 %v1549
    %v1588 = vpop.f32.mrb[0].mxu0
    %v1589 = vadd.f32 0.0, %v1588
    %v1590 = vpop.f32.mrb[0].mxu0
    %v1591 = vpop.f32.mrb[0].mxu0
    %v1592 = vpop.f32.mrb[0].mxu0
    %1593 = vdwg.mxu0
    %1594 = vrot.lane.b32.xlu0 %v604, 112
    %v1595 = vpop.permute.xlu0 %1594
    %1596 = vrot.lane.b32.xlu0 %v604, 80
    %v1597 = vpop.permute.xlu0 %1596
    %v1599 = vsel %vm609, %v1595, 0
    %v1602 = vsel %vm609, %v1597, 0
    %1604 = vmatprep.subr.bf16.mxu0 0
    %1605 = vmatpush1.bf16.xpose.msra.mxu0 %v1602
    %1606 = vmatprep.subr.bf16.mxu0 0
    %1607 = vmatpush1.bf16.xpose.msra.mxu0 0
    %1608 = vmatprep.subr.bf16.mxu0 0
    %1609 = vmatpush1.bf16.xpose.msra.mxu0 0
    %1610 = vmatprep.subr.bf16.mxu0 0
    %1611 = vmatpush1.bf16.xpose.msra.mxu0 0
    %1612 = vmatprep.subr.bf16.mxu0 0
    %1613 = vmatpush1.bf16.xpose.msra.mxu0 0
    %1614 = vmatprep.subr.bf16.mxu0 0
    %1615 = vmatpush1.bf16.xpose.msra.mxu0 0
    %1616 = vmatprep.subr.bf16.mxu0 0
    %1617 = vmatpush1.bf16.xpose.msra.mxu0 0
    %1618 = vmatprep.subr.bf16.mxu0 0
    %1619 = vmatpush1.bf16.xpose.msra.mxu0 0
    %1620 = vmatprep.subr.bf16.mxu0 0
    %1621 = vmatpush1.bf16.xpose.msra.mxu0 0
    %1622 = vmatprep.subr.bf16.mxu0 0
    %1623 = vmatpush1.bf16.xpose.msra.mxu0 0
    %1624 = vmatprep.subr.bf16.mxu0 0
    %1625 = vmatpush1.bf16.xpose.msra.mxu0 0
    %1626 = vmatprep.subr.bf16.mxu0 0
    %1627 = vmatpush1.bf16.xpose.msra.mxu0 0
    %1628 = vmatprep.subr.bf16.mxu0 0
    %1629 = vmatpush1.bf16.xpose.msra.mxu0 0
    %1630 = vmatprep.subr.bf16.mxu0 0
    %1631 = vmatpush1.bf16.xpose.msra.mxu0 0
    %1632 = vmatprep.subr.bf16.mxu0 0
    %1633 = vmatpush1.bf16.xpose.msra.mxu0 0
    %1634 = vmatprep.subr.bf16.mxu0 0
    %1635 = vmatpush1.bf16.xpose.msra.mxu0 0
    %1636 = vmatprep.mubr.bf16.mxu0 0
    %1637 = vmatmul.mubr.bf16.gmra.mrb[0].mxu0 %v1599
    %v1638 = vpop.f32.mrb[0].mxu0
    %v1639 = vadd.f32 0.0, %v1638
    %v1640 = vpop.f32.mrb[0].mxu0
    %v1641 = vpop.f32.mrb[0].mxu0
    %v1642 = vpop.f32.mrb[0].mxu0
    %1643 = vdwg.mxu0
    %1644 = vrot.lane.b32.xlu0 %v605, 112
    %v1645 = vpop.permute.xlu0 %1644
    %1646 = vrot.lane.b32.xlu0 %v605, 80
    %v1647 = vpop.permute.xlu0 %1646
    %v1649 = vsel %vm609, %v1645, 0
    %v1652 = vsel %vm609, %v1647, 0
    %1654 = vmatprep.subr.bf16.mxu0 0
    %1655 = vmatpush1.bf16.xpose.msra.mxu0 %v1652
    %1656 = vmatprep.subr.bf16.mxu0 0
    %1657 = vmatpush1.bf16.xpose.msra.mxu0 0
    %1658 = vmatprep.subr.bf16.mxu0 0
    %1659 = vmatpush1.bf16.xpose.msra.mxu0 0
    %1660 = vmatprep.subr.bf16.mxu0 0
    %1661 = vmatpush1.bf16.xpose.msra.mxu0 0
    %1662 = vmatprep.subr.bf16.mxu0 0
    %1663 = vmatpush1.bf16.xpose.msra.mxu0 0
    %1664 = vmatprep.subr.bf16.mxu0 0
    %1665 = vmatpush1.bf16.xpose.msra.mxu0 0
    %1666 = vmatprep.subr.bf16.mxu0 0
    %1667 = vmatpush1.bf16.xpose.msra.mxu0 0
    %1668 = vmatprep.subr.bf16.mxu0 0
    %1669 = vmatpush1.bf16.xpose.msra.mxu0 0
    %1670 = vmatprep.subr.bf16.mxu0 0
    %1671 = vmatpush1.bf16.xpose.msra.mxu0 0
    %1672 = vmatprep.subr.bf16.mxu0 0
    %1673 = vmatpush1.bf16.xpose.msra.mxu0 0
    %1674 = vmatprep.subr.bf16.mxu0 0
    %1675 = vmatpush1.bf16.xpose.msra.mxu0 0
    %1676 = vmatprep.subr.bf16.mxu0 0
    %1677 = vmatpush1.bf16.xpose.msra.mxu0 0
    %1678 = vmatprep.subr.bf16.mxu0 0
    %1679 = vmatpush1.bf16.xpose.msra.mxu0 0
    %1680 = vmatprep.subr.bf16.mxu0 0
    %1681 = vmatpush1.bf16.xpose.msra.mxu0 0
    %1682 = vmatprep.subr.bf16.mxu0 0
    %1683 = vmatpush1.bf16.xpose.msra.mxu0 0
    %1684 = vmatprep.subr.bf16.mxu0 0
    %1685 = vmatpush1.bf16.xpose.msra.mxu0 0
    %1686 = vmatprep.mubr.bf16.mxu0 0
    %1687 = vmatmul.mubr.bf16.gmra.mrb[0].mxu0 %v1649
    %v1688 = vpop.f32.mrb[0].mxu0
    %v1689 = vadd.f32 0.0, %v1688
    %v1690 = vpop.f32.mrb[0].mxu0
    %v1691 = vpop.f32.mrb[0].mxu0
    %v1692 = vpop.f32.mrb[0].mxu0
    %1693 = vdwg.mxu0
    %v1694 = vmul.f32 %v1539, 0.35355338
    %v1695 = vmul.f32 %v1589, 0.35355338
    %v1696 = vmul.f32 %v1639, 0.35355338
    %v1697 = vmul.f32 %v1689, 0.35355338
    %v1698 = vsel %vm807, %v1694, -inf
    %1699 = vmax.xlane.f32.xlu0 %v1698
    %v1700 = vpop.xlane.xlu0 %1699
    %v1701 = vsel %vm807, %v1695, -inf
    %1702 = vmax.xlane.f32.xlu0 %v1701
    %v1703 = vpop.xlane.xlu0 %1702
    %v1704 = vsel %vm807, %v1696, -inf
    %1705 = vmax.xlane.f32.xlu0 %v1704
    %v1706 = vpop.xlane.xlu0 %1705
    %v1707 = vsel %vm807, %v1697, -inf
    %1708 = vmax.xlane.f32.xlu0 %v1707
    %v1709 = vpop.xlane.xlu0 %1708
    %v1710 = vsub.f32 %v1694, %v1700
    %v1711 = vsub.f32 %v1695, %v1703
    %v1712 = vsub.f32 %v1696, %v1706
    %v1713 = vsub.f32 %v1697, %v1709
    %v1714 = vmul.f32 %v1710, 1.442695
    %v1715 = vpow.pop %v1714
    %v1716 = vmul.f32 %v1711, 1.442695
    %v1717 = vpow.pop %v1716
    %v1718 = vmul.f32 %v1712, 1.442695
    %v1719 = vpow.pop %v1718
    %v1720 = vmul.f32 %v1713, 1.442695
    %v1721 = vpow.pop %v1720
    %v1722 = vsel %vm807, %v1715, 0.0
    %1723 = vadd.xlane.f32.xlu0 %v1722
    %v1724 = vpop.xlane.xlu0 %1723
    %v1725 = vsel %vm807, %v1717, 0.0
    %1726 = vadd.xlane.f32.xlu0 %v1725
    %v1727 = vpop.xlane.xlu0 %1726
    %v1728 = vsel %vm807, %v1719, 0.0
    %1729 = vadd.xlane.f32.xlu0 %v1728
    %v1730 = vpop.xlane.xlu0 %1729
    %v1731 = vsel %vm807, %v1721, 0.0
    %1732 = vadd.xlane.f32.xlu0 %v1731
    %v1733 = vpop.xlane.xlu0 %1732
    %v1734 = vrcp.pop %v1724
    %v1735 = vrcp.pop %v1727
    %v1736 = vrcp.pop %v1730
    %v1737 = vrcp.pop %v1733
    %v1738 = vmul.f32 %v1715, %v1734
    %v1739 = vmul.f32 %v1717, %v1735
    %v1740 = vmul.f32 %v1719, %v1736
    %v1741 = vmul.f32 %v1721, %v1737
    %v1742 = vpack.c.bf16 %v1738, %v1738
    %v1743 = vpack.c.bf16 %v1739, %v1739
    %v1744 = vpack.c.bf16 %v1740, %v1740
    %v1745 = vpack.c.bf16 %v1741, %v1741
    %1746 = vrot.lane.b32.xlu0 %v602, 48
    %v1747 = vpop.permute.xlu0 %1746
    %v1749 = vsel %vm858, %v1742, 0
    %v1752 = vsel %vm862, %v1747, 0
    %1754 = vmatprep.subr.bf16.mxu0 0
    %1755 = vmatpush1.bf16.msra.mxu0 %v1752
    %1756 = vmatprep.subr.bf16.mxu0 0
    %1757 = vmatpush1.bf16.msra.mxu0 0
    %1758 = vmatprep.subr.bf16.mxu0 0
    %1759 = vmatpush1.bf16.msra.mxu0 0
    %1760 = vmatprep.subr.bf16.mxu0 0
    %1761 = vmatpush1.bf16.msra.mxu0 0
    %1762 = vmatprep.subr.bf16.mxu0 0
    %1763 = vmatpush1.bf16.msra.mxu0 0
    %1764 = vmatprep.subr.bf16.mxu0 0
    %1765 = vmatpush1.bf16.msra.mxu0 0
    %1766 = vmatprep.subr.bf16.mxu0 0
    %1767 = vmatpush1.bf16.msra.mxu0 0
    %1768 = vmatprep.subr.bf16.mxu0 0
    %1769 = vmatpush1.bf16.msra.mxu0 0
    %1770 = vmatprep.subr.bf16.mxu0 0
    %1771 = vmatpush1.bf16.msra.mxu0 0
    %1772 = vmatprep.subr.bf16.mxu0 0
    %1773 = vmatpush1.bf16.msra.mxu0 0
    %1774 = vmatprep.subr.bf16.mxu0 0
    %1775 = vmatpush1.bf16.msra.mxu0 0
    %1776 = vmatprep.subr.bf16.mxu0 0
    %1777 = vmatpush1.bf16.msra.mxu0 0
    %1778 = vmatprep.subr.bf16.mxu0 0
    %1779 = vmatpush1.bf16.msra.mxu0 0
    %1780 = vmatprep.subr.bf16.mxu0 0
    %1781 = vmatpush1.bf16.msra.mxu0 0
    %1782 = vmatprep.subr.bf16.mxu0 0
    %1783 = vmatpush1.bf16.msra.mxu0 0
    %1784 = vmatprep.subr.bf16.mxu0 0
    %1785 = vmatpush1.bf16.msra.mxu0 0
    %1786 = vmatprep.mubr.bf16.mxu0 0
    %1787 = vmatmul.mubr.bf16.gmra.mrb[0].mxu0 %v1749
    %v1788 = vpop.f32.mrb[0].mxu0
    %v1789 = vadd.f32 0.0, %v1788
    %v1790 = vpop.f32.mrb[0].mxu0
    %v1791 = vpop.f32.mrb[0].mxu0
    %v1792 = vpop.f32.mrb[0].mxu0
    %1793 = vdwg.mxu0
    %1794 = vrot.lane.b32.xlu0 %v603, 48
    %v1795 = vpop.permute.xlu0 %1794
    %v1797 = vsel %vm858, %v1743, 0
    %v1800 = vsel %vm862, %v1795, 0
    %1802 = vmatprep.subr.bf16.mxu0 0
    %1803 = vmatpush1.bf16.msra.mxu0 %v1800
    %1804 = vmatprep.subr.bf16.mxu0 0
    %1805 = vmatpush1.bf16.msra.mxu0 0
    %1806 = vmatprep.subr.bf16.mxu0 0
    %1807 = vmatpush1.bf16.msra.mxu0 0
    %1808 = vmatprep.subr.bf16.mxu0 0
    %1809 = vmatpush1.bf16.msra.mxu0 0
    %1810 = vmatprep.subr.bf16.mxu0 0
    %1811 = vmatpush1.bf16.msra.mxu0 0
    %1812 = vmatprep.subr.bf16.mxu0 0
    %1813 = vmatpush1.bf16.msra.mxu0 0
    %1814 = vmatprep.subr.bf16.mxu0 0
    %1815 = vmatpush1.bf16.msra.mxu0 0
    %1816 = vmatprep.subr.bf16.mxu0 0
    %1817 = vmatpush1.bf16.msra.mxu0 0
    %1818 = vmatprep.subr.bf16.mxu0 0
    %1819 = vmatpush1.bf16.msra.mxu0 0
    %1820 = vmatprep.subr.bf16.mxu0 0
    %1821 = vmatpush1.bf16.msra.mxu0 0
    %1822 = vmatprep.subr.bf16.mxu0 0
    %1823 = vmatpush1.bf16.msra.mxu0 0
    %1824 = vmatprep.subr.bf16.mxu0 0
    %1825 = vmatpush1.bf16.msra.mxu0 0
    %1826 = vmatprep.subr.bf16.mxu0 0
    %1827 = vmatpush1.bf16.msra.mxu0 0
    %1828 = vmatprep.subr.bf16.mxu0 0
    %1829 = vmatpush1.bf16.msra.mxu0 0
    %1830 = vmatprep.subr.bf16.mxu0 0
    %1831 = vmatpush1.bf16.msra.mxu0 0
    %1832 = vmatprep.subr.bf16.mxu0 0
    %1833 = vmatpush1.bf16.msra.mxu0 0
    %1834 = vmatprep.mubr.bf16.mxu0 0
    %1835 = vmatmul.mubr.bf16.gmra.mrb[0].mxu0 %v1797
    %v1836 = vpop.f32.mrb[0].mxu0
    %v1837 = vadd.f32 0.0, %v1836
    %v1838 = vpop.f32.mrb[0].mxu0
    %v1839 = vpop.f32.mrb[0].mxu0
    %v1840 = vpop.f32.mrb[0].mxu0
    %1841 = vdwg.mxu0
    %1842 = vrot.lane.b32.xlu0 %v604, 48
    %v1843 = vpop.permute.xlu0 %1842
    %v1845 = vsel %vm858, %v1744, 0
    %v1848 = vsel %vm862, %v1843, 0
    %1850 = vmatprep.subr.bf16.mxu0 0
    %1851 = vmatpush1.bf16.msra.mxu0 %v1848
    %1852 = vmatprep.subr.bf16.mxu0 0
    %1853 = vmatpush1.bf16.msra.mxu0 0
    %1854 = vmatprep.subr.bf16.mxu0 0
    %1855 = vmatpush1.bf16.msra.mxu0 0
    %1856 = vmatprep.subr.bf16.mxu0 0
    %1857 = vmatpush1.bf16.msra.mxu0 0
    %1858 = vmatprep.subr.bf16.mxu0 0
    %1859 = vmatpush1.bf16.msra.mxu0 0
    %1860 = vmatprep.subr.bf16.mxu0 0
    %1861 = vmatpush1.bf16.msra.mxu0 0
    %1862 = vmatprep.subr.bf16.mxu0 0
    %1863 = vmatpush1.bf16.msra.mxu0 0
    %1864 = vmatprep.subr.bf16.mxu0 0
    %1865 = vmatpush1.bf16.msra.mxu0 0
    %1866 = vmatprep.subr.bf16.mxu0 0
    %1867 = vmatpush1.bf16.msra.mxu0 0
    %1868 = vmatprep.subr.bf16.mxu0 0
    %1869 = vmatpush1.bf16.msra.mxu0 0
    %1870 = vmatprep.subr.bf16.mxu0 0
    %1871 = vmatpush1.bf16.msra.mxu0 0
    %1872 = vmatprep.subr.bf16.mxu0 0
    %1873 = vmatpush1.bf16.msra.mxu0 0
    %1874 = vmatprep.subr.bf16.mxu0 0
    %1875 = vmatpush1.bf16.msra.mxu0 0
    %1876 = vmatprep.subr.bf16.mxu0 0
    %1877 = vmatpush1.bf16.msra.mxu0 0
    %1878 = vmatprep.subr.bf16.mxu0 0
    %1879 = vmatpush1.bf16.msra.mxu0 0
    %1880 = vmatprep.subr.bf16.mxu0 0
    %1881 = vmatpush1.bf16.msra.mxu0 0
    %1882 = vmatprep.mubr.bf16.mxu0 0
    %1883 = vmatmul.mubr.bf16.gmra.mrb[0].mxu0 %v1845
    %v1884 = vpop.f32.mrb[0].mxu0
    %v1885 = vadd.f32 0.0, %v1884
    %v1886 = vpop.f32.mrb[0].mxu0
    %v1887 = vpop.f32.mrb[0].mxu0
    %v1888 = vpop.f32.mrb[0].mxu0
    %1889 = vdwg.mxu0
    %1890 = vrot.lane.b32.xlu0 %v605, 48
    %v1891 = vpop.permute.xlu0 %1890
    %v1893 = vsel %vm858, %v1745, 0
    %v1896 = vsel %vm862, %v1891, 0
    %1898 = vmatprep.subr.bf16.mxu0 0
    %1899 = vmatpush1.bf16.msra.mxu0 %v1896
    %1900 = vmatprep.subr.bf16.mxu0 0
    %1901 = vmatpush1.bf16.msra.mxu0 0
    %1902 = vmatprep.subr.bf16.mxu0 0
    %1903 = vmatpush1.bf16.msra.mxu0 0
    %1904 = vmatprep.subr.bf16.mxu0 0
    %1905 = vmatpush1.bf16.msra.mxu0 0
    %1906 = vmatprep.subr.bf16.mxu0 0
    %1907 = vmatpush1.bf16.msra.mxu0 0
    %1908 = vmatprep.subr.bf16.mxu0 0
    %1909 = vmatpush1.bf16.msra.mxu0 0
    %1910 = vmatprep.subr.bf16.mxu0 0
    %1911 = vmatpush1.bf16.msra.mxu0 0
    %1912 = vmatprep.subr.bf16.mxu0 0
    %1913 = vmatpush1.bf16.msra.mxu0 0
    %1914 = vmatprep.subr.bf16.mxu0 0
    %1915 = vmatpush1.bf16.msra.mxu0 0
    %1916 = vmatprep.subr.bf16.mxu0 0
    %1917 = vmatpush1.bf16.msra.mxu0 0
    %1918 = vmatprep.subr.bf16.mxu0 0
    %1919 = vmatpush1.bf16.msra.mxu0 0
    %1920 = vmatprep.subr.bf16.mxu0 0
    %1921 = vmatpush1.bf16.msra.mxu0 0
    %1922 = vmatprep.subr.bf16.mxu0 0
    %1923 = vmatpush1.bf16.msra.mxu0 0
    %1924 = vmatprep.subr.bf16.mxu0 0
    %1925 = vmatpush1.bf16.msra.mxu0 0
    %1926 = vmatprep.subr.bf16.mxu0 0
    %1927 = vmatpush1.bf16.msra.mxu0 0
    %1928 = vmatprep.subr.bf16.mxu0 0
    %1929 = vmatpush1.bf16.msra.mxu0 0
    %1930 = vmatprep.mubr.bf16.mxu0 0
    %1931 = vmatmul.mubr.bf16.gmra.mrb[0].mxu0 %v1893
    %v1932 = vpop.f32.mrb[0].mxu0
    %v1933 = vadd.f32 0.0, %v1932
    %v1934 = vpop.f32.mrb[0].mxu0
    %v1935 = vpop.f32.mrb[0].mxu0
    %v1936 = vpop.f32.mrb[0].mxu0
    %1937 = vdwg.mxu0
    %1938 = vrot.lane.b32.xlu0 %v602, 104
    %v1939 = vpop.permute.xlu0 %1938
    %1940 = vrot.lane.b32.xlu0 %v602, 72
    %v1941 = vpop.permute.xlu0 %1940
    %v1943 = vsel %vm609, %v1939, 0
    %v1946 = vsel %vm609, %v1941, 0
    %1948 = vmatprep.subr.bf16.mxu0 0
    %1949 = vmatpush1.bf16.xpose.msra.mxu0 %v1946
    %1950 = vmatprep.subr.bf16.mxu0 0
    %1951 = vmatpush1.bf16.xpose.msra.mxu0 0
    %1952 = vmatprep.subr.bf16.mxu0 0
    %1953 = vmatpush1.bf16.xpose.msra.mxu0 0
    %1954 = vmatprep.subr.bf16.mxu0 0
    %1955 = vmatpush1.bf16.xpose.msra.mxu0 0
    %1956 = vmatprep.subr.bf16.mxu0 0
    %1957 = vmatpush1.bf16.xpose.msra.mxu0 0
    %1958 = vmatprep.subr.bf16.mxu0 0
    %1959 = vmatpush1.bf16.xpose.msra.mxu0 0
    %1960 = vmatprep.subr.bf16.mxu0 0
    %1961 = vmatpush1.bf16.xpose.msra.mxu0 0
    %1962 = vmatprep.subr.bf16.mxu0 0
    %1963 = vmatpush1.bf16.xpose.msra.mxu0 0
    %1964 = vmatprep.subr.bf16.mxu0 0
    %1965 = vmatpush1.bf16.xpose.msra.mxu0 0
    %1966 = vmatprep.subr.bf16.mxu0 0
    %1967 = vmatpush1.bf16.xpose.msra.mxu0 0
    %1968 = vmatprep.subr.bf16.mxu0 0
    %1969 = vmatpush1.bf16.xpose.msra.mxu0 0
    %1970 = vmatprep.subr.bf16.mxu0 0
    %1971 = vmatpush1.bf16.xpose.msra.mxu0 0
    %1972 = vmatprep.subr.bf16.mxu0 0
    %1973 = vmatpush1.bf16.xpose.msra.mxu0 0
    %1974 = vmatprep.subr.bf16.mxu0 0
    %1975 = vmatpush1.bf16.xpose.msra.mxu0 0
    %1976 = vmatprep.subr.bf16.mxu0 0
    %1977 = vmatpush1.bf16.xpose.msra.mxu0 0
    %1978 = vmatprep.subr.bf16.mxu0 0
    %1979 = vmatpush1.bf16.xpose.msra.mxu0 0
    %1980 = vmatprep.mubr.bf16.mxu0 0
    %1981 = vmatmul.mubr.bf16.gmra.mrb[0].mxu0 %v1943
    %v1982 = vpop.f32.mrb[0].mxu0
    %v1983 = vadd.f32 0.0, %v1982
    %v1984 = vpop.f32.mrb[0].mxu0
    %v1985 = vpop.f32.mrb[0].mxu0
    %v1986 = vpop.f32.mrb[0].mxu0
    %1987 = vdwg.mxu0
    %1988 = vrot.lane.b32.xlu0 %v603, 104
    %v1989 = vpop.permute.xlu0 %1988
    %1990 = vrot.lane.b32.xlu0 %v603, 72
    %v1991 = vpop.permute.xlu0 %1990
    %v1993 = vsel %vm609, %v1989, 0
    %v1996 = vsel %vm609, %v1991, 0
    %1998 = vmatprep.subr.bf16.mxu0 0
    %1999 = vmatpush1.bf16.xpose.msra.mxu0 %v1996
    %2000 = vmatprep.subr.bf16.mxu0 0
    %2001 = vmatpush1.bf16.xpose.msra.mxu0 0
    %2002 = vmatprep.subr.bf16.mxu0 0
    %2003 = vmatpush1.bf16.xpose.msra.mxu0 0
    %2004 = vmatprep.subr.bf16.mxu0 0
    %2005 = vmatpush1.bf16.xpose.msra.mxu0 0
    %2006 = vmatprep.subr.bf16.mxu0 0
    %2007 = vmatpush1.bf16.xpose.msra.mxu0 0
    %2008 = vmatprep.subr.bf16.mxu0 0
    %2009 = vmatpush1.bf16.xpose.msra.mxu0 0
    %2010 = vmatprep.subr.bf16.mxu0 0
    %2011 = vmatpush1.bf16.xpose.msra.mxu0 0
    %2012 = vmatprep.subr.bf16.mxu0 0
    %2013 = vmatpush1.bf16.xpose.msra.mxu0 0
    %2014 = vmatprep.subr.bf16.mxu0 0
    %2015 = vmatpush1.bf16.xpose.msra.mxu0 0
    %2016 = vmatprep.subr.bf16.mxu0 0
    %2017 = vmatpush1.bf16.xpose.msra.mxu0 0
    %2018 = vmatprep.subr.bf16.mxu0 0
    %2019 = vmatpush1.bf16.xpose.msra.mxu0 0
    %2020 = vmatprep.subr.bf16.mxu0 0
    %2021 = vmatpush1.bf16.xpose.msra.mxu0 0
    %2022 = vmatprep.subr.bf16.mxu0 0
    %2023 = vmatpush1.bf16.xpose.msra.mxu0 0
    %2024 = vmatprep.subr.bf16.mxu0 0
    %2025 = vmatpush1.bf16.xpose.msra.mxu0 0
    %2026 = vmatprep.subr.bf16.mxu0 0
    %2027 = vmatpush1.bf16.xpose.msra.mxu0 0
    %2028 = vmatprep.subr.bf16.mxu0 0
    %2029 = vmatpush1.bf16.xpose.msra.mxu0 0
    %2030 = vmatprep.mubr.bf16.mxu0 0
    %2031 = vmatmul.mubr.bf16.gmra.mrb[0].mxu0 %v1993
    %v2032 = vpop.f32.mrb[0].mxu0
    %v2033 = vadd.f32 0.0, %v2032
    %v2034 = vpop.f32.mrb[0].mxu0
    %v2035 = vpop.f32.mrb[0].mxu0
    %v2036 = vpop.f32.mrb[0].mxu0
    %2037 = vdwg.mxu0
    %2038 = vrot.lane.b32.xlu0 %v604, 104
    %v2039 = vpop.permute.xlu0 %2038
    %2040 = vrot.lane.b32.xlu0 %v604, 72
    %v2041 = vpop.permute.xlu0 %2040
    %v2043 = vsel %vm609, %v2039, 0
    %v2046 = vsel %vm609, %v2041, 0
    %2048 = vmatprep.subr.bf16.mxu0 0
    %2049 = vmatpush1.bf16.xpose.msra.mxu0 %v2046
    %2050 = vmatprep.subr.bf16.mxu0 0
    %2051 = vmatpush1.bf16.xpose.msra.mxu0 0
    %2052 = vmatprep.subr.bf16.mxu0 0
    %2053 = vmatpush1.bf16.xpose.msra.mxu0 0
    %2054 = vmatprep.subr.bf16.mxu0 0
    %2055 = vmatpush1.bf16.xpose.msra.mxu0 0
    %2056 = vmatprep.subr.bf16.mxu0 0
    %2057 = vmatpush1.bf16.xpose.msra.mxu0 0
    %2058 = vmatprep.subr.bf16.mxu0 0
    %2059 = vmatpush1.bf16.xpose.msra.mxu0 0
    %2060 = vmatprep.subr.bf16.mxu0 0
    %2061 = vmatpush1.bf16.xpose.msra.mxu0 0
    %2062 = vmatprep.subr.bf16.mxu0 0
    %2063 = vmatpush1.bf16.xpose.msra.mxu0 0
    %2064 = vmatprep.subr.bf16.mxu0 0
    %2065 = vmatpush1.bf16.xpose.msra.mxu0 0
    %2066 = vmatprep.subr.bf16.mxu0 0
    %2067 = vmatpush1.bf16.xpose.msra.mxu0 0
    %2068 = vmatprep.subr.bf16.mxu0 0
    %2069 = vmatpush1.bf16.xpose.msra.mxu0 0
    %2070 = vmatprep.subr.bf16.mxu0 0
    %2071 = vmatpush1.bf16.xpose.msra.mxu0 0
    %2072 = vmatprep.subr.bf16.mxu0 0
    %2073 = vmatpush1.bf16.xpose.msra.mxu0 0
    %2074 = vmatprep.subr.bf16.mxu0 0
    %2075 = vmatpush1.bf16.xpose.msra.mxu0 0
    %2076 = vmatprep.subr.bf16.mxu0 0
    %2077 = vmatpush1.bf16.xpose.msra.mxu0 0
    %2078 = vmatprep.subr.bf16.mxu0 0
    %2079 = vmatpush1.bf16.xpose.msra.mxu0 0
    %2080 = vmatprep.mubr.bf16.mxu0 0
    %2081 = vmatmul.mubr.bf16.gmra.mrb[0].mxu0 %v2043
    %v2082 = vpop.f32.mrb[0].mxu0
    %v2083 = vadd.f32 0.0, %v2082
    %v2084 = vpop.f32.mrb[0].mxu0
    %v2085 = vpop.f32.mrb[0].mxu0
    %v2086 = vpop.f32.mrb[0].mxu0
    %2087 = vdwg.mxu0
    %2088 = vrot.lane.b32.xlu0 %v605, 104
    %v2089 = vpop.permute.xlu0 %2088
    %2090 = vrot.lane.b32.xlu0 %v605, 72
    %v2091 = vpop.permute.xlu0 %2090
    %v2093 = vsel %vm609, %v2089, 0
    %v2096 = vsel %vm609, %v2091, 0
    %2098 = vmatprep.subr.bf16.mxu0 0
    %2099 = vmatpush1.bf16.xpose.msra.mxu0 %v2096
    %2100 = vmatprep.subr.bf16.mxu0 0
    %2101 = vmatpush1.bf16.xpose.msra.mxu0 0
    %2102 = vmatprep.subr.bf16.mxu0 0
    %2103 = vmatpush1.bf16.xpose.msra.mxu0 0
    %2104 = vmatprep.subr.bf16.mxu0 0
    %2105 = vmatpush1.bf16.xpose.msra.mxu0 0
    %2106 = vmatprep.subr.bf16.mxu0 0
    %2107 = vmatpush1.bf16.xpose.msra.mxu0 0
    %2108 = vmatprep.subr.bf16.mxu0 0
    %2109 = vmatpush1.bf16.xpose.msra.mxu0 0
    %2110 = vmatprep.subr.bf16.mxu0 0
    %2111 = vmatpush1.bf16.xpose.msra.mxu0 0
    %2112 = vmatprep.subr.bf16.mxu0 0
    %2113 = vmatpush1.bf16.xpose.msra.mxu0 0
    %2114 = vmatprep.subr.bf16.mxu0 0
    %2115 = vmatpush1.bf16.xpose.msra.mxu0 0
    %2116 = vmatprep.subr.bf16.mxu0 0
    %2117 = vmatpush1.bf16.xpose.msra.mxu0 0
    %2118 = vmatprep.subr.bf16.mxu0 0
    %2119 = vmatpush1.bf16.xpose.msra.mxu0 0
    %2120 = vmatprep.subr.bf16.mxu0 0
    %2121 = vmatpush1.bf16.xpose.msra.mxu0 0
    %2122 = vmatprep.subr.bf16.mxu0 0
    %2123 = vmatpush1.bf16.xpose.msra.mxu0 0
    %2124 = vmatprep.subr.bf16.mxu0 0
    %2125 = vmatpush1.bf16.xpose.msra.mxu0 0
    %2126 = vmatprep.subr.bf16.mxu0 0
    %2127 = vmatpush1.bf16.xpose.msra.mxu0 0
    %2128 = vmatprep.subr.bf16.mxu0 0
    %2129 = vmatpush1.bf16.xpose.msra.mxu0 0
    %2130 = vmatprep.mubr.bf16.mxu0 0
    %2131 = vmatmul.mubr.bf16.gmra.mrb[0].mxu0 %v2093
    %v2132 = vpop.f32.mrb[0].mxu0
    %v2133 = vadd.f32 0.0, %v2132
    %v2134 = vpop.f32.mrb[0].mxu0
    %v2135 = vpop.f32.mrb[0].mxu0
    %v2136 = vpop.f32.mrb[0].mxu0
    %2137 = vdwg.mxu0
    %v2138 = vmul.f32 %v1983, 0.35355338
    %v2139 = vmul.f32 %v2033, 0.35355338
    %v2140 = vmul.f32 %v2083, 0.35355338
    %v2141 = vmul.f32 %v2133, 0.35355338
    %v2142 = vsel %vm807, %v2138, -inf
    %2143 = vmax.xlane.f32.xlu0 %v2142
    %v2144 = vpop.xlane.xlu0 %2143
    %v2145 = vsel %vm807, %v2139, -inf
    %2146 = vmax.xlane.f32.xlu0 %v2145
    %v2147 = vpop.xlane.xlu0 %2146
    %v2148 = vsel %vm807, %v2140, -inf
    %2149 = vmax.xlane.f32.xlu0 %v2148
    %v2150 = vpop.xlane.xlu0 %2149
    %v2151 = vsel %vm807, %v2141, -inf
    %2152 = vmax.xlane.f32.xlu0 %v2151
    %v2153 = vpop.xlane.xlu0 %2152
    %v2154 = vsub.f32 %v2138, %v2144
    %v2155 = vsub.f32 %v2139, %v2147
    %v2156 = vsub.f32 %v2140, %v2150
    %v2157 = vsub.f32 %v2141, %v2153
    %v2158 = vmul.f32 %v2154, 1.442695
    %v2159 = vpow.pop %v2158
    %v2160 = vmul.f32 %v2155, 1.442695
    %v2161 = vpow.pop %v2160
    %v2162 = vmul.f32 %v2156, 1.442695
    %v2163 = vpow.pop %v2162
    %v2164 = vmul.f32 %v2157, 1.442695
    %v2165 = vpow.pop %v2164
    %v2166 = vsel %vm807, %v2159, 0.0
    %2167 = vadd.xlane.f32.xlu0 %v2166
    %v2168 = vpop.xlane.xlu0 %2167
    %v2169 = vsel %vm807, %v2161, 0.0
    %2170 = vadd.xlane.f32.xlu0 %v2169
    %v2171 = vpop.xlane.xlu0 %2170
    %v2172 = vsel %vm807, %v2163, 0.0
    %2173 = vadd.xlane.f32.xlu0 %v2172
    %v2174 = vpop.xlane.xlu0 %2173
    %v2175 = vsel %vm807, %v2165, 0.0
    %2176 = vadd.xlane.f32.xlu0 %v2175
    %v2177 = vpop.xlane.xlu0 %2176
    %v2178 = vrcp.pop %v2168
    %v2179 = vrcp.pop %v2171
    %v2180 = vrcp.pop %v2174
    %v2181 = vrcp.pop %v2177
    %v2182 = vmul.f32 %v2159, %v2178
    %v2183 = vmul.f32 %v2161, %v2179
    %v2184 = vmul.f32 %v2163, %v2180
    %v2185 = vmul.f32 %v2165, %v2181
    %v2186 = vpack.c.bf16 %v2182, %v2182
    %v2187 = vpack.c.bf16 %v2183, %v2183
    %v2188 = vpack.c.bf16 %v2184, %v2184
    %v2189 = vpack.c.bf16 %v2185, %v2185
    %2190 = vrot.lane.b32.xlu0 %v602, 40
    %v2191 = vpop.permute.xlu0 %2190
    %v2193 = vsel %vm858, %v2186, 0
    %v2196 = vsel %vm862, %v2191, 0
    %2198 = vmatprep.subr.bf16.mxu0 0
    %2199 = vmatpush1.bf16.msra.mxu0 %v2196
    %2200 = vmatprep.subr.bf16.mxu0 0
    %2201 = vmatpush1.bf16.msra.mxu0 0
    %2202 = vmatprep.subr.bf16.mxu0 0
    %2203 = vmatpush1.bf16.msra.mxu0 0
    %2204 = vmatprep.subr.bf16.mxu0 0
    %2205 = vmatpush1.bf16.msra.mxu0 0
    %2206 = vmatprep.subr.bf16.mxu0 0
    %2207 = vmatpush1.bf16.msra.mxu0 0
    %2208 = vmatprep.subr.bf16.mxu0 0
    %2209 = vmatpush1.bf16.msra.mxu0 0
    %2210 = vmatprep.subr.bf16.mxu0 0
    %2211 = vmatpush1.bf16.msra.mxu0 0
    %2212 = vmatprep.subr.bf16.mxu0 0
    %2213 = vmatpush1.bf16.msra.mxu0 0
    %2214 = vmatprep.subr.bf16.mxu0 0
    %2215 = vmatpush1.bf16.msra.mxu0 0
    %2216 = vmatprep.subr.bf16.mxu0 0
    %2217 = vmatpush1.bf16.msra.mxu0 0
    %2218 = vmatprep.subr.bf16.mxu0 0
    %2219 = vmatpush1.bf16.msra.mxu0 0
    %2220 = vmatprep.subr.bf16.mxu0 0
    %2221 = vmatpush1.bf16.msra.mxu0 0
    %2222 = vmatprep.subr.bf16.mxu0 0
    %2223 = vmatpush1.bf16.msra.mxu0 0
    %2224 = vmatprep.subr.bf16.mxu0 0
    %2225 = vmatpush1.bf16.msra.mxu0 0
    %2226 = vmatprep.subr.bf16.mxu0 0
    %2227 = vmatpush1.bf16.msra.mxu0 0
    %2228 = vmatprep.subr.bf16.mxu0 0
    %2229 = vmatpush1.bf16.msra.mxu0 0
    %2230 = vmatprep.mubr.bf16.mxu0 0
    %2231 = vmatmul.mubr.bf16.gmra.mrb[0].mxu0 %v2193
    %v2232 = vpop.f32.mrb[0].mxu0
    %v2233 = vadd.f32 0.0, %v2232
    %v2234 = vpop.f32.mrb[0].mxu0
    %v2235 = vpop.f32.mrb[0].mxu0
    %v2236 = vpop.f32.mrb[0].mxu0
    %2237 = vdwg.mxu0
    %2238 = vrot.lane.b32.xlu0 %v603, 40
    %v2239 = vpop.permute.xlu0 %2238
    %v2241 = vsel %vm858, %v2187, 0
    %v2244 = vsel %vm862, %v2239, 0
    %2246 = vmatprep.subr.bf16.mxu0 0
    %2247 = vmatpush1.bf16.msra.mxu0 %v2244
    %2248 = vmatprep.subr.bf16.mxu0 0
    %2249 = vmatpush1.bf16.msra.mxu0 0
    %2250 = vmatprep.subr.bf16.mxu0 0
    %2251 = vmatpush1.bf16.msra.mxu0 0
    %2252 = vmatprep.subr.bf16.mxu0 0
    %2253 = vmatpush1.bf16.msra.mxu0 0
    %2254 = vmatprep.subr.bf16.mxu0 0
    %2255 = vmatpush1.bf16.msra.mxu0 0
    %2256 = vmatprep.subr.bf16.mxu0 0
    %2257 = vmatpush1.bf16.msra.mxu0 0
    %2258 = vmatprep.subr.bf16.mxu0 0
    %2259 = vmatpush1.bf16.msra.mxu0 0
    %2260 = vmatprep.subr.bf16.mxu0 0
    %2261 = vmatpush1.bf16.msra.mxu0 0
    %2262 = vmatprep.subr.bf16.mxu0 0
    %2263 = vmatpush1.bf16.msra.mxu0 0
    %2264 = vmatprep.subr.bf16.mxu0 0
    %2265 = vmatpush1.bf16.msra.mxu0 0
    %2266 = vmatprep.subr.bf16.mxu0 0
    %2267 = vmatpush1.bf16.msra.mxu0 0
    %2268 = vmatprep.subr.bf16.mxu0 0
    %2269 = vmatpush1.bf16.msra.mxu0 0
    %2270 = vmatprep.subr.bf16.mxu0 0
    %2271 = vmatpush1.bf16.msra.mxu0 0
    %2272 = vmatprep.subr.bf16.mxu0 0
    %2273 = vmatpush1.bf16.msra.mxu0 0
    %2274 = vmatprep.subr.bf16.mxu0 0
    %2275 = vmatpush1.bf16.msra.mxu0 0
    %2276 = vmatprep.subr.bf16.mxu0 0
    %2277 = vmatpush1.bf16.msra.mxu0 0
    %2278 = vmatprep.mubr.bf16.mxu0 0
    %2279 = vmatmul.mubr.bf16.gmra.mrb[0].mxu0 %v2241
    %v2280 = vpop.f32.mrb[0].mxu0
    %v2281 = vadd.f32 0.0, %v2280
    %v2282 = vpop.f32.mrb[0].mxu0
    %v2283 = vpop.f32.mrb[0].mxu0
    %v2284 = vpop.f32.mrb[0].mxu0
    %2285 = vdwg.mxu0
    %2286 = vrot.lane.b32.xlu0 %v604, 40
    %v2287 = vpop.permute.xlu0 %2286
    %v2289 = vsel %vm858, %v2188, 0
    %v2292 = vsel %vm862, %v2287, 0
    %2294 = vmatprep.subr.bf16.mxu0 0
    %2295 = vmatpush1.bf16.msra.mxu0 %v2292
    %2296 = vmatprep.subr.bf16.mxu0 0
    %2297 = vmatpush1.bf16.msra.mxu0 0
    %2298 = vmatprep.subr.bf16.mxu0 0
    %2299 = vmatpush1.bf16.msra.mxu0 0
    %2300 = vmatprep.subr.bf16.mxu0 0
    %2301 = vmatpush1.bf16.msra.mxu0 0
    %2302 = vmatprep.subr.bf16.mxu0 0
    %2303 = vmatpush1.bf16.msra.mxu0 0
    %2304 = vmatprep.subr.bf16.mxu0 0
    %2305 = vmatpush1.bf16.msra.mxu0 0
    %2306 = vmatprep.subr.bf16.mxu0 0
    %2307 = vmatpush1.bf16.msra.mxu0 0
    %2308 = vmatprep.subr.bf16.mxu0 0
    %2309 = vmatpush1.bf16.msra.mxu0 0
    %2310 = vmatprep.subr.bf16.mxu0 0
    %2311 = vmatpush1.bf16.msra.mxu0 0
    %2312 = vmatprep.subr.bf16.mxu0 0
    %2313 = vmatpush1.bf16.msra.mxu0 0
    %2314 = vmatprep.subr.bf16.mxu0 0
    %2315 = vmatpush1.bf16.msra.mxu0 0
    %2316 = vmatprep.subr.bf16.mxu0 0
    %2317 = vmatpush1.bf16.msra.mxu0 0
    %2318 = vmatprep.subr.bf16.mxu0 0
    %2319 = vmatpush1.bf16.msra.mxu0 0
    %2320 = vmatprep.subr.bf16.mxu0 0
    %2321 = vmatpush1.bf16.msra.mxu0 0
    %2322 = vmatprep.subr.bf16.mxu0 0
    %2323 = vmatpush1.bf16.msra.mxu0 0
    %2324 = vmatprep.subr.bf16.mxu0 0
    %2325 = vmatpush1.bf16.msra.mxu0 0
    %2326 = vmatprep.mubr.bf16.mxu0 0
    %2327 = vmatmul.mubr.bf16.gmra.mrb[0].mxu0 %v2289
    %v2328 = vpop.f32.mrb[0].mxu0
    %v2329 = vadd.f32 0.0, %v2328
    %v2330 = vpop.f32.mrb[0].mxu0
    %v2331 = vpop.f32.mrb[0].mxu0
    %v2332 = vpop.f32.mrb[0].mxu0
    %2333 = vdwg.mxu0
    %2334 = vrot.lane.b32.xlu0 %v605, 40
    %v2335 = vpop.permute.xlu0 %2334
    %v2337 = vsel %vm858, %v2189, 0
    %v2340 = vsel %vm862, %v2335, 0
    %2342 = vmatprep.subr.bf16.mxu0 0
    %2343 = vmatpush1.bf16.msra.mxu0 %v2340
    %2344 = vmatprep.subr.bf16.mxu0 0
    %2345 = vmatpush1.bf16.msra.mxu0 0
    %2346 = vmatprep.subr.bf16.mxu0 0
    %2347 = vmatpush1.bf16.msra.mxu0 0
    %2348 = vmatprep.subr.bf16.mxu0 0
    %2349 = vmatpush1.bf16.msra.mxu0 0
    %2350 = vmatprep.subr.bf16.mxu0 0
    %2351 = vmatpush1.bf16.msra.mxu0 0
    %2352 = vmatprep.subr.bf16.mxu0 0
    %2353 = vmatpush1.bf16.msra.mxu0 0
    %2354 = vmatprep.subr.bf16.mxu0 0
    %2355 = vmatpush1.bf16.msra.mxu0 0
    %2356 = vmatprep.subr.bf16.mxu0 0
    %2357 = vmatpush1.bf16.msra.mxu0 0
    %2358 = vmatprep.subr.bf16.mxu0 0
    %2359 = vmatpush1.bf16.msra.mxu0 0
    %2360 = vmatprep.subr.bf16.mxu0 0
    %2361 = vmatpush1.bf16.msra.mxu0 0
    %2362 = vmatprep.subr.bf16.mxu0 0
    %2363 = vmatpush1.bf16.msra.mxu0 0
    %2364 = vmatprep.subr.bf16.mxu0 0
    %2365 = vmatpush1.bf16.msra.mxu0 0
    %2366 = vmatprep.subr.bf16.mxu0 0
    %2367 = vmatpush1.bf16.msra.mxu0 0
    %2368 = vmatprep.subr.bf16.mxu0 0
    %2369 = vmatpush1.bf16.msra.mxu0 0
    %2370 = vmatprep.subr.bf16.mxu0 0
    %2371 = vmatpush1.bf16.msra.mxu0 0
    %2372 = vmatprep.subr.bf16.mxu0 0
    %2373 = vmatpush1.bf16.msra.mxu0 0
    %2374 = vmatprep.mubr.bf16.mxu0 0
    %2375 = vmatmul.mubr.bf16.gmra.mrb[0].mxu0 %v2337
    %v2376 = vpop.f32.mrb[0].mxu0
    %v2377 = vadd.f32 0.0, %v2376
    %v2378 = vpop.f32.mrb[0].mxu0
    %v2379 = vpop.f32.mrb[0].mxu0
    %v2380 = vpop.f32.mrb[0].mxu0
    %2381 = vdwg.mxu0
    %2386 = vrot.lane.b32.xlu0 %v1345, 8
    %v2387 = vpop.permute.xlu0 %2386
    %2388 = vrot.lane.b32.xlu0 %v1393, 8
    %v2389 = vpop.permute.xlu0 %2388
    %2390 = vrot.lane.b32.xlu0 %v1441, 8
    %v2391 = vpop.permute.xlu0 %2390
    %2392 = vrot.lane.b32.xlu0 %v1489, 8
    %v2393 = vpop.permute.xlu0 %2392
    %2402 = vrot.lane.b32.xlu0 %v1789, 16
    %v2403 = vpop.permute.xlu0 %2402
    %2404 = vrot.lane.b32.xlu0 %v1837, 16
    %v2405 = vpop.permute.xlu0 %2404
    %2406 = vrot.lane.b32.xlu0 %v1885, 16
    %v2407 = vpop.permute.xlu0 %2406
    %2408 = vrot.lane.b32.xlu0 %v1933, 16
    %v2409 = vpop.permute.xlu0 %2408
    %2418 = vrot.lane.b32.xlu0 %v2233, 24
    %v2419 = vpop.permute.xlu0 %2418
    %2420 = vrot.lane.b32.xlu0 %v2281, 24
    %v2421 = vpop.permute.xlu0 %2420
    %2422 = vrot.lane.b32.xlu0 %v2329, 24
    %v2423 = vpop.permute.xlu0 %2422
    %2424 = vrot.lane.b32.xlu0 %v2377, 24
    %v2425 = vpop.permute.xlu0 %2424
    %v2430 = vsel %vm609, %v901, %v2387
    %v2431 = vsel %vm609, %v949, %v2389
    %v2432 = vsel %vm609, %v997, %v2391
    %v2433 = vsel %vm609, %v1045, %v2393
    %vm2434 = vcmask 130048
    %v2435 = vsel %vm2434, %v2430, %v2403
    %v2436 = vsel %vm2434, %v2431, %v2405
    %v2437 = vsel %vm2434, %v2432, %v2407
    %v2438 = vsel %vm2434, %v2433, %v2409
    %vm2439 = vcmask 195584
    %v2440 = vsel %vm2439, %v2435, %v2419
    %v2441 = vsel %vm2439, %v2436, %v2421
    %v2442 = vsel %vm2439, %v2437, %v2423
    %v2443 = vsel %vm2439, %v2438, %v2425
    %v2448 = vcombine.low %v2440, %v2441
    %v2449 = vcombine.low %v2442, %v2443
    %v2451 = vunpack.c.l.s4 1983009808
    %v2452 = vunpack.c.0.s8 %v2451
    %v2453 = vlaneseq
    %v2454 = vshrl.u32 %v2453, 7
    %v2455 = vsub.s32 %v2452, %v2454
    %v2456 = vrot.slane %v2448, %v2455
    %v2458 = vunpack.c.l.s4 1983009808
    %v2459 = vunpack.c.0.s8 %v2458
    %v2460 = vlaneseq
    %v2461 = vshrl.u32 %v2460, 7
    %v2462 = vsub.s32 %v2459, %v2461
    %v2463 = vrot.slane %v2449, %v2462
    %v2464 = vcombine.low %v2456, %v2463
    %v2466 = vpack.c.bf16 %v2464, %v2464
    %v2468 = vlaneseq
    %v2469 = vshrl.u32 %v2468, 7
    %v2470 = vsub.s32 0, %v2469
    %v2471 = vrot.slane %v71, %v2470
    %v2477 = vunpack.c.l.b16 %v67
    %v2478 = vunpack.c.l.b16 %v68
    %v2479 = vunpack.c.l.b16 %v69
    %v2480 = vunpack.c.l.b16 %v70
    %v2481 = vpack.c.b16 %v2478, %v2477
    %v2482 = vpack.c.b16 %v2480, %v2479
    %v2486 = vsel %vm536, %v2466, 0
    %2488 = vmatprep.subr.bf16.mxu0 0
    %2489 = vmatpush1.bf16.msra.mxu0 %v2481
    %2490 = vmatprep.subr.bf16.mxu0 0
    %2491 = vmatpush1.bf16.msra.mxu0 %v2482
    %2492 = vmatprep.subr.bf16.mxu0 0
    %2493 = vmatpush1.bf16.msra.mxu0 0
    %2494 = vmatprep.subr.bf16.mxu0 0
    %2495 = vmatpush1.bf16.msra.mxu0 0
    %2496 = vmatprep.subr.bf16.mxu0 0
    %2497 = vmatpush1.bf16.msra.mxu0 0
    %2498 = vmatprep.subr.bf16.mxu0 0
    %2499 = vmatpush1.bf16.msra.mxu0 0
    %2500 = vmatprep.subr.bf16.mxu0 0
    %2501 = vmatpush1.bf16.msra.mxu0 0
    %2502 = vmatprep.subr.bf16.mxu0 0
    %2503 = vmatpush1.bf16.msra.mxu0 0
    %2504 = vmatprep.subr.bf16.mxu0 0
    %2505 = vmatpush1.bf16.msra.mxu0 0
    %2506 = vmatprep.subr.bf16.mxu0 0
    %2507 = vmatpush1.bf16.msra.mxu0 0
    %2508 = vmatprep.subr.bf16.mxu0 0
    %2509 = vmatpush1.bf16.msra.mxu0 0
    %2510 = vmatprep.subr.bf16.mxu0 0
    %2511 = vmatpush1.bf16.msra.mxu0 0
    %2512 = vmatprep.subr.bf16.mxu0 0
    %2513 = vmatpush1.bf16.msra.mxu0 0
    %2514 = vmatprep.subr.bf16.mxu0 0
    %2515 = vmatpush1.bf16.msra.mxu0 0
    %2516 = vmatprep.subr.bf16.mxu0 0
    %2517 = vmatpush1.bf16.msra.mxu0 0
    %2518 = vmatprep.subr.bf16.mxu0 0
    %2519 = vmatpush1.bf16.msra.mxu0 0
    %2520 = vmatprep.mubr.bf16.mxu0 0
    %2521 = vmatmul.mubr.bf16.gmra.mrb[0].mxu0 %v2486
    %v2522 = vpop.f32.mrb[0].mxu0
    %v2523 = vadd.f32 %v2471, %v2522
    %v2524 = vpop.f32.mrb[0].mxu0
    %v2525 = vpop.f32.mrb[0].mxu0
    %v2526 = vpop.f32.mrb[0].mxu0
    %2527 = vdwg.mxu0
    %v2528 = vadd.f32 %v516, %v2523
    %v2529 = vsel %vm536, %v2528, 0.0
    %2530 = vadd.xlane.f32.xlu0 %v2529
    %v2531 = vpop.xlane.xlu0 %2530
    %v2532 = vmul.f32 %v2531, %v377
    %v2533 = vsub.f32 %v2528, %v2532
    %v2534 = vmul.f32 %v2533, %v2533
    %v2535 = vsel %vm536, %v2534, 0.0
    %2536 = vadd.xlane.f32.xlu0 %v2535
    %v2537 = vpop.xlane.xlu0 %2536
    %v2538 = vmul.f32 %v2537, %v377
    %v2539 = vadd.f32 %v2538, 1e-05
    %v2540 = vrsqrt.pop %v2539
    %v2541 = vmul.f32 %v2533, %v2540
    %v2543 = vlaneseq
    %v2544 = vshrl.u32 %v2543, 7
    %v2545 = vsub.s32 0, %v2544
    %v2546 = vrot.slane %v72, %v2545
    %v2548 = vmul.f32 %v2541, %v2546
    %v2550 = vlaneseq
    %v2551 = vshrl.u32 %v2550, 7
    %v2552 = vsub.s32 0, %v2551
    %v2553 = vrot.slane %v73, %v2552
    %v2555 = vadd.f32 %v2548, %v2553
    %v2556 = vsel %vm536, %v2555, 0.0
    %2557 = vadd.xlane.f32.xlu0 %v2556
    %v2558 = vpop.xlane.xlu0 %2557
    %v2559 = vmul.f32 %v2558, %v377
    %v2560 = vsub.f32 %v2555, %v2559
    %v2561 = vmul.f32 %v2560, %v2560
    %v2562 = vsel %vm536, %v2561, 0.0
    %2563 = vadd.xlane.f32.xlu0 %v2562
    %v2564 = vpop.xlane.xlu0 %2563
    %v2565 = vmul.f32 %v2564, %v377
    %v2566 = vadd.f32 %v2565, 1e-05
    %v2567 = vrsqrt.pop %v2566
    %v2568 = vmul.f32 %v2560, %v2567
    %v2570 = vlaneseq
    %v2571 = vshrl.u32 %v2570, 7
    %v2572 = vsub.s32 0, %v2571
    %v2573 = vrot.slane %v74, %v2572
    %v2575 = vmul.f32 %v2568, %v2573
    %v2577 = vlaneseq
    %v2578 = vshrl.u32 %v2577, 7
    %v2579 = vsub.s32 0, %v2578
    %v2580 = vrot.slane %v75, %v2579
    %v2582 = vadd.f32 %v2575, %v2580
    %v2583 = vmul.f32 %v2582, 0.5
    %v2584 = vmul.f32 %v2582, 0.70710677
    %vm2585 = vcmp.ge.f32.partialorder %v2584, 0.0
    %v2586 = vsel %vm2585, 1.0, -1.0
    %v2587 = vand.u32 2147483647, %v2584
    %v2588 = vmul.f32 %v2587, 0.3275911
    %v2589 = vadd.f32 %v2588, 1.0
    %v2590 = vrcp.pop %v2589
    %v2591 = vmul.f32 1.0, %v2590
    %v2592 = vmul.f32 %v2591, 1.0614054
    %v2593 = vadd.f32 %v2592, -1.4531521
    %v2594 = vmul.f32 %v2593, %v2591
    %v2595 = vadd.f32 %v2594, 1.4214138
    %v2596 = vmul.f32 %v2595, %v2591
    %v2597 = vadd.f32 %v2596, -0.28449672
    %v2598 = vmul.f32 %v2597, %v2591
    %v2599 = vadd.f32 %v2598, 0.2548296
    %v2600 = vmul.f32 %v2599, %v2591
    %v2601 = vmul.f32 %v2587, %v2587
    %v2602 = vsub.f32 0.0, %v2601
    %v2603 = vmul.f32 %v2602, 1.442695
    %v2604 = vpow.pop %v2603
    %v2605 = vmul.f32 %v2600, %v2604
    %v2606 = vsub.f32 1.0, %v2605
    %v2607 = vmul.f32 %v2586, %v2606
    %v2608 = vadd.f32 %v2607, 1.0
    %v2609 = vmul.f32 %v2583, %v2608
    %v2610 = vpack.c.bf16 %v2609, %v2609
    %v2612 = vlaneseq
    %v2613 = vshrl.u32 %v2612, 7
    %v2614 = vsub.s32 0, %v2613
    %v2615 = vrot.slane %v80, %v2614
    %v2621 = vunpack.c.l.b16 %v76
    %v2622 = vunpack.c.l.b16 %v77
    %v2623 = vunpack.c.l.b16 %v78
    %v2624 = vunpack.c.l.b16 %v79
    %v2625 = vpack.c.b16 %v2622, %v2621
    %v2626 = vpack.c.b16 %v2624, %v2623
    %v2630 = vsel %vm536, %v2610, 0
    %2632 = vmatprep.subr.bf16.mxu0 0
    %2633 = vmatpush1.bf16.msra.mxu0 %v2625
    %2634 = vmatprep.subr.bf16.mxu0 0
    %2635 = vmatpush1.bf16.msra.mxu0 %v2626
    %2636 = vmatprep.subr.bf16.mxu0 0
    %2637 = vmatpush1.bf16.msra.mxu0 0
    %2638 = vmatprep.subr.bf16.mxu0 0
    %2639 = vmatpush1.bf16.msra.mxu0 0
    %2640 = vmatprep.subr.bf16.mxu0 0
    %2641 = vmatpush1.bf16.msra.mxu0 0
    %2642 = vmatprep.subr.bf16.mxu0 0
    %2643 = vmatpush1.bf16.msra.mxu0 0
    %2644 = vmatprep.subr.bf16.mxu0 0
    %2645 = vmatpush1.bf16.msra.mxu0 0
    %2646 = vmatprep.subr.bf16.mxu0 0
    %2647 = vmatpush1.bf16.msra.mxu0 0
    %2648 = vmatprep.subr.bf16.mxu0 0
    %2649 = vmatpush1.bf16.msra.mxu0 0
    %2650 = vmatprep.subr.bf16.mxu0 0
    %2651 = vmatpush1.bf16.msra.mxu0 0
    %2652 = vmatprep.subr.bf16.mxu0 0
    %2653 = vmatpush1.bf16.msra.mxu0 0
    %2654 = vmatprep.subr.bf16.mxu0 0
    %2655 = vmatpush1.bf16.msra.mxu0 0
    %2656 = vmatprep.subr.bf16.mxu0 0
    %2657 = vmatpush1.bf16.msra.mxu0 0
    %2658 = vmatprep.subr.bf16.mxu0 0
    %2659 = vmatpush1.bf16.msra.mxu0 0
    %2660 = vmatprep.subr.bf16.mxu0 0
    %2661 = vmatpush1.bf16.msra.mxu0 0
    %2662 = vmatprep.subr.bf16.mxu0 0
    %2663 = vmatpush1.bf16.msra.mxu0 0
    %2664 = vmatprep.mubr.bf16.mxu0 0
    %2665 = vmatmul.mubr.bf16.gmra.mrb[0].mxu0 %v2630
    %v2666 = vpop.f32.mrb[0].mxu0
    %v2667 = vadd.f32 %v2615, %v2666
    %v2668 = vpop.f32.mrb[0].mxu0
    %v2669 = vpop.f32.mrb[0].mxu0
    %v2670 = vpop.f32.mrb[0].mxu0
    %2671 = vdwg.mxu0
    %v2672 = vadd.f32 %v2667, %v2528
    %v2673 = vpack.c.bf16 %v2672, %v2672
    %v2675 = vsel %vm536, %v2673, 0
    %2677 = vmatprep.subr.bf16.mxu0 0
    %2678 = vmatpush1.bf16.msra.mxu0 %v532
    %2679 = vmatprep.subr.bf16.mxu0 0
    %2680 = vmatpush1.bf16.msra.mxu0 %v533
    %2681 = vmatprep.subr.bf16.mxu0 0
    %2682 = vmatpush1.bf16.msra.mxu0 0
    %2683 = vmatprep.subr.bf16.mxu0 0
    %2684 = vmatpush1.bf16.msra.mxu0 0
    %2685 = vmatprep.subr.bf16.mxu0 0
    %2686 = vmatpush1.bf16.msra.mxu0 0
    %2687 = vmatprep.subr.bf16.mxu0 0
    %2688 = vmatpush1.bf16.msra.mxu0 0
    %2689 = vmatprep.subr.bf16.mxu0 0
    %2690 = vmatpush1.bf16.msra.mxu0 0
    %2691 = vmatprep.subr.bf16.mxu0 0
    %2692 = vmatpush1.bf16.msra.mxu0 0
    %2693 = vmatprep.subr.bf16.mxu0 0
    %2694 = vmatpush1.bf16.msra.mxu0 0
    %2695 = vmatprep.subr.bf16.mxu0 0
    %2696 = vmatpush1.bf16.msra.mxu0 0
    %2697 = vmatprep.subr.bf16.mxu0 0
    %2698 = vmatpush1.bf16.msra.mxu0 0
    %2699 = vmatprep.subr.bf16.mxu0 0
    %2700 = vmatpush1.bf16.msra.mxu0 0
    %2701 = vmatprep.subr.bf16.mxu0 0
    %2702 = vmatpush1.bf16.msra.mxu0 0
    %2703 = vmatprep.subr.bf16.mxu0 0
    %2704 = vmatpush1.bf16.msra.mxu0 0
    %2705 = vmatprep.subr.bf16.mxu0 0
    %2706 = vmatpush1.bf16.msra.mxu0 0
    %2707 = vmatprep.subr.bf16.mxu0 0
    %2708 = vmatpush1.bf16.msra.mxu0 0
    %2709 = vmatprep.mubr.bf16.mxu0 0
    %2710 = vmatmul.mubr.bf16.gmra.mrb[0].mxu0 %v2675
    %v2711 = vpop.f32.mrb[0].mxu0
    %v2712 = vadd.f32 %v522, %v2711
    %v2713 = vpop.f32.mrb[0].mxu0
    %v2714 = vpop.f32.mrb[0].mxu0
    %v2715 = vpop.f32.mrb[0].mxu0
    %2716 = vdwg.mxu0
    %v2718 = vcombine.high %v2712, %v2712
    %v2720 = vunpack.c.l.s4 1983009808
    %v2721 = vunpack.c.0.s8 %v2720
    %v2722 = vlaneseq
    %v2723 = vshrl.u32 %v2722, 7
    %v2724 = vsub.s32 %v2721, %v2723
    %v2725 = vrot.slane %v2712, %v2724
    %v2727 = vunpack.c.l.s4 1983009808
    %v2728 = vunpack.c.0.s8 %v2727
    %v2729 = vlaneseq
    %v2730 = vshrl.u32 %v2729, 7
    %v2731 = vsub.s32 %v2728, %v2730
    %v2732 = vrot.slane %v2718, %v2731
    %v2733 = vcombine.high %v2725, %v2725
    %v2734 = vcombine.high %v2732, %v2732
    %v2739 = vpack.c.bf16 %v2725, %v2725
    %v2740 = vpack.c.bf16 %v2733, %v2733
    %v2741 = vpack.c.bf16 %v2732, %v2732
    %v2742 = vpack.c.bf16 %v2734, %v2734
    %2744 = vrot.lane.b32.xlu0 %v2739, 96
    %v2745 = vpop.permute.xlu0 %2744
    %v2747 = vsel %vm609, %v2739, 0
    %v2750 = vsel %vm609, %v2745, 0
    %2752 = vmatprep.subr.bf16.mxu0 0
    %2753 = vmatpush1.bf16.xpose.msra.mxu0 %v2750
    %2754 = vmatprep.subr.bf16.mxu0 0
    %2755 = vmatpush1.bf16.xpose.msra.mxu0 0
    %2756 = vmatprep.subr.bf16.mxu0 0
    %2757 = vmatpush1.bf16.xpose.msra.mxu0 0
    %2758 = vmatprep.subr.bf16.mxu0 0
    %2759 = vmatpush1.bf16.xpose.msra.mxu0 0
    %2760 = vmatprep.subr.bf16.mxu0 0
    %2761 = vmatpush1.bf16.xpose.msra.mxu0 0
    %2762 = vmatprep.subr.bf16.mxu0 0
    %2763 = vmatpush1.bf16.xpose.msra.mxu0 0
    %2764 = vmatprep.subr.bf16.mxu0 0
    %2765 = vmatpush1.bf16.xpose.msra.mxu0 0
    %2766 = vmatprep.subr.bf16.mxu0 0
    %2767 = vmatpush1.bf16.xpose.msra.mxu0 0
    %2768 = vmatprep.subr.bf16.mxu0 0
    %2769 = vmatpush1.bf16.xpose.msra.mxu0 0
    %2770 = vmatprep.subr.bf16.mxu0 0
    %2771 = vmatpush1.bf16.xpose.msra.mxu0 0
    %2772 = vmatprep.subr.bf16.mxu0 0
    %2773 = vmatpush1.bf16.xpose.msra.mxu0 0
    %2774 = vmatprep.subr.bf16.mxu0 0
    %2775 = vmatpush1.bf16.xpose.msra.mxu0 0
    %2776 = vmatprep.subr.bf16.mxu0 0
    %2777 = vmatpush1.bf16.xpose.msra.mxu0 0
    %2778 = vmatprep.subr.bf16.mxu0 0
    %2779 = vmatpush1.bf16.xpose.msra.mxu0 0
    %2780 = vmatprep.subr.bf16.mxu0 0
    %2781 = vmatpush1.bf16.xpose.msra.mxu0 0
    %2782 = vmatprep.subr.bf16.mxu0 0
    %2783 = vmatpush1.bf16.xpose.msra.mxu0 0
    %2784 = vmatprep.mubr.bf16.mxu0 0
    %2785 = vmatmul.mubr.bf16.gmra.mrb[0].mxu0 %v2747
    %v2786 = vpop.f32.mrb[0].mxu0
    %v2787 = vadd.f32 0.0, %v2786
    %v2788 = vpop.f32.mrb[0].mxu0
    %v2789 = vpop.f32.mrb[0].mxu0
    %v2790 = vpop.f32.mrb[0].mxu0
    %2791 = vdwg.mxu0
    %2793 = vrot.lane.b32.xlu0 %v2740, 96
    %v2794 = vpop.permute.xlu0 %2793
    %v2796 = vsel %vm609, %v2740, 0
    %v2799 = vsel %vm609, %v2794, 0
    %2801 = vmatprep.subr.bf16.mxu0 0
    %2802 = vmatpush1.bf16.xpose.msra.mxu0 %v2799
    %2803 = vmatprep.subr.bf16.mxu0 0
    %2804 = vmatpush1.bf16.xpose.msra.mxu0 0
    %2805 = vmatprep.subr.bf16.mxu0 0
    %2806 = vmatpush1.bf16.xpose.msra.mxu0 0
    %2807 = vmatprep.subr.bf16.mxu0 0
    %2808 = vmatpush1.bf16.xpose.msra.mxu0 0
    %2809 = vmatprep.subr.bf16.mxu0 0
    %2810 = vmatpush1.bf16.xpose.msra.mxu0 0
    %2811 = vmatprep.subr.bf16.mxu0 0
    %2812 = vmatpush1.bf16.xpose.msra.mxu0 0
    %2813 = vmatprep.subr.bf16.mxu0 0
    %2814 = vmatpush1.bf16.xpose.msra.mxu0 0
    %2815 = vmatprep.subr.bf16.mxu0 0
    %2816 = vmatpush1.bf16.xpose.msra.mxu0 0
    %2817 = vmatprep.subr.bf16.mxu0 0
    %2818 = vmatpush1.bf16.xpose.msra.mxu0 0
    %2819 = vmatprep.subr.bf16.mxu0 0
    %2820 = vmatpush1.bf16.xpose.msra.mxu0 0
    %2821 = vmatprep.subr.bf16.mxu0 0
    %2822 = vmatpush1.bf16.xpose.msra.mxu0 0
    %2823 = vmatprep.subr.bf16.mxu0 0
    %2824 = vmatpush1.bf16.xpose.msra.mxu0 0
    %2825 = vmatprep.subr.bf16.mxu0 0
    %2826 = vmatpush1.bf16.xpose.msra.mxu0 0
    %2827 = vmatprep.subr.bf16.mxu0 0
    %2828 = vmatpush1.bf16.xpose.msra.mxu0 0
    %2829 = vmatprep.subr.bf16.mxu0 0
    %2830 = vmatpush1.bf16.xpose.msra.mxu0 0
    %2831 = vmatprep.subr.bf16.mxu0 0
    %2832 = vmatpush1.bf16.xpose.msra.mxu0 0
    %2833 = vmatprep.mubr.bf16.mxu0 0
    %2834 = vmatmul.mubr.bf16.gmra.mrb[0].mxu0 %v2796
    %v2835 = vpop.f32.mrb[0].mxu0
    %v2836 = vadd.f32 0.0, %v2835
    %v2837 = vpop.f32.mrb[0].mxu0
    %v2838 = vpop.f32.mrb[0].mxu0
    %v2839 = vpop.f32.mrb[0].mxu0
    %2840 = vdwg.mxu0
    %2842 = vrot.lane.b32.xlu0 %v2741, 96
    %v2843 = vpop.permute.xlu0 %2842
    %v2845 = vsel %vm609, %v2741, 0
    %v2848 = vsel %vm609, %v2843, 0
    %2850 = vmatprep.subr.bf16.mxu0 0
    %2851 = vmatpush1.bf16.xpose.msra.mxu0 %v2848
    %2852 = vmatprep.subr.bf16.mxu0 0
    %2853 = vmatpush1.bf16.xpose.msra.mxu0 0
    %2854 = vmatprep.subr.bf16.mxu0 0
    %2855 = vmatpush1.bf16.xpose.msra.mxu0 0
    %2856 = vmatprep.subr.bf16.mxu0 0
    %2857 = vmatpush1.bf16.xpose.msra.mxu0 0
    %2858 = vmatprep.subr.bf16.mxu0 0
    %2859 = vmatpush1.bf16.xpose.msra.mxu0 0
    %2860 = vmatprep.subr.bf16.mxu0 0
    %2861 = vmatpush1.bf16.xpose.msra.mxu0 0
    %2862 = vmatprep.subr.bf16.mxu0 0
    %2863 = vmatpush1.bf16.xpose.msra.mxu0 0
    %2864 = vmatprep.subr.bf16.mxu0 0
    %2865 = vmatpush1.bf16.xpose.msra.mxu0 0
    %2866 = vmatprep.subr.bf16.mxu0 0
    %2867 = vmatpush1.bf16.xpose.msra.mxu0 0
    %2868 = vmatprep.subr.bf16.mxu0 0
    %2869 = vmatpush1.bf16.xpose.msra.mxu0 0
    %2870 = vmatprep.subr.bf16.mxu0 0
    %2871 = vmatpush1.bf16.xpose.msra.mxu0 0
    %2872 = vmatprep.subr.bf16.mxu0 0
    %2873 = vmatpush1.bf16.xpose.msra.mxu0 0
    %2874 = vmatprep.subr.bf16.mxu0 0
    %2875 = vmatpush1.bf16.xpose.msra.mxu0 0
    %2876 = vmatprep.subr.bf16.mxu0 0
    %2877 = vmatpush1.bf16.xpose.msra.mxu0 0
    %2878 = vmatprep.subr.bf16.mxu0 0
    %2879 = vmatpush1.bf16.xpose.msra.mxu0 0
    %2880 = vmatprep.subr.bf16.mxu0 0
    %2881 = vmatpush1.bf16.xpose.msra.mxu0 0
    %2882 = vmatprep.mubr.bf16.mxu0 0
    %2883 = vmatmul.mubr.bf16.gmra.mrb[0].mxu0 %v2845
    %v2884 = vpop.f32.mrb[0].mxu0
    %v2885 = vadd.f32 0.0, %v2884
    %v2886 = vpop.f32.mrb[0].mxu0
    %v2887 = vpop.f32.mrb[0].mxu0
    %v2888 = vpop.f32.mrb[0].mxu0
    %2889 = vdwg.mxu0
    %2891 = vrot.lane.b32.xlu0 %v2742, 96
    %v2892 = vpop.permute.xlu0 %2891
    %v2894 = vsel %vm609, %v2742, 0
    %v2897 = vsel %vm609, %v2892, 0
    %2899 = vmatprep.subr.bf16.mxu0 0
    %2900 = vmatpush1.bf16.xpose.msra.mxu0 %v2897
    %2901 = vmatprep.subr.bf16.mxu0 0
    %2902 = vmatpush1.bf16.xpose.msra.mxu0 0
    %2903 = vmatprep.subr.bf16.mxu0 0
    %2904 = vmatpush1.bf16.xpose.msra.mxu0 0
    %2905 = vmatprep.subr.bf16.mxu0 0
    %2906 = vmatpush1.bf16.xpose.msra.mxu0 0
    %2907 = vmatprep.subr.bf16.mxu0 0
    %2908 = vmatpush1.bf16.xpose.msra.mxu0 0
    %2909 = vmatprep.subr.bf16.mxu0 0
    %2910 = vmatpush1.bf16.xpose.msra.mxu0 0
    %2911 = vmatprep.subr.bf16.mxu0 0
    %2912 = vmatpush1.bf16.xpose.msra.mxu0 0
    %2913 = vmatprep.subr.bf16.mxu0 0
    %2914 = vmatpush1.bf16.xpose.msra.mxu0 0
    %2915 = vmatprep.subr.bf16.mxu0 0
    %2916 = vmatpush1.bf16.xpose.msra.mxu0 0
    %2917 = vmatprep.subr.bf16.mxu0 0
    %2918 = vmatpush1.bf16.xpose.msra.mxu0 0
    %2919 = vmatprep.subr.bf16.mxu0 0
    %2920 = vmatpush1.bf16.xpose.msra.mxu0 0
    %2921 = vmatprep.subr.bf16.mxu0 0
    %2922 = vmatpush1.bf16.xpose.msra.mxu0 0
    %2923 = vmatprep.subr.bf16.mxu0 0
    %2924 = vmatpush1.bf16.xpose.msra.mxu0 0
    %2925 = vmatprep.subr.bf16.mxu0 0
    %2926 = vmatpush1.bf16.xpose.msra.mxu0 0
    %2927 = vmatprep.subr.bf16.mxu0 0
    %2928 = vmatpush1.bf16.xpose.msra.mxu0 0
    %2929 = vmatprep.subr.bf16.mxu0 0
    %2930 = vmatpush1.bf16.xpose.msra.mxu0 0
    %2931 = vmatprep.mubr.bf16.mxu0 0
    %2932 = vmatmul.mubr.bf16.gmra.mrb[0].mxu0 %v2894
    %v2933 = vpop.f32.mrb[0].mxu0
    %v2934 = vadd.f32 0.0, %v2933
    %v2935 = vpop.f32.mrb[0].mxu0
    %v2936 = vpop.f32.mrb[0].mxu0
    %v2937 = vpop.f32.mrb[0].mxu0
    %2938 = vdwg.mxu0
    %v2939 = vmul.f32 %v2787, 0.35355338
    %v2940 = vmul.f32 %v2836, 0.35355338
    %v2941 = vmul.f32 %v2885, 0.35355338
    %v2942 = vmul.f32 %v2934, 0.35355338
    %v2943 = vsel %vm807, %v2939, -inf
    %2944 = vmax.xlane.f32.xlu0 %v2943
    %v2945 = vpop.xlane.xlu0 %2944
    %v2946 = vsel %vm807, %v2940, -inf
    %2947 = vmax.xlane.f32.xlu0 %v2946
    %v2948 = vpop.xlane.xlu0 %2947
    %v2949 = vsel %vm807, %v2941, -inf
    %2950 = vmax.xlane.f32.xlu0 %v2949
    %v2951 = vpop.xlane.xlu0 %2950
    %v2952 = vsel %vm807, %v2942, -inf
    %2953 = vmax.xlane.f32.xlu0 %v2952
    %v2954 = vpop.xlane.xlu0 %2953
    %v2955 = vsub.f32 %v2939, %v2945
    %v2956 = vsub.f32 %v2940, %v2948
    %v2957 = vsub.f32 %v2941, %v2951
    %v2958 = vsub.f32 %v2942, %v2954
    %v2959 = vmul.f32 %v2955, 1.442695
    %v2960 = vpow.pop %v2959
    %v2961 = vmul.f32 %v2956, 1.442695
    %v2962 = vpow.pop %v2961
    %v2963 = vmul.f32 %v2957, 1.442695
    %v2964 = vpow.pop %v2963
    %v2965 = vmul.f32 %v2958, 1.442695
    %v2966 = vpow.pop %v2965
    %v2967 = vsel %vm807, %v2960, 0.0
    %2968 = vadd.xlane.f32.xlu0 %v2967
    %v2969 = vpop.xlane.xlu0 %2968
    %v2970 = vsel %vm807, %v2962, 0.0
    %2971 = vadd.xlane.f32.xlu0 %v2970
    %v2972 = vpop.xlane.xlu0 %2971
    %v2973 = vsel %vm807, %v2964, 0.0
    %2974 = vadd.xlane.f32.xlu0 %v2973
    %v2975 = vpop.xlane.xlu0 %2974
    %v2976 = vsel %vm807, %v2966, 0.0
    %2977 = vadd.xlane.f32.xlu0 %v2976
    %v2978 = vpop.xlane.xlu0 %2977
    %v2979 = vrcp.pop %v2969
    %v2980 = vrcp.pop %v2972
    %v2981 = vrcp.pop %v2975
    %v2982 = vrcp.pop %v2978
    %v2983 = vmul.f32 %v2960, %v2979
    %v2984 = vmul.f32 %v2962, %v2980
    %v2985 = vmul.f32 %v2964, %v2981
    %v2986 = vmul.f32 %v2966, %v2982
    %v2987 = vpack.c.bf16 %v2983, %v2983
    %v2988 = vpack.c.bf16 %v2984, %v2984
    %v2989 = vpack.c.bf16 %v2985, %v2985
    %v2990 = vpack.c.bf16 %v2986, %v2986
    %2991 = vrot.lane.b32.xlu0 %v2739, 64
    %v2992 = vpop.permute.xlu0 %2991
    %v2994 = vsel %vm858, %v2987, 0
    %v2997 = vsel %vm862, %v2992, 0
    %2999 = vmatprep.subr.bf16.mxu0 0
    %3000 = vmatpush1.bf16.msra.mxu0 %v2997
    %3001 = vmatprep.subr.bf16.mxu0 0
    %3002 = vmatpush1.bf16.msra.mxu0 0
    %3003 = vmatprep.subr.bf16.mxu0 0
    %3004 = vmatpush1.bf16.msra.mxu0 0
    %3005 = vmatprep.subr.bf16.mxu0 0
    %3006 = vmatpush1.bf16.msra.mxu0 0
    %3007 = vmatprep.subr.bf16.mxu0 0
    %3008 = vmatpush1.bf16.msra.mxu0 0
    %3009 = vmatprep.subr.bf16.mxu0 0
    %3010 = vmatpush1.bf16.msra.mxu0 0
    %3011 = vmatprep.subr.bf16.mxu0 0
    %3012 = vmatpush1.bf16.msra.mxu0 0
    %3013 = vmatprep.subr.bf16.mxu0 0
    %3014 = vmatpush1.bf16.msra.mxu0 0
    %3015 = vmatprep.subr.bf16.mxu0 0
    %3016 = vmatpush1.bf16.msra.mxu0 0
    %3017 = vmatprep.subr.bf16.mxu0 0
    %3018 = vmatpush1.bf16.msra.mxu0 0
    %3019 = vmatprep.subr.bf16.mxu0 0
    %3020 = vmatpush1.bf16.msra.mxu0 0
    %3021 = vmatprep.subr.bf16.mxu0 0
    %3022 = vmatpush1.bf16.msra.mxu0 0
    %3023 = vmatprep.subr.bf16.mxu0 0
    %3024 = vmatpush1.bf16.msra.mxu0 0
    %3025 = vmatprep.subr.bf16.mxu0 0
    %3026 = vmatpush1.bf16.msra.mxu0 0
    %3027 = vmatprep.subr.bf16.mxu0 0
    %3028 = vmatpush1.bf16.msra.mxu0 0
    %3029 = vmatprep.subr.bf16.mxu0 0
    %3030 = vmatpush1.bf16.msra.mxu0 0
    %3031 = vmatprep.mubr.bf16.mxu0 0
    %3032 = vmatmul.mubr.bf16.gmra.mrb[0].mxu0 %v2994
    %v3033 = vpop.f32.mrb[0].mxu0
    %v3034 = vadd.f32 0.0, %v3033
    %v3035 = vpop.f32.mrb[0].mxu0
    %v3036 = vpop.f32.mrb[0].mxu0
    %v3037 = vpop.f32.mrb[0].mxu0
    %3038 = vdwg.mxu0
    %3039 = vrot.lane.b32.xlu0 %v2740, 64
    %v3040 = vpop.permute.xlu0 %3039
    %v3042 = vsel %vm858, %v2988, 0
    %v3045 = vsel %vm862, %v3040, 0
    %3047 = vmatprep.subr.bf16.mxu0 0
    %3048 = vmatpush1.bf16.msra.mxu0 %v3045
    %3049 = vmatprep.subr.bf16.mxu0 0
    %3050 = vmatpush1.bf16.msra.mxu0 0
    %3051 = vmatprep.subr.bf16.mxu0 0
    %3052 = vmatpush1.bf16.msra.mxu0 0
    %3053 = vmatprep.subr.bf16.mxu0 0
    %3054 = vmatpush1.bf16.msra.mxu0 0
    %3055 = vmatprep.subr.bf16.mxu0 0
    %3056 = vmatpush1.bf16.msra.mxu0 0
    %3057 = vmatprep.subr.bf16.mxu0 0
    %3058 = vmatpush1.bf16.msra.mxu0 0
    %3059 = vmatprep.subr.bf16.mxu0 0
    %3060 = vmatpush1.bf16.msra.mxu0 0
    %3061 = vmatprep.subr.bf16.mxu0 0
    %3062 = vmatpush1.bf16.msra.mxu0 0
    %3063 = vmatprep.subr.bf16.mxu0 0
    %3064 = vmatpush1.bf16.msra.mxu0 0
    %3065 = vmatprep.subr.bf16.mxu0 0
    %3066 = vmatpush1.bf16.msra.mxu0 0
    %3067 = vmatprep.subr.bf16.mxu0 0
    %3068 = vmatpush1.bf16.msra.mxu0 0
    %3069 = vmatprep.subr.bf16.mxu0 0
    %3070 = vmatpush1.bf16.msra.mxu0 0
    %3071 = vmatprep.subr.bf16.mxu0 0
    %3072 = vmatpush1.bf16.msra.mxu0 0
    %3073 = vmatprep.subr.bf16.mxu0 0
    %3074 = vmatpush1.bf16.msra.mxu0 0
    %3075 = vmatprep.subr.bf16.mxu0 0
    %3076 = vmatpush1.bf16.msra.mxu0 0
    %3077 = vmatprep.subr.bf16.mxu0 0
    %3078 = vmatpush1.bf16.msra.mxu0 0
    %3079 = vmatprep.mubr.bf16.mxu0 0
    %3080 = vmatmul.mubr.bf16.gmra.mrb[0].mxu0 %v3042
    %v3081 = vpop.f32.mrb[0].mxu0
    %v3082 = vadd.f32 0.0, %v3081
    %v3083 = vpop.f32.mrb[0].mxu0
    %v3084 = vpop.f32.mrb[0].mxu0
    %v3085 = vpop.f32.mrb[0].mxu0
    %3086 = vdwg.mxu0
    %3087 = vrot.lane.b32.xlu0 %v2741, 64
    %v3088 = vpop.permute.xlu0 %3087
    %v3090 = vsel %vm858, %v2989, 0
    %v3093 = vsel %vm862, %v3088, 0
    %3095 = vmatprep.subr.bf16.mxu0 0
    %3096 = vmatpush1.bf16.msra.mxu0 %v3093
    %3097 = vmatprep.subr.bf16.mxu0 0
    %3098 = vmatpush1.bf16.msra.mxu0 0
    %3099 = vmatprep.subr.bf16.mxu0 0
    %3100 = vmatpush1.bf16.msra.mxu0 0
    %3101 = vmatprep.subr.bf16.mxu0 0
    %3102 = vmatpush1.bf16.msra.mxu0 0
    %3103 = vmatprep.subr.bf16.mxu0 0
    %3104 = vmatpush1.bf16.msra.mxu0 0
    %3105 = vmatprep.subr.bf16.mxu0 0
    %3106 = vmatpush1.bf16.msra.mxu0 0
    %3107 = vmatprep.subr.bf16.mxu0 0
    %3108 = vmatpush1.bf16.msra.mxu0 0
    %3109 = vmatprep.subr.bf16.mxu0 0
    %3110 = vmatpush1.bf16.msra.mxu0 0
    %3111 = vmatprep.subr.bf16.mxu0 0
    %3112 = vmatpush1.bf16.msra.mxu0 0
    %3113 = vmatprep.subr.bf16.mxu0 0
    %3114 = vmatpush1.bf16.msra.mxu0 0
    %3115 = vmatprep.subr.bf16.mxu0 0
    %3116 = vmatpush1.bf16.msra.mxu0 0
    %3117 = vmatprep.subr.bf16.mxu0 0
    %3118 = vmatpush1.bf16.msra.mxu0 0
    %3119 = vmatprep.subr.bf16.mxu0 0
    %3120 = vmatpush1.bf16.msra.mxu0 0
    %3121 = vmatprep.subr.bf16.mxu0 0
    %3122 = vmatpush1.bf16.msra.mxu0 0
    %3123 = vmatprep.subr.bf16.mxu0 0
    %3124 = vmatpush1.bf16.msra.mxu0 0
    %3125 = vmatprep.subr.bf16.mxu0 0
    %3126 = vmatpush1.bf16.msra.mxu0 0
    %3127 = vmatprep.mubr.bf16.mxu0 0
    %3128 = vmatmul.mubr.bf16.gmra.mrb[0].mxu0 %v3090
    %v3129 = vpop.f32.mrb[0].mxu0
    %v3130 = vadd.f32 0.0, %v3129
    %v3131 = vpop.f32.mrb[0].mxu0
    %v3132 = vpop.f32.mrb[0].mxu0
    %v3133 = vpop.f32.mrb[0].mxu0
    %3134 = vdwg.mxu0
    %3135 = vrot.lane.b32.xlu0 %v2742, 64
    %v3136 = vpop.permute.xlu0 %3135
    %v3138 = vsel %vm858, %v2990, 0
    %v3141 = vsel %vm862, %v3136, 0
    %3143 = vmatprep.subr.bf16.mxu0 0
    %3144 = vmatpush1.bf16.msra.mxu0 %v3141
    %3145 = vmatprep.subr.bf16.mxu0 0
    %3146 = vmatpush1.bf16.msra.mxu0 0
    %3147 = vmatprep.subr.bf16.mxu0 0
    %3148 = vmatpush1.bf16.msra.mxu0 0
    %3149 = vmatprep.subr.bf16.mxu0 0
    %3150 = vmatpush1.bf16.msra.mxu0 0
    %3151 = vmatprep.subr.bf16.mxu0 0
    %3152 = vmatpush1.bf16.msra.mxu0 0
    %3153 = vmatprep.subr.bf16.mxu0 0
    %3154 = vmatpush1.bf16.msra.mxu0 0
    %3155 = vmatprep.subr.bf16.mxu0 0
    %3156 = vmatpush1.bf16.msra.mxu0 0
    %3157 = vmatprep.subr.bf16.mxu0 0
    %3158 = vmatpush1.bf16.msra.mxu0 0
    %3159 = vmatprep.subr.bf16.mxu0 0
    %3160 = vmatpush1.bf16.msra.mxu0 0
    %3161 = vmatprep.subr.bf16.mxu0 0
    %3162 = vmatpush1.bf16.msra.mxu0 0
    %3163 = vmatprep.subr.bf16.mxu0 0
    %3164 = vmatpush1.bf16.msra.mxu0 0
    %3165 = vmatprep.subr.bf16.mxu0 0
    %3166 = vmatpush1.bf16.msra.mxu0 0
    %3167 = vmatprep.subr.bf16.mxu0 0
    %3168 = vmatpush1.bf16.msra.mxu0 0
    %3169 = vmatprep.subr.bf16.mxu0 0
    %3170 = vmatpush1.bf16.msra.mxu0 0
    %3171 = vmatprep.subr.bf16.mxu0 0
    %3172 = vmatpush1.bf16.msra.mxu0 0
    %3173 = vmatprep.subr.bf16.mxu0 0
    %3174 = vmatpush1.bf16.msra.mxu0 0
    %3175 = vmatprep.mubr.bf16.mxu0 0
    %3176 = vmatmul.mubr.bf16.gmra.mrb[0].mxu0 %v3138
    %v3177 = vpop.f32.mrb[0].mxu0
    %v3178 = vadd.f32 0.0, %v3177
    %v3179 = vpop.f32.mrb[0].mxu0
    %v3180 = vpop.f32.mrb[0].mxu0
    %v3181 = vpop.f32.mrb[0].mxu0
    %3182 = vdwg.mxu0
    %3183 = vrot.lane.b32.xlu0 %v2739, 120
    %v3184 = vpop.permute.xlu0 %3183
    %3185 = vrot.lane.b32.xlu0 %v2739, 88
    %v3186 = vpop.permute.xlu0 %3185
    %v3188 = vsel %vm609, %v3184, 0
    %v3191 = vsel %vm609, %v3186, 0
    %3193 = vmatprep.subr.bf16.mxu0 0
    %3194 = vmatpush1.bf16.xpose.msra.mxu0 %v3191
    %3195 = vmatprep.subr.bf16.mxu0 0
    %3196 = vmatpush1.bf16.xpose.msra.mxu0 0
    %3197 = vmatprep.subr.bf16.mxu0 0
    %3198 = vmatpush1.bf16.xpose.msra.mxu0 0
    %3199 = vmatprep.subr.bf16.mxu0 0
    %3200 = vmatpush1.bf16.xpose.msra.mxu0 0
    %3201 = vmatprep.subr.bf16.mxu0 0
    %3202 = vmatpush1.bf16.xpose.msra.mxu0 0
    %3203 = vmatprep.subr.bf16.mxu0 0
    %3204 = vmatpush1.bf16.xpose.msra.mxu0 0
    %3205 = vmatprep.subr.bf16.mxu0 0
    %3206 = vmatpush1.bf16.xpose.msra.mxu0 0
    %3207 = vmatprep.subr.bf16.mxu0 0
    %3208 = vmatpush1.bf16.xpose.msra.mxu0 0
    %3209 = vmatprep.subr.bf16.mxu0 0
    %3210 = vmatpush1.bf16.xpose.msra.mxu0 0
    %3211 = vmatprep.subr.bf16.mxu0 0
    %3212 = vmatpush1.bf16.xpose.msra.mxu0 0
    %3213 = vmatprep.subr.bf16.mxu0 0
    %3214 = vmatpush1.bf16.xpose.msra.mxu0 0
    %3215 = vmatprep.subr.bf16.mxu0 0
    %3216 = vmatpush1.bf16.xpose.msra.mxu0 0
    %3217 = vmatprep.subr.bf16.mxu0 0
    %3218 = vmatpush1.bf16.xpose.msra.mxu0 0
    %3219 = vmatprep.subr.bf16.mxu0 0
    %3220 = vmatpush1.bf16.xpose.msra.mxu0 0
    %3221 = vmatprep.subr.bf16.mxu0 0
    %3222 = vmatpush1.bf16.xpose.msra.mxu0 0
    %3223 = vmatprep.subr.bf16.mxu0 0
    %3224 = vmatpush1.bf16.xpose.msra.mxu0 0
    %3225 = vmatprep.mubr.bf16.mxu0 0
    %3226 = vmatmul.mubr.bf16.gmra.mrb[0].mxu0 %v3188
    %v3227 = vpop.f32.mrb[0].mxu0
    %v3228 = vadd.f32 0.0, %v3227
    %v3229 = vpop.f32.mrb[0].mxu0
    %v3230 = vpop.f32.mrb[0].mxu0
    %v3231 = vpop.f32.mrb[0].mxu0
    %3232 = vdwg.mxu0
    %3233 = vrot.lane.b32.xlu0 %v2740, 120
    %v3234 = vpop.permute.xlu0 %3233
    %3235 = vrot.lane.b32.xlu0 %v2740, 88
    %v3236 = vpop.permute.xlu0 %3235
    %v3238 = vsel %vm609, %v3234, 0
    %v3241 = vsel %vm609, %v3236, 0
    %3243 = vmatprep.subr.bf16.mxu0 0
    %3244 = vmatpush1.bf16.xpose.msra.mxu0 %v3241
    %3245 = vmatprep.subr.bf16.mxu0 0
    %3246 = vmatpush1.bf16.xpose.msra.mxu0 0
    %3247 = vmatprep.subr.bf16.mxu0 0
    %3248 = vmatpush1.bf16.xpose.msra.mxu0 0
    %3249 = vmatprep.subr.bf16.mxu0 0
    %3250 = vmatpush1.bf16.xpose.msra.mxu0 0
    %3251 = vmatprep.subr.bf16.mxu0 0
    %3252 = vmatpush1.bf16.xpose.msra.mxu0 0
    %3253 = vmatprep.subr.bf16.mxu0 0
    %3254 = vmatpush1.bf16.xpose.msra.mxu0 0
    %3255 = vmatprep.subr.bf16.mxu0 0
    %3256 = vmatpush1.bf16.xpose.msra.mxu0 0
    %3257 = vmatprep.subr.bf16.mxu0 0
    %3258 = vmatpush1.bf16.xpose.msra.mxu0 0
    %3259 = vmatprep.subr.bf16.mxu0 0
    %3260 = vmatpush1.bf16.xpose.msra.mxu0 0
    %3261 = vmatprep.subr.bf16.mxu0 0
    %3262 = vmatpush1.bf16.xpose.msra.mxu0 0
    %3263 = vmatprep.subr.bf16.mxu0 0
    %3264 = vmatpush1.bf16.xpose.msra.mxu0 0
    %3265 = vmatprep.subr.bf16.mxu0 0
    %3266 = vmatpush1.bf16.xpose.msra.mxu0 0
    %3267 = vmatprep.subr.bf16.mxu0 0
    %3268 = vmatpush1.bf16.xpose.msra.mxu0 0
    %3269 = vmatprep.subr.bf16.mxu0 0
    %3270 = vmatpush1.bf16.xpose.msra.mxu0 0
    %3271 = vmatprep.subr.bf16.mxu0 0
    %3272 = vmatpush1.bf16.xpose.msra.mxu0 0
    %3273 = vmatprep.subr.bf16.mxu0 0
    %3274 = vmatpush1.bf16.xpose.msra.mxu0 0
    %3275 = vmatprep.mubr.bf16.mxu0 0
    %3276 = vmatmul.mubr.bf16.gmra.mrb[0].mxu0 %v3238
    %v3277 = vpop.f32.mrb[0].mxu0
    %v3278 = vadd.f32 0.0, %v3277
    %v3279 = vpop.f32.mrb[0].mxu0
    %v3280 = vpop.f32.mrb[0].mxu0
    %v3281 = vpop.f32.mrb[0].mxu0
    %3282 = vdwg.mxu0
    %3283 = vrot.lane.b32.xlu0 %v2741, 120
    %v3284 = vpop.permute.xlu0 %3283
    %3285 = vrot.lane.b32.xlu0 %v2741, 88
    %v3286 = vpop.permute.xlu0 %3285
    %v3288 = vsel %vm609, %v3284, 0
    %v3291 = vsel %vm609, %v3286, 0
    %3293 = vmatprep.subr.bf16.mxu0 0
    %3294 = vmatpush1.bf16.xpose.msra.mxu0 %v3291
    %3295 = vmatprep.subr.bf16.mxu0 0
    %3296 = vmatpush1.bf16.xpose.msra.mxu0 0
    %3297 = vmatprep.subr.bf16.mxu0 0
    %3298 = vmatpush1.bf16.xpose.msra.mxu0 0
    %3299 = vmatprep.subr.bf16.mxu0 0
    %3300 = vmatpush1.bf16.xpose.msra.mxu0 0
    %3301 = vmatprep.subr.bf16.mxu0 0
    %3302 = vmatpush1.bf16.xpose.msra.mxu0 0
    %3303 = vmatprep.subr.bf16.mxu0 0
    %3304 = vmatpush1.bf16.xpose.msra.mxu0 0
    %3305 = vmatprep.subr.bf16.mxu0 0
    %3306 = vmatpush1.bf16.xpose.msra.mxu0 0
    %3307 = vmatprep.subr.bf16.mxu0 0
    %3308 = vmatpush1.bf16.xpose.msra.mxu0 0
    %3309 = vmatprep.subr.bf16.mxu0 0
    %3310 = vmatpush1.bf16.xpose.msra.mxu0 0
    %3311 = vmatprep.subr.bf16.mxu0 0
    %3312 = vmatpush1.bf16.xpose.msra.mxu0 0
    %3313 = vmatprep.subr.bf16.mxu0 0
    %3314 = vmatpush1.bf16.xpose.msra.mxu0 0
    %3315 = vmatprep.subr.bf16.mxu0 0
    %3316 = vmatpush1.bf16.xpose.msra.mxu0 0
    %3317 = vmatprep.subr.bf16.mxu0 0
    %3318 = vmatpush1.bf16.xpose.msra.mxu0 0
    %3319 = vmatprep.subr.bf16.mxu0 0
    %3320 = vmatpush1.bf16.xpose.msra.mxu0 0
    %3321 = vmatprep.subr.bf16.mxu0 0
    %3322 = vmatpush1.bf16.xpose.msra.mxu0 0
    %3323 = vmatprep.subr.bf16.mxu0 0
    %3324 = vmatpush1.bf16.xpose.msra.mxu0 0
    %3325 = vmatprep.mubr.bf16.mxu0 0
    %3326 = vmatmul.mubr.bf16.gmra.mrb[0].mxu0 %v3288
    %v3327 = vpop.f32.mrb[0].mxu0
    %v3328 = vadd.f32 0.0, %v3327
    %v3329 = vpop.f32.mrb[0].mxu0
    %v3330 = vpop.f32.mrb[0].mxu0
    %v3331 = vpop.f32.mrb[0].mxu0
    %3332 = vdwg.mxu0
    %3333 = vrot.lane.b32.xlu0 %v2742, 120
    %v3334 = vpop.permute.xlu0 %3333
    %3335 = vrot.lane.b32.xlu0 %v2742, 88
    %v3336 = vpop.permute.xlu0 %3335
    %v3338 = vsel %vm609, %v3334, 0
    %v3341 = vsel %vm609, %v3336, 0
    %3343 = vmatprep.subr.bf16.mxu0 0
    %3344 = vmatpush1.bf16.xpose.msra.mxu0 %v3341
    %3345 = vmatprep.subr.bf16.mxu0 0
    %3346 = vmatpush1.bf16.xpose.msra.mxu0 0
    %3347 = vmatprep.subr.bf16.mxu0 0
    %3348 = vmatpush1.bf16.xpose.msra.mxu0 0
    %3349 = vmatprep.subr.bf16.mxu0 0
    %3350 = vmatpush1.bf16.xpose.msra.mxu0 0
    %3351 = vmatprep.subr.bf16.mxu0 0
    %3352 = vmatpush1.bf16.xpose.msra.mxu0 0
    %3353 = vmatprep.subr.bf16.mxu0 0
    %3354 = vmatpush1.bf16.xpose.msra.mxu0 0
    %3355 = vmatprep.subr.bf16.mxu0 0
    %3356 = vmatpush1.bf16.xpose.msra.mxu0 0
    %3357 = vmatprep.subr.bf16.mxu0 0
    %3358 = vmatpush1.bf16.xpose.msra.mxu0 0
    %3359 = vmatprep.subr.bf16.mxu0 0
    %3360 = vmatpush1.bf16.xpose.msra.mxu0 0
    %3361 = vmatprep.subr.bf16.mxu0 0
    %3362 = vmatpush1.bf16.xpose.msra.mxu0 0
    %3363 = vmatprep.subr.bf16.mxu0 0
    %3364 = vmatpush1.bf16.xpose.msra.mxu0 0
    %3365 = vmatprep.subr.bf16.mxu0 0
    %3366 = vmatpush1.bf16.xpose.msra.mxu0 0
    %3367 = vmatprep.subr.bf16.mxu0 0
    %3368 = vmatpush1.bf16.xpose.msra.mxu0 0
    %3369 = vmatprep.subr.bf16.mxu0 0
    %3370 = vmatpush1.bf16.xpose.msra.mxu0 0
    %3371 = vmatprep.subr.bf16.mxu0 0
    %3372 = vmatpush1.bf16.xpose.msra.mxu0 0
    %3373 = vmatprep.subr.bf16.mxu0 0
    %3374 = vmatpush1.bf16.xpose.msra.mxu0 0
    %3375 = vmatprep.mubr.bf16.mxu0 0
    %3376 = vmatmul.mubr.bf16.gmra.mrb[0].mxu0 %v3338
    %v3377 = vpop.f32.mrb[0].mxu0
    %v3378 = vadd.f32 0.0, %v3377
    %v3379 = vpop.f32.mrb[0].mxu0
    %v3380 = vpop.f32.mrb[0].mxu0
    %v3381 = vpop.f32.mrb[0].mxu0
    %3382 = vdwg.mxu0
    %v3383 = vmul.f32 %v3228, 0.35355338
    %v3384 = vmul.f32 %v3278, 0.35355338
    %v3385 = vmul.f32 %v3328, 0.35355338
    %v3386 = vmul.f32 %v3378, 0.35355338
    %v3387 = vsel %vm807, %v3383, -inf
    %3388 = vmax.xlane.f32.xlu0 %v3387
    %v3389 = vpop.xlane.xlu0 %3388
    %v3390 = vsel %vm807, %v3384, -inf
    %3391 = vmax.xlane.f32.xlu0 %v3390
    %v3392 = vpop.xlane.xlu0 %3391
    %v3393 = vsel %vm807, %v3385, -inf
    %3394 = vmax.xlane.f32.xlu0 %v3393
    %v3395 = vpop.xlane.xlu0 %3394
    %v3396 = vsel %vm807, %v3386, -inf
    %3397 = vmax.xlane.f32.xlu0 %v3396
    %v3398 = vpop.xlane.xlu0 %3397
    %v3399 = vsub.f32 %v3383, %v3389
    %v3400 = vsub.f32 %v3384, %v3392
    %v3401 = vsub.f32 %v3385, %v3395
    %v3402 = vsub.f32 %v3386, %v3398
    %v3403 = vmul.f32 %v3399, 1.442695
    %v3404 = vpow.pop %v3403
    %v3405 = vmul.f32 %v3400, 1.442695
    %v3406 = vpow.pop %v3405
    %v3407 = vmul.f32 %v3401, 1.442695
    %v3408 = vpow.pop %v3407
    %v3409 = vmul.f32 %v3402, 1.442695
    %v3410 = vpow.pop %v3409
    %v3411 = vsel %vm807, %v3404, 0.0
    %3412 = vadd.xlane.f32.xlu0 %v3411
    %v3413 = vpop.xlane.xlu0 %3412
    %v3414 = vsel %vm807, %v3406, 0.0
    %3415 = vadd.xlane.f32.xlu0 %v3414
    %v3416 = vpop.xlane.xlu0 %3415
    %v3417 = vsel %vm807, %v3408, 0.0
    %3418 = vadd.xlane.f32.xlu0 %v3417
    %v3419 = vpop.xlane.xlu0 %3418
    %v3420 = vsel %vm807, %v3410, 0.0
    %3421 = vadd.xlane.f32.xlu0 %v3420
    %v3422 = vpop.xlane.xlu0 %3421
    %v3423 = vrcp.pop %v3413
    %v3424 = vrcp.pop %v3416
    %v3425 = vrcp.pop %v3419
    %v3426 = vrcp.pop %v3422
    %v3427 = vmul.f32 %v3404, %v3423
    %v3428 = vmul.f32 %v3406, %v3424
    %v3429 = vmul.f32 %v3408, %v3425
    %v3430 = vmul.f32 %v3410, %v3426
    %v3431 = vpack.c.bf16 %v3427, %v3427
    %v3432 = vpack.c.bf16 %v3428, %v3428
    %v3433 = vpack.c.bf16 %v3429, %v3429
    %v3434 = vpack.c.bf16 %v3430, %v3430
    %3435 = vrot.lane.b32.xlu0 %v2739, 56
    %v3436 = vpop.permute.xlu0 %3435
    %v3438 = vsel %vm858, %v3431, 0
    %v3441 = vsel %vm862, %v3436, 0
    %3443 = vmatprep.subr.bf16.mxu0 0
    %3444 = vmatpush1.bf16.msra.mxu0 %v3441
    %3445 = vmatprep.subr.bf16.mxu0 0
    %3446 = vmatpush1.bf16.msra.mxu0 0
    %3447 = vmatprep.subr.bf16.mxu0 0
    %3448 = vmatpush1.bf16.msra.mxu0 0
    %3449 = vmatprep.subr.bf16.mxu0 0
    %3450 = vmatpush1.bf16.msra.mxu0 0
    %3451 = vmatprep.subr.bf16.mxu0 0
    %3452 = vmatpush1.bf16.msra.mxu0 0
    %3453 = vmatprep.subr.bf16.mxu0 0
    %3454 = vmatpush1.bf16.msra.mxu0 0
    %3455 = vmatprep.subr.bf16.mxu0 0
    %3456 = vmatpush1.bf16.msra.mxu0 0
    %3457 = vmatprep.subr.bf16.mxu0 0
    %3458 = vmatpush1.bf16.msra.mxu0 0
    %3459 = vmatprep.subr.bf16.mxu0 0
    %3460 = vmatpush1.bf16.msra.mxu0 0
    %3461 = vmatprep.subr.bf16.mxu0 0
    %3462 = vmatpush1.bf16.msra.mxu0 0
    %3463 = vmatprep.subr.bf16.mxu0 0
    %3464 = vmatpush1.bf16.msra.mxu0 0
    %3465 = vmatprep.subr.bf16.mxu0 0
    %3466 = vmatpush1.bf16.msra.mxu0 0
    %3467 = vmatprep.subr.bf16.mxu0 0
    %3468 = vmatpush1.bf16.msra.mxu0 0
    %3469 = vmatprep.subr.bf16.mxu0 0
    %3470 = vmatpush1.bf16.msra.mxu0 0
    %3471 = vmatprep.subr.bf16.mxu0 0
    %3472 = vmatpush1.bf16.msra.mxu0 0
    %3473 = vmatprep.subr.bf16.mxu0 0
    %3474 = vmatpush1.bf16.msra.mxu0 0
    %3475 = vmatprep.mubr.bf16.mxu0 0
    %3476 = vmatmul.mubr.bf16.gmra.mrb[0].mxu0 %v3438
    %v3477 = vpop.f32.mrb[0].mxu0
    %v3478 = vadd.f32 0.0, %v3477
    %v3479 = vpop.f32.mrb[0].mxu0
    %v3480 = vpop.f32.mrb[0].mxu0
    %v3481 = vpop.f32.mrb[0].mxu0
    %3482 = vdwg.mxu0
    %3483 = vrot.lane.b32.xlu0 %v2740, 56
    %v3484 = vpop.permute.xlu0 %3483
    %v3486 = vsel %vm858, %v3432, 0
    %v3489 = vsel %vm862, %v3484, 0
    %3491 = vmatprep.subr.bf16.mxu0 0
    %3492 = vmatpush1.bf16.msra.mxu0 %v3489
    %3493 = vmatprep.subr.bf16.mxu0 0
    %3494 = vmatpush1.bf16.msra.mxu0 0
    %3495 = vmatprep.subr.bf16.mxu0 0
    %3496 = vmatpush1.bf16.msra.mxu0 0
    %3497 = vmatprep.subr.bf16.mxu0 0
    %3498 = vmatpush1.bf16.msra.mxu0 0
    %3499 = vmatprep.subr.bf16.mxu0 0
    %3500 = vmatpush1.bf16.msra.mxu0 0
    %3501 = vmatprep.subr.bf16.mxu0 0
    %3502 = vmatpush1.bf16.msra.mxu0 0
    %3503 = vmatprep.subr.bf16.mxu0 0
    %3504 = vmatpush1.bf16.msra.mxu0 0
    %3505 = vmatprep.subr.bf16.mxu0 0
    %3506 = vmatpush1.bf16.msra.mxu0 0
    %3507 = vmatprep.subr.bf16.mxu0 0
    %3508 = vmatpush1.bf16.msra.mxu0 0
    %3509 = vmatprep.subr.bf16.mxu0 0
    %3510 = vmatpush1.bf16.msra.mxu0 0
    %3511 = vmatprep.subr.bf16.mxu0 0
    %3512 = vmatpush1.bf16.msra.mxu0 0
    %3513 = vmatprep.subr.bf16.mxu0 0
    %3514 = vmatpush1.bf16.msra.mxu0 0
    %3515 = vmatprep.subr.bf16.mxu0 0
    %3516 = vmatpush1.bf16.msra.mxu0 0
    %3517 = vmatprep.subr.bf16.mxu0 0
    %3518 = vmatpush1.bf16.msra.mxu0 0
    %3519 = vmatprep.subr.bf16.mxu0 0
    %3520 = vmatpush1.bf16.msra.mxu0 0
    %3521 = vmatprep.subr.bf16.mxu0 0
    %3522 = vmatpush1.bf16.msra.mxu0 0
    %3523 = vmatprep.mubr.bf16.mxu0 0
    %3524 = vmatmul.mubr.bf16.gmra.mrb[0].mxu0 %v3486
    %v3525 = vpop.f32.mrb[0].mxu0
    %v3526 = vadd.f32 0.0, %v3525
    %v3527 = vpop.f32.mrb[0].mxu0
    %v3528 = vpop.f32.mrb[0].mxu0
    %v3529 = vpop.f32.mrb[0].mxu0
    %3530 = vdwg.mxu0
    %3531 = vrot.lane.b32.xlu0 %v2741, 56
    %v3532 = vpop.permute.xlu0 %3531
    %v3534 = vsel %vm858, %v3433, 0
    %v3537 = vsel %vm862, %v3532, 0
    %3539 = vmatprep.subr.bf16.mxu0 0
    %3540 = vmatpush1.bf16.msra.mxu0 %v3537
    %3541 = vmatprep.subr.bf16.mxu0 0
    %3542 = vmatpush1.bf16.msra.mxu0 0
    %3543 = vmatprep.subr.bf16.mxu0 0
    %3544 = vmatpush1.bf16.msra.mxu0 0
    %3545 = vmatprep.subr.bf16.mxu0 0
    %3546 = vmatpush1.bf16.msra.mxu0 0
    %3547 = vmatprep.subr.bf16.mxu0 0
    %3548 = vmatpush1.bf16.msra.mxu0 0
    %3549 = vmatprep.subr.bf16.mxu0 0
    %3550 = vmatpush1.bf16.msra.mxu0 0
    %3551 = vmatprep.subr.bf16.mxu0 0
    %3552 = vmatpush1.bf16.msra.mxu0 0
    %3553 = vmatprep.subr.bf16.mxu0 0
    %3554 = vmatpush1.bf16.msra.mxu0 0
    %3555 = vmatprep.subr.bf16.mxu0 0
    %3556 = vmatpush1.bf16.msra.mxu0 0
    %3557 = vmatprep.subr.bf16.mxu0 0
    %3558 = vmatpush1.bf16.msra.mxu0 0
    %3559 = vmatprep.subr.bf16.mxu0 0
    %3560 = vmatpush1.bf16.msra.mxu0 0
    %3561 = vmatprep.subr.bf16.mxu0 0
    %3562 = vmatpush1.bf16.msra.mxu0 0
    %3563 = vmatprep.subr.bf16.mxu0 0
    %3564 = vmatpush1.bf16.msra.mxu0 0
    %3565 = vmatprep.subr.bf16.mxu0 0
    %3566 = vmatpush1.bf16.msra.mxu0 0
    %3567 = vmatprep.subr.bf16.mxu0 0
    %3568 = vmatpush1.bf16.msra.mxu0 0
    %3569 = vmatprep.subr.bf16.mxu0 0
    %3570 = vmatpush1.bf16.msra.mxu0 0
    %3571 = vmatprep.mubr.bf16.mxu0 0
    %3572 = vmatmul.mubr.bf16.gmra.mrb[0].mxu0 %v3534
    %v3573 = vpop.f32.mrb[0].mxu0
    %v3574 = vadd.f32 0.0, %v3573
    %v3575 = vpop.f32.mrb[0].mxu0
    %v3576 = vpop.f32.mrb[0].mxu0
    %v3577 = vpop.f32.mrb[0].mxu0
    %3578 = vdwg.mxu0
    %3579 = vrot.lane.b32.xlu0 %v2742, 56
    %v3580 = vpop.permute.xlu0 %3579
    %v3582 = vsel %vm858, %v3434, 0
    %v3585 = vsel %vm862, %v3580, 0
    %3587 = vmatprep.subr.bf16.mxu0 0
    %3588 = vmatpush1.bf16.msra.mxu0 %v3585
    %3589 = vmatprep.subr.bf16.mxu0 0
    %3590 = vmatpush1.bf16.msra.mxu0 0
    %3591 = vmatprep.subr.bf16.mxu0 0
    %3592 = vmatpush1.bf16.msra.mxu0 0
    %3593 = vmatprep.subr.bf16.mxu0 0
    %3594 = vmatpush1.bf16.msra.mxu0 0
    %3595 = vmatprep.subr.bf16.mxu0 0
    %3596 = vmatpush1.bf16.msra.mxu0 0
    %3597 = vmatprep.subr.bf16.mxu0 0
    %3598 = vmatpush1.bf16.msra.mxu0 0
    %3599 = vmatprep.subr.bf16.mxu0 0
    %3600 = vmatpush1.bf16.msra.mxu0 0
    %3601 = vmatprep.subr.bf16.mxu0 0
    %3602 = vmatpush1.bf16.msra.mxu0 0
    %3603 = vmatprep.subr.bf16.mxu0 0
    %3604 = vmatpush1.bf16.msra.mxu0 0
    %3605 = vmatprep.subr.bf16.mxu0 0
    %3606 = vmatpush1.bf16.msra.mxu0 0
    %3607 = vmatprep.subr.bf16.mxu0 0
    %3608 = vmatpush1.bf16.msra.mxu0 0
    %3609 = vmatprep.subr.bf16.mxu0 0
    %3610 = vmatpush1.bf16.msra.mxu0 0
    %3611 = vmatprep.subr.bf16.mxu0 0
    %3612 = vmatpush1.bf16.msra.mxu0 0
    %3613 = vmatprep.subr.bf16.mxu0 0
    %3614 = vmatpush1.bf16.msra.mxu0 0
    %3615 = vmatprep.subr.bf16.mxu0 0
    %3616 = vmatpush1.bf16.msra.mxu0 0
    %3617 = vmatprep.subr.bf16.mxu0 0
    %3618 = vmatpush1.bf16.msra.mxu0 0
    %3619 = vmatprep.mubr.bf16.mxu0 0
    %3620 = vmatmul.mubr.bf16.gmra.mrb[0].mxu0 %v3582
    %v3621 = vpop.f32.mrb[0].mxu0
    %v3622 = vadd.f32 0.0, %v3621
    %v3623 = vpop.f32.mrb[0].mxu0
    %v3624 = vpop.f32.mrb[0].mxu0
    %v3625 = vpop.f32.mrb[0].mxu0
    %3626 = vdwg.mxu0
    %3627 = vrot.lane.b32.xlu0 %v2739, 112
    %v3628 = vpop.permute.xlu0 %3627
    %3629 = vrot.lane.b32.xlu0 %v2739, 80
    %v3630 = vpop.permute.xlu0 %3629
    %v3632 = vsel %vm609, %v3628, 0
    %v3635 = vsel %vm609, %v3630, 0
    %3637 = vmatprep.subr.bf16.mxu0 0
    %3638 = vmatpush1.bf16.xpose.msra.mxu0 %v3635
    %3639 = vmatprep.subr.bf16.mxu0 0
    %3640 = vmatpush1.bf16.xpose.msra.mxu0 0
    %3641 = vmatprep.subr.bf16.mxu0 0
    %3642 = vmatpush1.bf16.xpose.msra.mxu0 0
    %3643 = vmatprep.subr.bf16.mxu0 0
    %3644 = vmatpush1.bf16.xpose.msra.mxu0 0
    %3645 = vmatprep.subr.bf16.mxu0 0
    %3646 = vmatpush1.bf16.xpose.msra.mxu0 0
    %3647 = vmatprep.subr.bf16.mxu0 0
    %3648 = vmatpush1.bf16.xpose.msra.mxu0 0
    %3649 = vmatprep.subr.bf16.mxu0 0
    %3650 = vmatpush1.bf16.xpose.msra.mxu0 0
    %3651 = vmatprep.subr.bf16.mxu0 0
    %3652 = vmatpush1.bf16.xpose.msra.mxu0 0
    %3653 = vmatprep.subr.bf16.mxu0 0
    %3654 = vmatpush1.bf16.xpose.msra.mxu0 0
    %3655 = vmatprep.subr.bf16.mxu0 0
    %3656 = vmatpush1.bf16.xpose.msra.mxu0 0
    %3657 = vmatprep.subr.bf16.mxu0 0
    %3658 = vmatpush1.bf16.xpose.msra.mxu0 0
    %3659 = vmatprep.subr.bf16.mxu0 0
    %3660 = vmatpush1.bf16.xpose.msra.mxu0 0
    %3661 = vmatprep.subr.bf16.mxu0 0
    %3662 = vmatpush1.bf16.xpose.msra.mxu0 0
    %3663 = vmatprep.subr.bf16.mxu0 0
    %3664 = vmatpush1.bf16.xpose.msra.mxu0 0
    %3665 = vmatprep.subr.bf16.mxu0 0
    %3666 = vmatpush1.bf16.xpose.msra.mxu0 0
    %3667 = vmatprep.subr.bf16.mxu0 0
    %3668 = vmatpush1.bf16.xpose.msra.mxu0 0
    %3669 = vmatprep.mubr.bf16.mxu0 0
    %3670 = vmatmul.mubr.bf16.gmra.mrb[0].mxu0 %v3632
    %v3671 = vpop.f32.mrb[0].mxu0
    %v3672 = vadd.f32 0.0, %v3671
    %v3673 = vpop.f32.mrb[0].mxu0
    %v3674 = vpop.f32.mrb[0].mxu0
    %v3675 = vpop.f32.mrb[0].mxu0
    %3676 = vdwg.mxu0
    %3677 = vrot.lane.b32.xlu0 %v2740, 112
    %v3678 = vpop.permute.xlu0 %3677
    %3679 = vrot.lane.b32.xlu0 %v2740, 80
    %v3680 = vpop.permute.xlu0 %3679
    %v3682 = vsel %vm609, %v3678, 0
    %v3685 = vsel %vm609, %v3680, 0
    %3687 = vmatprep.subr.bf16.mxu0 0
    %3688 = vmatpush1.bf16.xpose.msra.mxu0 %v3685
    %3689 = vmatprep.subr.bf16.mxu0 0
    %3690 = vmatpush1.bf16.xpose.msra.mxu0 0
    %3691 = vmatprep.subr.bf16.mxu0 0
    %3692 = vmatpush1.bf16.xpose.msra.mxu0 0
    %3693 = vmatprep.subr.bf16.mxu0 0
    %3694 = vmatpush1.bf16.xpose.msra.mxu0 0
    %3695 = vmatprep.subr.bf16.mxu0 0
    %3696 = vmatpush1.bf16.xpose.msra.mxu0 0
    %3697 = vmatprep.subr.bf16.mxu0 0
    %3698 = vmatpush1.bf16.xpose.msra.mxu0 0
    %3699 = vmatprep.subr.bf16.mxu0 0
    %3700 = vmatpush1.bf16.xpose.msra.mxu0 0
    %3701 = vmatprep.subr.bf16.mxu0 0
    %3702 = vmatpush1.bf16.xpose.msra.mxu0 0
    %3703 = vmatprep.subr.bf16.mxu0 0
    %3704 = vmatpush1.bf16.xpose.msra.mxu0 0
    %3705 = vmatprep.subr.bf16.mxu0 0
    %3706 = vmatpush1.bf16.xpose.msra.mxu0 0
    %3707 = vmatprep.subr.bf16.mxu0 0
    %3708 = vmatpush1.bf16.xpose.msra.mxu0 0
    %3709 = vmatprep.subr.bf16.mxu0 0
    %3710 = vmatpush1.bf16.xpose.msra.mxu0 0
    %3711 = vmatprep.subr.bf16.mxu0 0
    %3712 = vmatpush1.bf16.xpose.msra.mxu0 0
    %3713 = vmatprep.subr.bf16.mxu0 0
    %3714 = vmatpush1.bf16.xpose.msra.mxu0 0
    %3715 = vmatprep.subr.bf16.mxu0 0
    %3716 = vmatpush1.bf16.xpose.msra.mxu0 0
    %3717 = vmatprep.subr.bf16.mxu0 0
    %3718 = vmatpush1.bf16.xpose.msra.mxu0 0
    %3719 = vmatprep.mubr.bf16.mxu0 0
    %3720 = vmatmul.mubr.bf16.gmra.mrb[0].mxu0 %v3682
    %v3721 = vpop.f32.mrb[0].mxu0
    %v3722 = vadd.f32 0.0, %v3721
    %v3723 = vpop.f32.mrb[0].mxu0
    %v3724 = vpop.f32.mrb[0].mxu0
    %v3725 = vpop.f32.mrb[0].mxu0
    %3726 = vdwg.mxu0
    %3727 = vrot.lane.b32.xlu0 %v2741, 112
    %v3728 = vpop.permute.xlu0 %3727
    %3729 = vrot.lane.b32.xlu0 %v2741, 80
    %v3730 = vpop.permute.xlu0 %3729
    %v3732 = vsel %vm609, %v3728, 0
    %v3735 = vsel %vm609, %v3730, 0
    %3737 = vmatprep.subr.bf16.mxu0 0
    %3738 = vmatpush1.bf16.xpose.msra.mxu0 %v3735
    %3739 = vmatprep.subr.bf16.mxu0 0
    %3740 = vmatpush1.bf16.xpose.msra.mxu0 0
    %3741 = vmatprep.subr.bf16.mxu0 0
    %3742 = vmatpush1.bf16.xpose.msra.mxu0 0
    %3743 = vmatprep.subr.bf16.mxu0 0
    %3744 = vmatpush1.bf16.xpose.msra.mxu0 0
    %3745 = vmatprep.subr.bf16.mxu0 0
    %3746 = vmatpush1.bf16.xpose.msra.mxu0 0
    %3747 = vmatprep.subr.bf16.mxu0 0
    %3748 = vmatpush1.bf16.xpose.msra.mxu0 0
    %3749 = vmatprep.subr.bf16.mxu0 0
    %3750 = vmatpush1.bf16.xpose.msra.mxu0 0
    %3751 = vmatprep.subr.bf16.mxu0 0
    %3752 = vmatpush1.bf16.xpose.msra.mxu0 0
    %3753 = vmatprep.subr.bf16.mxu0 0
    %3754 = vmatpush1.bf16.xpose.msra.mxu0 0
    %3755 = vmatprep.subr.bf16.mxu0 0
    %3756 = vmatpush1.bf16.xpose.msra.mxu0 0
    %3757 = vmatprep.subr.bf16.mxu0 0
    %3758 = vmatpush1.bf16.xpose.msra.mxu0 0
    %3759 = vmatprep.subr.bf16.mxu0 0
    %3760 = vmatpush1.bf16.xpose.msra.mxu0 0
    %3761 = vmatprep.subr.bf16.mxu0 0
    %3762 = vmatpush1.bf16.xpose.msra.mxu0 0
    %3763 = vmatprep.subr.bf16.mxu0 0
    %3764 = vmatpush1.bf16.xpose.msra.mxu0 0
    %3765 = vmatprep.subr.bf16.mxu0 0
    %3766 = vmatpush1.bf16.xpose.msra.mxu0 0
    %3767 = vmatprep.subr.bf16.mxu0 0
    %3768 = vmatpush1.bf16.xpose.msra.mxu0 0
    %3769 = vmatprep.mubr.bf16.mxu0 0
    %3770 = vmatmul.mubr.bf16.gmra.mrb[0].mxu0 %v3732
    %v3771 = vpop.f32.mrb[0].mxu0
    %v3772 = vadd.f32 0.0, %v3771
    %v3773 = vpop.f32.mrb[0].mxu0
    %v3774 = vpop.f32.mrb[0].mxu0
    %v3775 = vpop.f32.mrb[0].mxu0
    %3776 = vdwg.mxu0
    %3777 = vrot.lane.b32.xlu0 %v2742, 112
    %v3778 = vpop.permute.xlu0 %3777
    %3779 = vrot.lane.b32.xlu0 %v2742, 80
    %v3780 = vpop.permute.xlu0 %3779
    %v3782 = vsel %vm609, %v3778, 0
    %v3785 = vsel %vm609, %v3780, 0
    %3787 = vmatprep.subr.bf16.mxu0 0
    %3788 = vmatpush1.bf16.xpose.msra.mxu0 %v3785
    %3789 = vmatprep.subr.bf16.mxu0 0
    %3790 = vmatpush1.bf16.xpose.msra.mxu0 0
    %3791 = vmatprep.subr.bf16.mxu0 0
    %3792 = vmatpush1.bf16.xpose.msra.mxu0 0
    %3793 = vmatprep.subr.bf16.mxu0 0
    %3794 = vmatpush1.bf16.xpose.msra.mxu0 0
    %3795 = vmatprep.subr.bf16.mxu0 0
    %3796 = vmatpush1.bf16.xpose.msra.mxu0 0
    %3797 = vmatprep.subr.bf16.mxu0 0
    %3798 = vmatpush1.bf16.xpose.msra.mxu0 0
    %3799 = vmatprep.subr.bf16.mxu0 0
    %3800 = vmatpush1.bf16.xpose.msra.mxu0 0
    %3801 = vmatprep.subr.bf16.mxu0 0
    %3802 = vmatpush1.bf16.xpose.msra.mxu0 0
    %3803 = vmatprep.subr.bf16.mxu0 0
    %3804 = vmatpush1.bf16.xpose.msra.mxu0 0
    %3805 = vmatprep.subr.bf16.mxu0 0
    %3806 = vmatpush1.bf16.xpose.msra.mxu0 0
    %3807 = vmatprep.subr.bf16.mxu0 0
    %3808 = vmatpush1.bf16.xpose.msra.mxu0 0
    %3809 = vmatprep.subr.bf16.mxu0 0
    %3810 = vmatpush1.bf16.xpose.msra.mxu0 0
    %3811 = vmatprep.subr.bf16.mxu0 0
    %3812 = vmatpush1.bf16.xpose.msra.mxu0 0
    %3813 = vmatprep.subr.bf16.mxu0 0
    %3814 = vmatpush1.bf16.xpose.msra.mxu0 0
    %3815 = vmatprep.subr.bf16.mxu0 0
    %3816 = vmatpush1.bf16.xpose.msra.mxu0 0
    %3817 = vmatprep.subr.bf16.mxu0 0
    %3818 = vmatpush1.bf16.xpose.msra.mxu0 0
    %3819 = vmatprep.mubr.bf16.mxu0 0
    %3820 = vmatmul.mubr.bf16.gmra.mrb[0].mxu0 %v3782
    %v3821 = vpop.f32.mrb[0].mxu0
    %v3822 = vadd.f32 0.0, %v3821
    %v3823 = vpop.f32.mrb[0].mxu0
    %v3824 = vpop.f32.mrb[0].mxu0
    %v3825 = vpop.f32.mrb[0].mxu0
    %3826 = vdwg.mxu0
    %v3827 = vmul.f32 %v3672, 0.35355338
    %v3828 = vmul.f32 %v3722, 0.35355338
    %v3829 = vmul.f32 %v3772, 0.35355338
    %v3830 = vmul.f32 %v3822, 0.35355338
    %v3831 = vsel %vm807, %v3827, -inf
    %3832 = vmax.xlane.f32.xlu0 %v3831
    %v3833 = vpop.xlane.xlu0 %3832
    %v3834 = vsel %vm807, %v3828, -inf
    %3835 = vmax.xlane.f32.xlu0 %v3834
    %v3836 = vpop.xlane.xlu0 %3835
    %v3837 = vsel %vm807, %v3829, -inf
    %3838 = vmax.xlane.f32.xlu0 %v3837
    %v3839 = vpop.xlane.xlu0 %3838
    %v3840 = vsel %vm807, %v3830, -inf
    %3841 = vmax.xlane.f32.xlu0 %v3840
    %v3842 = vpop.xlane.xlu0 %3841
    %v3843 = vsub.f32 %v3827, %v3833
    %v3844 = vsub.f32 %v3828, %v3836
    %v3845 = vsub.f32 %v3829, %v3839
    %v3846 = vsub.f32 %v3830, %v3842
    %v3847 = vmul.f32 %v3843, 1.442695
    %v3848 = vpow.pop %v3847
    %v3849 = vmul.f32 %v3844, 1.442695
    %v3850 = vpow.pop %v3849
    %v3851 = vmul.f32 %v3845, 1.442695
    %v3852 = vpow.pop %v3851
    %v3853 = vmul.f32 %v3846, 1.442695
    %v3854 = vpow.pop %v3853
    %v3855 = vsel %vm807, %v3848, 0.0
    %3856 = vadd.xlane.f32.xlu0 %v3855
    %v3857 = vpop.xlane.xlu0 %3856
    %v3858 = vsel %vm807, %v3850, 0.0
    %3859 = vadd.xlane.f32.xlu0 %v3858
    %v3860 = vpop.xlane.xlu0 %3859
    %v3861 = vsel %vm807, %v3852, 0.0
    %3862 = vadd.xlane.f32.xlu0 %v3861
    %v3863 = vpop.xlane.xlu0 %3862
    %v3864 = vsel %vm807, %v3854, 0.0
    %3865 = vadd.xlane.f32.xlu0 %v3864
    %v3866 = vpop.xlane.xlu0 %3865
    %v3867 = vrcp.pop %v3857
    %v3868 = vrcp.pop %v3860
    %v3869 = vrcp.pop %v3863
    %v3870 = vrcp.pop %v3866
    %v3871 = vmul.f32 %v3848, %v3867
    %v3872 = vmul.f32 %v3850, %v3868
    %v3873 = vmul.f32 %v3852, %v3869
    %v3874 = vmul.f32 %v3854, %v3870
    %v3875 = vpack.c.bf16 %v3871, %v3871
    %v3876 = vpack.c.bf16 %v3872, %v3872
    %v3877 = vpack.c.bf16 %v3873, %v3873
    %v3878 = vpack.c.bf16 %v3874, %v3874
    %3879 = vrot.lane.b32.xlu0 %v2739, 48
    %v3880 = vpop.permute.xlu0 %3879
    %v3882 = vsel %vm858, %v3875, 0
    %v3885 = vsel %vm862, %v3880, 0
    %3887 = vmatprep.subr.bf16.mxu0 0
    %3888 = vmatpush1.bf16.msra.mxu0 %v3885
    %3889 = vmatprep.subr.bf16.mxu0 0
    %3890 = vmatpush1.bf16.msra.mxu0 0
    %3891 = vmatprep.subr.bf16.mxu0 0
    %3892 = vmatpush1.bf16.msra.mxu0 0
    %3893 = vmatprep.subr.bf16.mxu0 0
    %3894 = vmatpush1.bf16.msra.mxu0 0
    %3895 = vmatprep.subr.bf16.mxu0 0
    %3896 = vmatpush1.bf16.msra.mxu0 0
    %3897 = vmatprep.subr.bf16.mxu0 0
    %3898 = vmatpush1.bf16.msra.mxu0 0
    %3899 = vmatprep.subr.bf16.mxu0 0
    %3900 = vmatpush1.bf16.msra.mxu0 0
    %3901 = vmatprep.subr.bf16.mxu0 0
    %3902 = vmatpush1.bf16.msra.mxu0 0
    %3903 = vmatprep.subr.bf16.mxu0 0
    %3904 = vmatpush1.bf16.msra.mxu0 0
    %3905 = vmatprep.subr.bf16.mxu0 0
    %3906 = vmatpush1.bf16.msra.mxu0 0
    %3907 = vmatprep.subr.bf16.mxu0 0
    %3908 = vmatpush1.bf16.msra.mxu0 0
    %3909 = vmatprep.subr.bf16.mxu0 0
    %3910 = vmatpush1.bf16.msra.mxu0 0
    %3911 = vmatprep.subr.bf16.mxu0 0
    %3912 = vmatpush1.bf16.msra.mxu0 0
    %3913 = vmatprep.subr.bf16.mxu0 0
    %3914 = vmatpush1.bf16.msra.mxu0 0
    %3915 = vmatprep.subr.bf16.mxu0 0
    %3916 = vmatpush1.bf16.msra.mxu0 0
    %3917 = vmatprep.subr.bf16.mxu0 0
    %3918 = vmatpush1.bf16.msra.mxu0 0
    %3919 = vmatprep.mubr.bf16.mxu0 0
    %3920 = vmatmul.mubr.bf16.gmra.mrb[0].mxu0 %v3882
    %v3921 = vpop.f32.mrb[0].mxu0
    %v3922 = vadd.f32 0.0, %v3921
    %v3923 = vpop.f32.mrb[0].mxu0
    %v3924 = vpop.f32.mrb[0].mxu0
    %v3925 = vpop.f32.mrb[0].mxu0
    %3926 = vdwg.mxu0
    %3927 = vrot.lane.b32.xlu0 %v2740, 48
    %v3928 = vpop.permute.xlu0 %3927
    %v3930 = vsel %vm858, %v3876, 0
    %v3933 = vsel %vm862, %v3928, 0
    %3935 = vmatprep.subr.bf16.mxu0 0
    %3936 = vmatpush1.bf16.msra.mxu0 %v3933
    %3937 = vmatprep.subr.bf16.mxu0 0
    %3938 = vmatpush1.bf16.msra.mxu0 0
    %3939 = vmatprep.subr.bf16.mxu0 0
    %3940 = vmatpush1.bf16.msra.mxu0 0
    %3941 = vmatprep.subr.bf16.mxu0 0
    %3942 = vmatpush1.bf16.msra.mxu0 0
    %3943 = vmatprep.subr.bf16.mxu0 0
    %3944 = vmatpush1.bf16.msra.mxu0 0
    %3945 = vmatprep.subr.bf16.mxu0 0
    %3946 = vmatpush1.bf16.msra.mxu0 0
    %3947 = vmatprep.subr.bf16.mxu0 0
    %3948 = vmatpush1.bf16.msra.mxu0 0
    %3949 = vmatprep.subr.bf16.mxu0 0
    %3950 = vmatpush1.bf16.msra.mxu0 0
    %3951 = vmatprep.subr.bf16.mxu0 0
    %3952 = vmatpush1.bf16.msra.mxu0 0
    %3953 = vmatprep.subr.bf16.mxu0 0
    %3954 = vmatpush1.bf16.msra.mxu0 0
    %3955 = vmatprep.subr.bf16.mxu0 0
    %3956 = vmatpush1.bf16.msra.mxu0 0
    %3957 = vmatprep.subr.bf16.mxu0 0
    %3958 = vmatpush1.bf16.msra.mxu0 0
    %3959 = vmatprep.subr.bf16.mxu0 0
    %3960 = vmatpush1.bf16.msra.mxu0 0
    %3961 = vmatprep.subr.bf16.mxu0 0
    %3962 = vmatpush1.bf16.msra.mxu0 0
    %3963 = vmatprep.subr.bf16.mxu0 0
    %3964 = vmatpush1.bf16.msra.mxu0 0
    %3965 = vmatprep.subr.bf16.mxu0 0
    %3966 = vmatpush1.bf16.msra.mxu0 0
    %3967 = vmatprep.mubr.bf16.mxu0 0
    %3968 = vmatmul.mubr.bf16.gmra.mrb[0].mxu0 %v3930
    %v3969 = vpop.f32.mrb[0].mxu0
    %v3970 = vadd.f32 0.0, %v3969
    %v3971 = vpop.f32.mrb[0].mxu0
    %v3972 = vpop.f32.mrb[0].mxu0
    %v3973 = vpop.f32.mrb[0].mxu0
    %3974 = vdwg.mxu0
    %3975 = vrot.lane.b32.xlu0 %v2741, 48
    %v3976 = vpop.permute.xlu0 %3975
    %v3978 = vsel %vm858, %v3877, 0
    %v3981 = vsel %vm862, %v3976, 0
    %3983 = vmatprep.subr.bf16.mxu0 0
    %3984 = vmatpush1.bf16.msra.mxu0 %v3981
    %3985 = vmatprep.subr.bf16.mxu0 0
    %3986 = vmatpush1.bf16.msra.mxu0 0
    %3987 = vmatprep.subr.bf16.mxu0 0
    %3988 = vmatpush1.bf16.msra.mxu0 0
    %3989 = vmatprep.subr.bf16.mxu0 0
    %3990 = vmatpush1.bf16.msra.mxu0 0
    %3991 = vmatprep.subr.bf16.mxu0 0
    %3992 = vmatpush1.bf16.msra.mxu0 0
    %3993 = vmatprep.subr.bf16.mxu0 0
    %3994 = vmatpush1.bf16.msra.mxu0 0
    %3995 = vmatprep.subr.bf16.mxu0 0
    %3996 = vmatpush1.bf16.msra.mxu0 0
    %3997 = vmatprep.subr.bf16.mxu0 0
    %3998 = vmatpush1.bf16.msra.mxu0 0
    %3999 = vmatprep.subr.bf16.mxu0 0
    %4000 = vmatpush1.bf16.msra.mxu0 0
    %4001 = vmatprep.subr.bf16.mxu0 0
    %4002 = vmatpush1.bf16.msra.mxu0 0
    %4003 = vmatprep.subr.bf16.mxu0 0
    %4004 = vmatpush1.bf16.msra.mxu0 0
    %4005 = vmatprep.subr.bf16.mxu0 0
    %4006 = vmatpush1.bf16.msra.mxu0 0
    %4007 = vmatprep.subr.bf16.mxu0 0
    %4008 = vmatpush1.bf16.msra.mxu0 0
    %4009 = vmatprep.subr.bf16.mxu0 0
    %4010 = vmatpush1.bf16.msra.mxu0 0
    %4011 = vmatprep.subr.bf16.mxu0 0
    %4012 = vmatpush1.bf16.msra.mxu0 0
    %4013 = vmatprep.subr.bf16.mxu0 0
    %4014 = vmatpush1.bf16.msra.mxu0 0
    %4015 = vmatprep.mubr.bf16.mxu0 0
    %4016 = vmatmul.mubr.bf16.gmra.mrb[0].mxu0 %v3978
    %v4017 = vpop.f32.mrb[0].mxu0
    %v4018 = vadd.f32 0.0, %v4017
    %v4019 = vpop.f32.mrb[0].mxu0
    %v4020 = vpop.f32.mrb[0].mxu0
    %v4021 = vpop.f32.mrb[0].mxu0
    %4022 = vdwg.mxu0
    %4023 = vrot.lane.b32.xlu0 %v2742, 48
    %v4024 = vpop.permute.xlu0 %4023
    %v4026 = vsel %vm858, %v3878, 0
    %v4029 = vsel %vm862, %v4024, 0
    %4031 = vmatprep.subr.bf16.mxu0 0
    %4032 = vmatpush1.bf16.msra.mxu0 %v4029
    %4033 = vmatprep.subr.bf16.mxu0 0
    %4034 = vmatpush1.bf16.msra.mxu0 0
    %4035 = vmatprep.subr.bf16.mxu0 0
    %4036 = vmatpush1.bf16.msra.mxu0 0
    %4037 = vmatprep.subr.bf16.mxu0 0
    %4038 = vmatpush1.bf16.msra.mxu0 0
    %4039 = vmatprep.subr.bf16.mxu0 0
    %4040 = vmatpush1.bf16.msra.mxu0 0
    %4041 = vmatprep.subr.bf16.mxu0 0
    %4042 = vmatpush1.bf16.msra.mxu0 0
    %4043 = vmatprep.subr.bf16.mxu0 0
    %4044 = vmatpush1.bf16.msra.mxu0 0
    %4045 = vmatprep.subr.bf16.mxu0 0
    %4046 = vmatpush1.bf16.msra.mxu0 0
    %4047 = vmatprep.subr.bf16.mxu0 0
    %4048 = vmatpush1.bf16.msra.mxu0 0
    %4049 = vmatprep.subr.bf16.mxu0 0
    %4050 = vmatpush1.bf16.msra.mxu0 0
    %4051 = vmatprep.subr.bf16.mxu0 0
    %4052 = vmatpush1.bf16.msra.mxu0 0
    %4053 = vmatprep.subr.bf16.mxu0 0
    %4054 = vmatpush1.bf16.msra.mxu0 0
    %4055 = vmatprep.subr.bf16.mxu0 0
    %4056 = vmatpush1.bf16.msra.mxu0 0
    %4057 = vmatprep.subr.bf16.mxu0 0
    %4058 = vmatpush1.bf16.msra.mxu0 0
    %4059 = vmatprep.subr.bf16.mxu0 0
    %4060 = vmatpush1.bf16.msra.mxu0 0
    %4061 = vmatprep.subr.bf16.mxu0 0
    %4062 = vmatpush1.bf16.msra.mxu0 0
    %4063 = vmatprep.mubr.bf16.mxu0 0
    %4064 = vmatmul.mubr.bf16.gmra.mrb[0].mxu0 %v4026
    %v4065 = vpop.f32.mrb[0].mxu0
    %v4066 = vadd.f32 0.0, %v4065
    %v4067 = vpop.f32.mrb[0].mxu0
    %v4068 = vpop.f32.mrb[0].mxu0
    %v4069 = vpop.f32.mrb[0].mxu0
    %4070 = vdwg.mxu0
    %4071 = vrot.lane.b32.xlu0 %v2739, 104
    %v4072 = vpop.permute.xlu0 %4071
    %4073 = vrot.lane.b32.xlu0 %v2739, 72
    %v4074 = vpop.permute.xlu0 %4073
    %v4076 = vsel %vm609, %v4072, 0
    %v4079 = vsel %vm609, %v4074, 0
    %4081 = vmatprep.subr.bf16.mxu0 0
    %4082 = vmatpush1.bf16.xpose.msra.mxu0 %v4079
    %4083 = vmatprep.subr.bf16.mxu0 0
    %4084 = vmatpush1.bf16.xpose.msra.mxu0 0
    %4085 = vmatprep.subr.bf16.mxu0 0
    %4086 = vmatpush1.bf16.xpose.msra.mxu0 0
    %4087 = vmatprep.subr.bf16.mxu0 0
    %4088 = vmatpush1.bf16.xpose.msra.mxu0 0
    %4089 = vmatprep.subr.bf16.mxu0 0
    %4090 = vmatpush1.bf16.xpose.msra.mxu0 0
    %4091 = vmatprep.subr.bf16.mxu0 0
    %4092 = vmatpush1.bf16.xpose.msra.mxu0 0
    %4093 = vmatprep.subr.bf16.mxu0 0
    %4094 = vmatpush1.bf16.xpose.msra.mxu0 0
    %4095 = vmatprep.subr.bf16.mxu0 0
    %4096 = vmatpush1.bf16.xpose.msra.mxu0 0
    %4097 = vmatprep.subr.bf16.mxu0 0
    %4098 = vmatpush1.bf16.xpose.msra.mxu0 0
    %4099 = vmatprep.subr.bf16.mxu0 0
    %4100 = vmatpush1.bf16.xpose.msra.mxu0 0
    %4101 = vmatprep.subr.bf16.mxu0 0
    %4102 = vmatpush1.bf16.xpose.msra.mxu0 0
    %4103 = vmatprep.subr.bf16.mxu0 0
    %4104 = vmatpush1.bf16.xpose.msra.mxu0 0
    %4105 = vmatprep.subr.bf16.mxu0 0
    %4106 = vmatpush1.bf16.xpose.msra.mxu0 0
    %4107 = vmatprep.subr.bf16.mxu0 0
    %4108 = vmatpush1.bf16.xpose.msra.mxu0 0
    %4109 = vmatprep.subr.bf16.mxu0 0
    %4110 = vmatpush1.bf16.xpose.msra.mxu0 0
    %4111 = vmatprep.subr.bf16.mxu0 0
    %4112 = vmatpush1.bf16.xpose.msra.mxu0 0
    %4113 = vmatprep.mubr.bf16.mxu0 0
    %4114 = vmatmul.mubr.bf16.gmra.mrb[0].mxu0 %v4076
    %v4115 = vpop.f32.mrb[0].mxu0
    %v4116 = vadd.f32 0.0, %v4115
    %v4117 = vpop.f32.mrb[0].mxu0
    %v4118 = vpop.f32.mrb[0].mxu0
    %v4119 = vpop.f32.mrb[0].mxu0
    %4120 = vdwg.mxu0
    %4121 = vrot.lane.b32.xlu0 %v2740, 104
    %v4122 = vpop.permute.xlu0 %4121
    %4123 = vrot.lane.b32.xlu0 %v2740, 72
    %v4124 = vpop.permute.xlu0 %4123
    %v4126 = vsel %vm609, %v4122, 0
    %v4129 = vsel %vm609, %v4124, 0
    %4131 = vmatprep.subr.bf16.mxu0 0
    %4132 = vmatpush1.bf16.xpose.msra.mxu0 %v4129
    %4133 = vmatprep.subr.bf16.mxu0 0
    %4134 = vmatpush1.bf16.xpose.msra.mxu0 0
    %4135 = vmatprep.subr.bf16.mxu0 0
    %4136 = vmatpush1.bf16.xpose.msra.mxu0 0
    %4137 = vmatprep.subr.bf16.mxu0 0
    %4138 = vmatpush1.bf16.xpose.msra.mxu0 0
    %4139 = vmatprep.subr.bf16.mxu0 0
    %4140 = vmatpush1.bf16.xpose.msra.mxu0 0
    %4141 = vmatprep.subr.bf16.mxu0 0
    %4142 = vmatpush1.bf16.xpose.msra.mxu0 0
    %4143 = vmatprep.subr.bf16.mxu0 0
    %4144 = vmatpush1.bf16.xpose.msra.mxu0 0
    %4145 = vmatprep.subr.bf16.mxu0 0
    %4146 = vmatpush1.bf16.xpose.msra.mxu0 0
    %4147 = vmatprep.subr.bf16.mxu0 0
    %4148 = vmatpush1.bf16.xpose.msra.mxu0 0
    %4149 = vmatprep.subr.bf16.mxu0 0
    %4150 = vmatpush1.bf16.xpose.msra.mxu0 0
    %4151 = vmatprep.subr.bf16.mxu0 0
    %4152 = vmatpush1.bf16.xpose.msra.mxu0 0
    %4153 = vmatprep.subr.bf16.mxu0 0
    %4154 = vmatpush1.bf16.xpose.msra.mxu0 0
    %4155 = vmatprep.subr.bf16.mxu0 0
    %4156 = vmatpush1.bf16.xpose.msra.mxu0 0
    %4157 = vmatprep.subr.bf16.mxu0 0
    %4158 = vmatpush1.bf16.xpose.msra.mxu0 0
    %4159 = vmatprep.subr.bf16.mxu0 0
    %4160 = vmatpush1.bf16.xpose.msra.mxu0 0
    %4161 = vmatprep.subr.bf16.mxu0 0
    %4162 = vmatpush1.bf16.xpose.msra.mxu0 0
    %4163 = vmatprep.mubr.bf16.mxu0 0
    %4164 = vmatmul.mubr.bf16.gmra.mrb[0].mxu0 %v4126
    %v4165 = vpop.f32.mrb[0].mxu0
    %v4166 = vadd.f32 0.0, %v4165
    %v4167 = vpop.f32.mrb[0].mxu0
    %v4168 = vpop.f32.mrb[0].mxu0
    %v4169 = vpop.f32.mrb[0].mxu0
    %4170 = vdwg.mxu0
    %4171 = vrot.lane.b32.xlu0 %v2741, 104
    %v4172 = vpop.permute.xlu0 %4171
    %4173 = vrot.lane.b32.xlu0 %v2741, 72
    %v4174 = vpop.permute.xlu0 %4173
    %v4176 = vsel %vm609, %v4172, 0
    %v4179 = vsel %vm609, %v4174, 0
    %4181 = vmatprep.subr.bf16.mxu0 0
    %4182 = vmatpush1.bf16.xpose.msra.mxu0 %v4179
    %4183 = vmatprep.subr.bf16.mxu0 0
    %4184 = vmatpush1.bf16.xpose.msra.mxu0 0
    %4185 = vmatprep.subr.bf16.mxu0 0
    %4186 = vmatpush1.bf16.xpose.msra.mxu0 0
    %4187 = vmatprep.subr.bf16.mxu0 0
    %4188 = vmatpush1.bf16.xpose.msra.mxu0 0
    %4189 = vmatprep.subr.bf16.mxu0 0
    %4190 = vmatpush1.bf16.xpose.msra.mxu0 0
    %4191 = vmatprep.subr.bf16.mxu0 0
    %4192 = vmatpush1.bf16.xpose.msra.mxu0 0
    %4193 = vmatprep.subr.bf16.mxu0 0
    %4194 = vmatpush1.bf16.xpose.msra.mxu0 0
    %4195 = vmatprep.subr.bf16.mxu0 0
    %4196 = vmatpush1.bf16.xpose.msra.mxu0 0
    %4197 = vmatprep.subr.bf16.mxu0 0
    %4198 = vmatpush1.bf16.xpose.msra.mxu0 0
    %4199 = vmatprep.subr.bf16.mxu0 0
    %4200 = vmatpush1.bf16.xpose.msra.mxu0 0
    %4201 = vmatprep.subr.bf16.mxu0 0
    %4202 = vmatpush1.bf16.xpose.msra.mxu0 0
    %4203 = vmatprep.subr.bf16.mxu0 0
    %4204 = vmatpush1.bf16.xpose.msra.mxu0 0
    %4205 = vmatprep.subr.bf16.mxu0 0
    %4206 = vmatpush1.bf16.xpose.msra.mxu0 0
    %4207 = vmatprep.subr.bf16.mxu0 0
    %4208 = vmatpush1.bf16.xpose.msra.mxu0 0
    %4209 = vmatprep.subr.bf16.mxu0 0
    %4210 = vmatpush1.bf16.xpose.msra.mxu0 0
    %4211 = vmatprep.subr.bf16.mxu0 0
    %4212 = vmatpush1.bf16.xpose.msra.mxu0 0
    %4213 = vmatprep.mubr.bf16.mxu0 0
    %4214 = vmatmul.mubr.bf16.gmra.mrb[0].mxu0 %v4176
    %v4215 = vpop.f32.mrb[0].mxu0
    %v4216 = vadd.f32 0.0, %v4215
    %v4217 = vpop.f32.mrb[0].mxu0
    %v4218 = vpop.f32.mrb[0].mxu0
    %v4219 = vpop.f32.mrb[0].mxu0
    %4220 = vdwg.mxu0
    %4221 = vrot.lane.b32.xlu0 %v2742, 104
    %v4222 = vpop.permute.xlu0 %4221
    %4223 = vrot.lane.b32.xlu0 %v2742, 72
    %v4224 = vpop.permute.xlu0 %4223
    %v4226 = vsel %vm609, %v4222, 0
    %v4229 = vsel %vm609, %v4224, 0
    %4231 = vmatprep.subr.bf16.mxu0 0
    %4232 = vmatpush1.bf16.xpose.msra.mxu0 %v4229
    %4233 = vmatprep.subr.bf16.mxu0 0
    %4234 = vmatpush1.bf16.xpose.msra.mxu0 0
    %4235 = vmatprep.subr.bf16.mxu0 0
    %4236 = vmatpush1.bf16.xpose.msra.mxu0 0
    %4237 = vmatprep.subr.bf16.mxu0 0
    %4238 = vmatpush1.bf16.xpose.msra.mxu0 0
    %4239 = vmatprep.subr.bf16.mxu0 0
    %4240 = vmatpush1.bf16.xpose.msra.mxu0 0
    %4241 = vmatprep.subr.bf16.mxu0 0
    %4242 = vmatpush1.bf16.xpose.msra.mxu0 0
    %4243 = vmatprep.subr.bf16.mxu0 0
    %4244 = vmatpush1.bf16.xpose.msra.mxu0 0
    %4245 = vmatprep.subr.bf16.mxu0 0
    %4246 = vmatpush1.bf16.xpose.msra.mxu0 0
    %4247 = vmatprep.subr.bf16.mxu0 0
    %4248 = vmatpush1.bf16.xpose.msra.mxu0 0
    %4249 = vmatprep.subr.bf16.mxu0 0
    %4250 = vmatpush1.bf16.xpose.msra.mxu0 0
    %4251 = vmatprep.subr.bf16.mxu0 0
    %4252 = vmatpush1.bf16.xpose.msra.mxu0 0
    %4253 = vmatprep.subr.bf16.mxu0 0
    %4254 = vmatpush1.bf16.xpose.msra.mxu0 0
    %4255 = vmatprep.subr.bf16.mxu0 0
    %4256 = vmatpush1.bf16.xpose.msra.mxu0 0
    %4257 = vmatprep.subr.bf16.mxu0 0
    %4258 = vmatpush1.bf16.xpose.msra.mxu0 0
    %4259 = vmatprep.subr.bf16.mxu0 0
    %4260 = vmatpush1.bf16.xpose.msra.mxu0 0
    %4261 = vmatprep.subr.bf16.mxu0 0
    %4262 = vmatpush1.bf16.xpose.msra.mxu0 0
    %4263 = vmatprep.mubr.bf16.mxu0 0
    %4264 = vmatmul.mubr.bf16.gmra.mrb[0].mxu0 %v4226
    %v4265 = vpop.f32.mrb[0].mxu0
    %v4266 = vadd.f32 0.0, %v4265
    %v4267 = vpop.f32.mrb[0].mxu0
    %v4268 = vpop.f32.mrb[0].mxu0
    %v4269 = vpop.f32.mrb[0].mxu0
    %4270 = vdwg.mxu0
    %v4271 = vmul.f32 %v4116, 0.35355338
    %v4272 = vmul.f32 %v4166, 0.35355338
    %v4273 = vmul.f32 %v4216, 0.35355338
    %v4274 = vmul.f32 %v4266, 0.35355338
    %v4275 = vsel %vm807, %v4271, -inf
    %4276 = vmax.xlane.f32.xlu0 %v4275
    %v4277 = vpop.xlane.xlu0 %4276
    %v4278 = vsel %vm807, %v4272, -inf
    %4279 = vmax.xlane.f32.xlu0 %v4278
    %v4280 = vpop.xlane.xlu0 %4279
    %v4281 = vsel %vm807, %v4273, -inf
    %4282 = vmax.xlane.f32.xlu0 %v4281
    %v4283 = vpop.xlane.xlu0 %4282
    %v4284 = vsel %vm807, %v4274, -inf
    %4285 = vmax.xlane.f32.xlu0 %v4284
    %v4286 = vpop.xlane.xlu0 %4285
    %v4287 = vsub.f32 %v4271, %v4277
    %v4288 = vsub.f32 %v4272, %v4280
    %v4289 = vsub.f32 %v4273, %v4283
    %v4290 = vsub.f32 %v4274, %v4286
    %v4291 = vmul.f32 %v4287, 1.442695
    %v4292 = vpow.pop %v4291
    %v4293 = vmul.f32 %v4288, 1.442695
    %v4294 = vpow.pop %v4293
    %v4295 = vmul.f32 %v4289, 1.442695
    %v4296 = vpow.pop %v4295
    %v4297 = vmul.f32 %v4290, 1.442695
    %v4298 = vpow.pop %v4297
    %v4299 = vsel %vm807, %v4292, 0.0
    %4300 = vadd.xlane.f32.xlu0 %v4299
    %v4301 = vpop.xlane.xlu0 %4300
    %v4302 = vsel %vm807, %v4294, 0.0
    %4303 = vadd.xlane.f32.xlu0 %v4302
    %v4304 = vpop.xlane.xlu0 %4303
    %v4305 = vsel %vm807, %v4296, 0.0
    %4306 = vadd.xlane.f32.xlu0 %v4305
    %v4307 = vpop.xlane.xlu0 %4306
    %v4308 = vsel %vm807, %v4298, 0.0
    %4309 = vadd.xlane.f32.xlu0 %v4308
    %v4310 = vpop.xlane.xlu0 %4309
    %v4311 = vrcp.pop %v4301
    %v4312 = vrcp.pop %v4304
    %v4313 = vrcp.pop %v4307
    %v4314 = vrcp.pop %v4310
    %v4315 = vmul.f32 %v4292, %v4311
    %v4316 = vmul.f32 %v4294, %v4312
    %v4317 = vmul.f32 %v4296, %v4313
    %v4318 = vmul.f32 %v4298, %v4314
    %v4319 = vpack.c.bf16 %v4315, %v4315
    %v4320 = vpack.c.bf16 %v4316, %v4316
    %v4321 = vpack.c.bf16 %v4317, %v4317
    %v4322 = vpack.c.bf16 %v4318, %v4318
    %4323 = vrot.lane.b32.xlu0 %v2739, 40
    %v4324 = vpop.permute.xlu0 %4323
    %v4326 = vsel %vm858, %v4319, 0
    %v4329 = vsel %vm862, %v4324, 0
    %4331 = vmatprep.subr.bf16.mxu0 0
    %4332 = vmatpush1.bf16.msra.mxu0 %v4329
    %4333 = vmatprep.subr.bf16.mxu0 0
    %4334 = vmatpush1.bf16.msra.mxu0 0
    %4335 = vmatprep.subr.bf16.mxu0 0
    %4336 = vmatpush1.bf16.msra.mxu0 0
    %4337 = vmatprep.subr.bf16.mxu0 0
    %4338 = vmatpush1.bf16.msra.mxu0 0
    %4339 = vmatprep.subr.bf16.mxu0 0
    %4340 = vmatpush1.bf16.msra.mxu0 0
    %4341 = vmatprep.subr.bf16.mxu0 0
    %4342 = vmatpush1.bf16.msra.mxu0 0
    %4343 = vmatprep.subr.bf16.mxu0 0
    %4344 = vmatpush1.bf16.msra.mxu0 0
    %4345 = vmatprep.subr.bf16.mxu0 0
    %4346 = vmatpush1.bf16.msra.mxu0 0
    %4347 = vmatprep.subr.bf16.mxu0 0
    %4348 = vmatpush1.bf16.msra.mxu0 0
    %4349 = vmatprep.subr.bf16.mxu0 0
    %4350 = vmatpush1.bf16.msra.mxu0 0
    %4351 = vmatprep.subr.bf16.mxu0 0
    %4352 = vmatpush1.bf16.msra.mxu0 0
    %4353 = vmatprep.subr.bf16.mxu0 0
    %4354 = vmatpush1.bf16.msra.mxu0 0
    %4355 = vmatprep.subr.bf16.mxu0 0
    %4356 = vmatpush1.bf16.msra.mxu0 0
    %4357 = vmatprep.subr.bf16.mxu0 0
    %4358 = vmatpush1.bf16.msra.mxu0 0
    %4359 = vmatprep.subr.bf16.mxu0 0
    %4360 = vmatpush1.bf16.msra.mxu0 0
    %4361 = vmatprep.subr.bf16.mxu0 0
    %4362 = vmatpush1.bf16.msra.mxu0 0
    %4363 = vmatprep.mubr.bf16.mxu0 0
    %4364 = vmatmul.mubr.bf16.gmra.mrb[0].mxu0 %v4326
    %v4365 = vpop.f32.mrb[0].mxu0
    %v4366 = vadd.f32 0.0, %v4365
    %v4367 = vpop.f32.mrb[0].mxu0
    %v4368 = vpop.f32.mrb[0].mxu0
    %v4369 = vpop.f32.mrb[0].mxu0
    %4370 = vdwg.mxu0
    %4371 = vrot.lane.b32.xlu0 %v2740, 40
    %v4372 = vpop.permute.xlu0 %4371
    %v4374 = vsel %vm858, %v4320, 0
    %v4377 = vsel %vm862, %v4372, 0
    %4379 = vmatprep.subr.bf16.mxu0 0
    %4380 = vmatpush1.bf16.msra.mxu0 %v4377
    %4381 = vmatprep.subr.bf16.mxu0 0
    %4382 = vmatpush1.bf16.msra.mxu0 0
    %4383 = vmatprep.subr.bf16.mxu0 0
    %4384 = vmatpush1.bf16.msra.mxu0 0
    %4385 = vmatprep.subr.bf16.mxu0 0
    %4386 = vmatpush1.bf16.msra.mxu0 0
    %4387 = vmatprep.subr.bf16.mxu0 0
    %4388 = vmatpush1.bf16.msra.mxu0 0
    %4389 = vmatprep.subr.bf16.mxu0 0
    %4390 = vmatpush1.bf16.msra.mxu0 0
    %4391 = vmatprep.subr.bf16.mxu0 0
    %4392 = vmatpush1.bf16.msra.mxu0 0
    %4393 = vmatprep.subr.bf16.mxu0 0
    %4394 = vmatpush1.bf16.msra.mxu0 0
    %4395 = vmatprep.subr.bf16.mxu0 0
    %4396 = vmatpush1.bf16.msra.mxu0 0
    %4397 = vmatprep.subr.bf16.mxu0 0
    %4398 = vmatpush1.bf16.msra.mxu0 0
    %4399 = vmatprep.subr.bf16.mxu0 0
    %4400 = vmatpush1.bf16.msra.mxu0 0
    %4401 = vmatprep.subr.bf16.mxu0 0
    %4402 = vmatpush1.bf16.msra.mxu0 0
    %4403 = vmatprep.subr.bf16.mxu0 0
    %4404 = vmatpush1.bf16.msra.mxu0 0
    %4405 = vmatprep.subr.bf16.mxu0 0
    %4406 = vmatpush1.bf16.msra.mxu0 0
    %4407 = vmatprep.subr.bf16.mxu0 0
    %4408 = vmatpush1.bf16.msra.mxu0 0
    %4409 = vmatprep.subr.bf16.mxu0 0
    %4410 = vmatpush1.bf16.msra.mxu0 0
    %4411 = vmatprep.mubr.bf16.mxu0 0
    %4412 = vmatmul.mubr.bf16.gmra.mrb[0].mxu0 %v4374
    %v4413 = vpop.f32.mrb[0].mxu0
    %v4414 = vadd.f32 0.0, %v4413
    %v4415 = vpop.f32.mrb[0].mxu0
    %v4416 = vpop.f32.mrb[0].mxu0
    %v4417 = vpop.f32.mrb[0].mxu0
    %4418 = vdwg.mxu0
    %4419 = vrot.lane.b32.xlu0 %v2741, 40
    %v4420 = vpop.permute.xlu0 %4419
    %v4422 = vsel %vm858, %v4321, 0
    %v4425 = vsel %vm862, %v4420, 0
    %4427 = vmatprep.subr.bf16.mxu0 0
    %4428 = vmatpush1.bf16.msra.mxu0 %v4425
    %4429 = vmatprep.subr.bf16.mxu0 0
    %4430 = vmatpush1.bf16.msra.mxu0 0
    %4431 = vmatprep.subr.bf16.mxu0 0
    %4432 = vmatpush1.bf16.msra.mxu0 0
    %4433 = vmatprep.subr.bf16.mxu0 0
    %4434 = vmatpush1.bf16.msra.mxu0 0
    %4435 = vmatprep.subr.bf16.mxu0 0
    %4436 = vmatpush1.bf16.msra.mxu0 0
    %4437 = vmatprep.subr.bf16.mxu0 0
    %4438 = vmatpush1.bf16.msra.mxu0 0
    %4439 = vmatprep.subr.bf16.mxu0 0
    %4440 = vmatpush1.bf16.msra.mxu0 0
    %4441 = vmatprep.subr.bf16.mxu0 0
    %4442 = vmatpush1.bf16.msra.mxu0 0
    %4443 = vmatprep.subr.bf16.mxu0 0
    %4444 = vmatpush1.bf16.msra.mxu0 0
    %4445 = vmatprep.subr.bf16.mxu0 0
    %4446 = vmatpush1.bf16.msra.mxu0 0
    %4447 = vmatprep.subr.bf16.mxu0 0
    %4448 = vmatpush1.bf16.msra.mxu0 0
    %4449 = vmatprep.subr.bf16.mxu0 0
    %4450 = vmatpush1.bf16.msra.mxu0 0
    %4451 = vmatprep.subr.bf16.mxu0 0
    %4452 = vmatpush1.bf16.msra.mxu0 0
    %4453 = vmatprep.subr.bf16.mxu0 0
    %4454 = vmatpush1.bf16.msra.mxu0 0
    %4455 = vmatprep.subr.bf16.mxu0 0
    %4456 = vmatpush1.bf16.msra.mxu0 0
    %4457 = vmatprep.subr.bf16.mxu0 0
    %4458 = vmatpush1.bf16.msra.mxu0 0
    %4459 = vmatprep.mubr.bf16.mxu0 0
    %4460 = vmatmul.mubr.bf16.gmra.mrb[0].mxu0 %v4422
    %v4461 = vpop.f32.mrb[0].mxu0
    %v4462 = vadd.f32 0.0, %v4461
    %v4463 = vpop.f32.mrb[0].mxu0
    %v4464 = vpop.f32.mrb[0].mxu0
    %v4465 = vpop.f32.mrb[0].mxu0
    %4466 = vdwg.mxu0
    %4467 = vrot.lane.b32.xlu0 %v2742, 40
    %v4468 = vpop.permute.xlu0 %4467
    %v4470 = vsel %vm858, %v4322, 0
    %v4473 = vsel %vm862, %v4468, 0
    %4475 = vmatprep.subr.bf16.mxu0 0
    %4476 = vmatpush1.bf16.msra.mxu0 %v4473
    %4477 = vmatprep.subr.bf16.mxu0 0
    %4478 = vmatpush1.bf16.msra.mxu0 0
    %4479 = vmatprep.subr.bf16.mxu0 0
    %4480 = vmatpush1.bf16.msra.mxu0 0
    %4481 = vmatprep.subr.bf16.mxu0 0
    %4482 = vmatpush1.bf16.msra.mxu0 0
    %4483 = vmatprep.subr.bf16.mxu0 0
    %4484 = vmatpush1.bf16.msra.mxu0 0
    %4485 = vmatprep.subr.bf16.mxu0 0
    %4486 = vmatpush1.bf16.msra.mxu0 0
    %4487 = vmatprep.subr.bf16.mxu0 0
    %4488 = vmatpush1.bf16.msra.mxu0 0
    %4489 = vmatprep.subr.bf16.mxu0 0
    %4490 = vmatpush1.bf16.msra.mxu0 0
    %4491 = vmatprep.subr.bf16.mxu0 0
    %4492 = vmatpush1.bf16.msra.mxu0 0
    %4493 = vmatprep.subr.bf16.mxu0 0
    %4494 = vmatpush1.bf16.msra.mxu0 0
    %4495 = vmatprep.subr.bf16.mxu0 0
    %4496 = vmatpush1.bf16.msra.mxu0 0
    %4497 = vmatprep.subr.bf16.mxu0 0
    %4498 = vmatpush1.bf16.msra.mxu0 0
    %4499 = vmatprep.subr.bf16.mxu0 0
    %4500 = vmatpush1.bf16.msra.mxu0 0
    %4501 = vmatprep.subr.bf16.mxu0 0
    %4502 = vmatpush1.bf16.msra.mxu0 0
    %4503 = vmatprep.subr.bf16.mxu0 0
    %4504 = vmatpush1.bf16.msra.mxu0 0
    %4505 = vmatprep.subr.bf16.mxu0 0
    %4506 = vmatpush1.bf16.msra.mxu0 0
    %4507 = vmatprep.mubr.bf16.mxu0 0
    %4508 = vmatmul.mubr.bf16.gmra.mrb[0].mxu0 %v4470
    %v4509 = vpop.f32.mrb[0].mxu0
    %v4510 = vadd.f32 0.0, %v4509
    %v4511 = vpop.f32.mrb[0].mxu0
    %v4512 = vpop.f32.mrb[0].mxu0
    %v4513 = vpop.f32.mrb[0].mxu0
    %4514 = vdwg.mxu0
    %4519 = vrot.lane.b32.xlu0 %v3478, 8
    %v4520 = vpop.permute.xlu0 %4519
    %4521 = vrot.lane.b32.xlu0 %v3526, 8
    %v4522 = vpop.permute.xlu0 %4521
    %4523 = vrot.lane.b32.xlu0 %v3574, 8
    %v4524 = vpop.permute.xlu0 %4523
    %4525 = vrot.lane.b32.xlu0 %v3622, 8
    %v4526 = vpop.permute.xlu0 %4525
    %4535 = vrot.lane.b32.xlu0 %v3922, 16
    %v4536 = vpop.permute.xlu0 %4535
    %4537 = vrot.lane.b32.xlu0 %v3970, 16
    %v4538 = vpop.permute.xlu0 %4537
    %4539 = vrot.lane.b32.xlu0 %v4018, 16
    %v4540 = vpop.permute.xlu0 %4539
    %4541 = vrot.lane.b32.xlu0 %v4066, 16
    %v4542 = vpop.permute.xlu0 %4541
    %4551 = vrot.lane.b32.xlu0 %v4366, 24
    %v4552 = vpop.permute.xlu0 %4551
    %4553 = vrot.lane.b32.xlu0 %v4414, 24
    %v4554 = vpop.permute.xlu0 %4553
    %4555 = vrot.lane.b32.xlu0 %v4462, 24
    %v4556 = vpop.permute.xlu0 %4555
    %4557 = vrot.lane.b32.xlu0 %v4510, 24
    %v4558 = vpop.permute.xlu0 %4557
    %v4563 = vsel %vm609, %v3034, %v4520
    %v4564 = vsel %vm609, %v3082, %v4522
    %v4565 = vsel %vm609, %v3130, %v4524
    %v4566 = vsel %vm609, %v3178, %v4526
    %v4567 = vsel %vm2434, %v4563, %v4536
    %v4568 = vsel %vm2434, %v4564, %v4538
    %v4569 = vsel %vm2434, %v4565, %v4540
    %v4570 = vsel %vm2434, %v4566, %v4542
    %v4571 = vsel %vm2439, %v4567, %v4552
    %v4572 = vsel %vm2439, %v4568, %v4554
    %v4573 = vsel %vm2439, %v4569, %v4556
    %v4574 = vsel %vm2439, %v4570, %v4558
    %v4579 = vcombine.low %v4571, %v4572
    %v4580 = vcombine.low %v4573, %v4574
    %v4582 = vunpack.c.l.s4 1983009808
    %v4583 = vunpack.c.0.s8 %v4582
    %v4584 = vlaneseq
    %v4585 = vshrl.u32 %v4584, 7
    %v4586 = vsub.s32 %v4583, %v4585
    %v4587 = vrot.slane %v4579, %v4586
    %v4589 = vunpack.c.l.s4 1983009808
    %v4590 = vunpack.c.0.s8 %v4589
    %v4591 = vlaneseq
    %v4592 = vshrl.u32 %v4591, 7
    %v4593 = vsub.s32 %v4590, %v4592
    %v4594 = vrot.slane %v4580, %v4593
    %v4595 = vcombine.low %v4587, %v4594
    %v4597 = vpack.c.bf16 %v4595, %v4595
    %v4599 = vsel %vm536, %v4597, 0
    %4601 = vmatprep.subr.bf16.mxu0 0
    %4602 = vmatpush1.bf16.msra.mxu0 %v2481
    %4603 = vmatprep.subr.bf16.mxu0 0
    %4604 = vmatpush1.bf16.msra.mxu0 %v2482
    %4605 = vmatprep.subr.bf16.mxu0 0
    %4606 = vmatpush1.bf16.msra.mxu0 0
    %4607 = vmatprep.subr.bf16.mxu0 0
    %4608 = vmatpush1.bf16.msra.mxu0 0
    %4609 = vmatprep.subr.bf16.mxu0 0
    %4610 = vmatpush1.bf16.msra.mxu0 0
    %4611 = vmatprep.subr.bf16.mxu0 0
    %4612 = vmatpush1.bf16.msra.mxu0 0
    %4613 = vmatprep.subr.bf16.mxu0 0
    %4614 = vmatpush1.bf16.msra.mxu0 0
    %4615 = vmatprep.subr.bf16.mxu0 0
    %4616 = vmatpush1.bf16.msra.mxu0 0
    %4617 = vmatprep.subr.bf16.mxu0 0
    %4618 = vmatpush1.bf16.msra.mxu0 0
    %4619 = vmatprep.subr.bf16.mxu0 0
    %4620 = vmatpush1.bf16.msra.mxu0 0
    %4621 = vmatprep.subr.bf16.mxu0 0
    %4622 = vmatpush1.bf16.msra.mxu0 0
    %4623 = vmatprep.subr.bf16.mxu0 0
    %4624 = vmatpush1.bf16.msra.mxu0 0
    %4625 = vmatprep.subr.bf16.mxu0 0
    %4626 = vmatpush1.bf16.msra.mxu0 0
    %4627 = vmatprep.subr.bf16.mxu0 0
    %4628 = vmatpush1.bf16.msra.mxu0 0
    %4629 = vmatprep.subr.bf16.mxu0 0
    %4630 = vmatpush1.bf16.msra.mxu0 0
    %4631 = vmatprep.subr.bf16.mxu0 0
    %4632 = vmatpush1.bf16.msra.mxu0 0
    %4633 = vmatprep.mubr.bf16.mxu0 0
    %4634 = vmatmul.mubr.bf16.gmra.mrb[0].mxu0 %v4599
    %v4635 = vpop.f32.mrb[0].mxu0
    %v4636 = vadd.f32 %v2471, %v4635
    %v4637 = vpop.f32.mrb[0].mxu0
    %v4638 = vpop.f32.mrb[0].mxu0
    %v4639 = vpop.f32.mrb[0].mxu0
    %4640 = vdwg.mxu0
    %v4641 = vadd.f32 %v2672, %v4636
    %v4642 = vsel %vm536, %v4641, 0.0
    %4643 = vadd.xlane.f32.xlu0 %v4642
    %v4644 = vpop.xlane.xlu0 %4643
    %v4645 = vmul.f32 %v4644, %v377
    %v4646 = vsub.f32 %v4641, %v4645
    %v4647 = vmul.f32 %v4646, %v4646
    %v4648 = vsel %vm536, %v4647, 0.0
    %4649 = vadd.xlane.f32.xlu0 %v4648
    %v4650 = vpop.xlane.xlu0 %4649
    %v4651 = vmul.f32 %v4650, %v377
    %v4652 = vadd.f32 %v4651, 1e-05
    %v4653 = vrsqrt.pop %v4652
    %v4654 = vmul.f32 %v4646, %v4653
    %v4655 = vmul.f32 %v4654, %v2546
    %v4656 = vadd.f32 %v4655, %v2553
    %v4657 = vsel %vm536, %v4656, 0.0
    %4658 = vadd.xlane.f32.xlu0 %v4657
    %v4659 = vpop.xlane.xlu0 %4658
    %v4660 = vmul.f32 %v4659, %v377
    %v4661 = vsub.f32 %v4656, %v4660
    %v4662 = vmul.f32 %v4661, %v4661
    %v4663 = vsel %vm536, %v4662, 0.0
    %4664 = vadd.xlane.f32.xlu0 %v4663
    %v4665 = vpop.xlane.xlu0 %4664
    %v4666 = vmul.f32 %v4665, %v377
    %v4667 = vadd.f32 %v4666, 1e-05
    %v4668 = vrsqrt.pop %v4667
    %v4669 = vmul.f32 %v4661, %v4668
    %v4670 = vmul.f32 %v4669, %v2573
    %v4671 = vadd.f32 %v4670, %v2580
    %v4672 = vmul.f32 %v4671, 0.5
    %v4673 = vmul.f32 %v4671, 0.70710677
    %vm4674 = vcmp.ge.f32.partialorder %v4673, 0.0
    %v4675 = vsel %vm4674, 1.0, -1.0
    %v4676 = vand.u32 2147483647, %v4673
    %v4677 = vmul.f32 %v4676, 0.3275911
    %v4678 = vadd.f32 %v4677, 1.0
    %v4679 = vrcp.pop %v4678
    %v4680 = vmul.f32 1.0, %v4679
    %v4681 = vmul.f32 %v4680, 1.0614054
    %v4682 = vadd.f32 %v4681, -1.4531521
    %v4683 = vmul.f32 %v4682, %v4680
    %v4684 = vadd.f32 %v4683, 1.4214138
    %v4685 = vmul.f32 %v4684, %v4680
    %v4686 = vadd.f32 %v4685, -0.28449672
    %v4687 = vmul.f32 %v4686, %v4680
    %v4688 = vadd.f32 %v4687, 0.2548296
    %v4689 = vmul.f32 %v4688, %v4680
    %v4690 = vmul.f32 %v4676, %v4676
    %v4691 = vsub.f32 0.0, %v4690
    %v4692 = vmul.f32 %v4691, 1.442695
    %v4693 = vpow.pop %v4692
    %v4694 = vmul.f32 %v4689, %v4693
    %v4695 = vsub.f32 1.0, %v4694
    %v4696 = vmul.f32 %v4675, %v4695
    %v4697 = vadd.f32 %v4696, 1.0
    %v4698 = vmul.f32 %v4672, %v4697
    %v4699 = vpack.c.bf16 %v4698, %v4698
    %v4701 = vsel %vm536, %v4699, 0
    %4703 = vmatprep.subr.bf16.mxu0 0
    %4704 = vmatpush1.bf16.msra.mxu0 %v2625
    %4705 = vmatprep.subr.bf16.mxu0 0
    %4706 = vmatpush1.bf16.msra.mxu0 %v2626
    %4707 = vmatprep.subr.bf16.mxu0 0
    %4708 = vmatpush1.bf16.msra.mxu0 0
    %4709 = vmatprep.subr.bf16.mxu0 0
    %4710 = vmatpush1.bf16.msra.mxu0 0
    %4711 = vmatprep.subr.bf16.mxu0 0
    %4712 = vmatpush1.bf16.msra.mxu0 0
    %4713 = vmatprep.subr.bf16.mxu0 0
    %4714 = vmatpush1.bf16.msra.mxu0 0
    %4715 = vmatprep.subr.bf16.mxu0 0
    %4716 = vmatpush1.bf16.msra.mxu0 0
    %4717 = vmatprep.subr.bf16.mxu0 0
    %4718 = vmatpush1.bf16.msra.mxu0 0
    %4719 = vmatprep.subr.bf16.mxu0 0
    %4720 = vmatpush1.bf16.msra.mxu0 0
    %4721 = vmatprep.subr.bf16.mxu0 0
    %4722 = vmatpush1.bf16.msra.mxu0 0
    %4723 = vmatprep.subr.bf16.mxu0 0
    %4724 = vmatpush1.bf16.msra.mxu0 0
    %4725 = vmatprep.subr.bf16.mxu0 0
    %4726 = vmatpush1.bf16.msra.mxu0 0
    %4727 = vmatprep.subr.bf16.mxu0 0
    %4728 = vmatpush1.bf16.msra.mxu0 0
    %4729 = vmatprep.subr.bf16.mxu0 0
    %4730 = vmatpush1.bf16.msra.mxu0 0
    %4731 = vmatprep.subr.bf16.mxu0 0
    %4732 = vmatpush1.bf16.msra.mxu0 0
    %4733 = vmatprep.subr.bf16.mxu0 0
    %4734 = vmatpush1.bf16.msra.mxu0 0
    %4735 = vmatprep.mubr.bf16.mxu0 0
    %4736 = vmatmul.mubr.bf16.gmra.mrb[0].mxu0 %v4701
    %v4737 = vpop.f32.mrb[0].mxu0
    %v4738 = vadd.f32 %v2615, %v4737
    %v4739 = vpop.f32.mrb[0].mxu0
    %v4740 = vpop.f32.mrb[0].mxu0
    %v4741 = vpop.f32.mrb[0].mxu0
    %4742 = vdwg.mxu0
    %v4743 = vadd.f32 %v4738, %v4641
    %vm4744 = vcmask 254976
    %4745 = vst.msk [vmem:[#allocation2] sm:$0x3] %vm4744, %v4743
    // Predicated region
    $region70: #{tpu_custom_call.1} parent=1 // pred_check
      _
    $region71: #{tpu_custom_call.1} parent=1 // pred_check_branch
      %4747 = sbr.rel (0) target = $region73
    $region72: #{tpu_custom_call.1} parent=1 // pred_region
      %s4749 = ssub.s32 32, 32
      %4750 = vsyncadd [#allocation3], %s4749
      %s4752 = sshll.u32 [#allocation2], 4
      %s4753 = int_to_ptr.vmem [resolvable:$true] %s4752
      %4755 = dma.vmem_to_hbm [thread:$0]  %s4753, 32, %s17, [#allocation3]
    $region73: #{tpu_custom_call.1} parent=1 // pred_fallthru
      _
    // Predicated region
    $region74: #{tpu_custom_call.1} parent=1 // pred_check
      _
    $region75: #{tpu_custom_call.1} parent=1 // pred_check_branch
      %4757 = sbr.rel (0) target = $region77
    $region76: #{tpu_custom_call.1} parent=1 // pred_region
      %4758 = dma.done [#allocation3], 32
    $region77: #{tpu_custom_call.1} parent=1 // pred_fallthru
      _
    %4759 = vsyncpa [#allocation3], 1

</llo_original>
